<compile_context>
chip_gen: v6e
topology: v6e:2x2x1
jax: 0.10.0
libtpu: 0.0.40
codegen_flags: <defaults>
</compile_context>

<pallas_src>
import functools

import jax
import jax.numpy as jnp
from jax import lax
from jax.experimental import pallas as pl
from jax.experimental.pallas import tpu as pltpu

NEG_SLOPE = 0.2      # GATConv default LeakyReLU negative slope
NEG_INF = -1e30

# dimension_numbers for "contract last axis of both operands" (A @ B.T on the
# MXU without materializing a transposed copy).
_DN_LAST_LAST = (((1,), (1,)), ((), ()))


def _vmem_spec():
    return pl.BlockSpec(memory_space=pltpu.MemorySpace.VMEM)


def _fused_forward_kernel(
    feature_ref, adj_mask_ref, w_slab_ref, vec_slab_ref,
    drug_sim_ref, dis_sim_ref, alpha1_ref, alpha2t_ref,
    out_ref,
    *, nd, ni, fin, f1, f2, f3, gammas, ps,
):
    # int8 adjacency mask (self loops already included on the host).  Widen to
    # i32 before comparing so the predicate is produced in the (8,128) layout
    # used by the f32 selects below.
    adj_mask = adj_mask_ref[...].astype(jnp.int32) > 0          # [N, N] bool

    vec = vec_slab_ref[...]                                      # [11, P]

    # ---------------- GAT layer (dense masked attention) + ReLU -------------
    def gat_relu(x, w, asrc, adst, b):
        z = jnp.dot(x, w, preferred_element_type=jnp.float32)               # [N, F]
        # Both attention projections on the MXU.
        e_src = lax.dot_general(asrc, z, _DN_LAST_LAST,
                                preferred_element_type=jnp.float32)         # [1, N]
        e_dst = lax.dot_general(z, adst, _DN_LAST_LAST,
                                preferred_element_type=jnp.float32)         # [N, 1]
        # logits[j, i] = LeakyReLU(e_src[i] + e_dst[j])   (edge i -> j)
        logits = e_dst + e_src
        logits = jnp.where(logits > 0, logits, NEG_SLOPE * logits)
        s = jnp.where(adj_mask, logits, NEG_INF)
        m = jnp.max(s, axis=-1, keepdims=True)
        p = jnp.exp(s - m)                       # masked entries underflow to 0.0
        inv_denom = 1.0 / jnp.sum(p, axis=-1, keepdims=True)    # >= 1 (self loop)
        h = jnp.dot(p, z, preferred_element_type=jnp.float32) * inv_denom + b
        return jnp.maximum(h, 0.0)               # t.relu(...)

    # ---------------- getGipKernel(H, 0, gamma, normalized=True) ------------
    def gip(z, gamma):
        zmin = jnp.min(z, axis=-1, keepdims=True)
        zmax = jnp.max(z, axis=-1, keepdims=True)
        rng = zmax - zmin
        rng = jnp.where(rng == 0.0, 1.0, rng)                    # constant-row guard
        y = (z - zmin) * (1.0 / rng)                             # row min-max normalize
        # K0 = y @ y.T directly on the MXU.
        k0 = lax.dot_general(y, y, _DN_LAST_LAST,
                             preferred_element_type=jnp.float32)  # [M, M]
        diag = jnp.sum(y * y, axis=-1, keepdims=True)             # [M, 1]
        mean_diag = jnp.sum(diag) / z.shape[0]
        mean_diag = jnp.where(mean_diag == 0.0, 1.0, mean_diag)   # all-zero guard
        inv_mean = 1.0 / mean_diag
        k0 = k0 * inv_mean
        diag = diag * inv_mean
        dist = diag + jnp.transpose(diag) - 2.0 * k0              # kernelToDistance
        return jnp.exp(-gamma * dist)

    # ---- drug_k = sum ps_i K_i ; normalized_kernel (precomputed diag) -------
    def combine(k_list, inv_d_row):
        k = (ps[0] * k_list[0] + ps[1] * k_list[1]
             + ps[2] * k_list[2] + ps[3] * k_list[3])             # [M, M]
        k = jnp.abs(k)
        nz_min = jnp.min(jnp.where(k == 0.0, jnp.inf, k))
        nz_min = jnp.where(nz_min == jnp.inf, 1.0, nz_min)        # all-zero guard
        k = jnp.where(k == 0.0, nz_min, k)
        # diag(k) = 0.75 + 0.25*diag(sim) is strictly positive and unaffected
        # by abs / zero-fill, so inv_d = rsqrt(diag) comes precomputed.
        inv_d_col = jnp.transpose(inv_d_row)                      # [M, 1]
        return k * inv_d_col * inv_d_row

    # ---------------------------- forward ------------------------------------
    x = feature_ref[...]
    h1 = gat_relu(x, w_slab_ref[0:fin, 0:f1],
                  vec[0:1, 0:f1], vec[1:2, 0:f1], vec[2:3, 0:f1])
    h2 = gat_relu(h1, w_slab_ref[fin:fin + f1, 0:f2],
                  vec[3:4, 0:f2], vec[4:5, 0:f2], vec[5:6, 0:f2])
    h3 = gat_relu(h2, w_slab_ref[fin + f1:fin + f1 + f2, 0:f3],
                  vec[6:7, 0:f3], vec[7:8, 0:f3], vec[8:9, 0:f3])

    drug_ks = (gip(h1[:nd], gammas[0]), gip(h2[:nd], gammas[1]),
               gip(h3[:nd], gammas[2]), drug_sim_ref[...])
    dis_ks = (gip(h1[nd:], gammas[0]), gip(h2[nd:], gammas[1]),
              gip(h3[nd:], gammas[2]), dis_sim_ref[...])

    s1 = combine(drug_ks, vec[9:10, 0:nd])                        # [nd, nd]
    s2 = combine(dis_ks, vec[10:11, 0:ni])                        # [ni, ni]

    out1 = jnp.dot(s1, alpha1_ref[...], preferred_element_type=jnp.float32)    # [nd, ni]
    # out2.T == alpha2.T @ s2 (s2 symmetric) -> no transpose on the output path
    out2t = jnp.dot(alpha2t_ref[...], s2, preferred_element_type=jnp.float32)  # [nd, ni]
    out_ref[...] = (out1 + out2t) * 0.5


def model_forward(params, feature, adj):
    nd = int(params["drug_size"])
    ni = int(params["dis_size"])
    gammas = (float(params["h1_gamma"]), float(params["h2_gamma"]),
              float(params["h3_gamma"]))
    ps = (0.25, 0.25, 0.25, 0.25)                                 # t.ones(4) / 4

    fin = params["w1"].shape[0]
    f1, f2, f3 = (params["w1"].shape[1], params["w2"].shape[1],
                  params["w3"].shape[1])
    max_f = max(f1, f2, f3)
    p_cols = max(max_f, nd, ni)

    def padcols(a, width):
        return jnp.pad(a, ((0, 0), (0, width - a.shape[1])))

    # ---- packed parameter slabs (few DMAs instead of 18 tiny ones) ----------
    w_slab = jnp.concatenate([padcols(params["w1"], max_f),
                              padcols(params["w2"], max_f),
                              padcols(params["w3"], max_f)], axis=0)

    base = ps[0] + ps[1] + ps[2]          # diag of each GIP kernel is exp(0)=1
    inv_d_drug = lax.rsqrt(base + ps[3] * jnp.diagonal(params["drug_sim"]))[None, :]
    inv_d_dis = lax.rsqrt(base + ps[3] * jnp.diagonal(params["dis_sim"]))[None, :]
    vec_rows = [params["asrc1"], params["adst1"], params["b1"],
                params["asrc2"], params["adst2"], params["b2"],
                params["asrc3"], params["adst3"], params["b3"],
                inv_d_drug, inv_d_dis]
    vec_slab = jnp.concatenate([padcols(r, p_cols) for r in vec_rows], axis=0)

    # int8 mask with self loops (GATConv add_self_loops=True).
    n = adj.shape[0]
    adj_mask = ((adj > 0) | jnp.eye(n, dtype=bool)).astype(jnp.int8)

    alpha2_t = jnp.transpose(params["alpha2"])

    kernel = functools.partial(_fused_forward_kernel, nd=nd, ni=ni, fin=fin,
                               f1=f1, f2=f2, f3=f3, gammas=gammas, ps=ps)
    return pl.pallas_call(
        kernel,
        out_shape=jax.ShapeDtypeStruct((nd, ni), jnp.float32),
        in_specs=[_vmem_spec()] * 8,
        out_specs=_vmem_spec(),
        compiler_params=pltpu.CompilerParams(vmem_limit_bytes=64 * 1024 * 1024),
    )(feature, adj_mask, w_slab, vec_slab,
      params["drug_sim"], params["dis_sim"], params["alpha1"], alpha2_t)


if __name__ == "__main__":
    key = jax.random.PRNGKey(0)
    drug_size, dis_size = 16, 16
    n = drug_size + dis_size
    fin = drug_size + dis_size            # GATConv in_channels = drug_size + dis_size
    F1, F2, F3 = 32, 16, 8
    h1_gamma = h2_gamma = h3_gamma = 0.5

    keys = jax.random.split(key, 20)

    # node features and symmetric adjacency (with self loops)
    feature = jax.random.normal(keys[0], (n, fin), jnp.float32)
    adj = (jax.random.uniform(keys[1], (n, n)) < 0.3).astype(jnp.float32)
    adj = jnp.maximum(adj, adj.T)
    adj = adj.at[jnp.arange(n), jnp.arange(n)].set(1.0)

    def glorot(k, shape):
        lim = (6.0 / (shape[0] + shape[1])) ** 0.5
        return jax.random.uniform(k, shape, jnp.float32, -lim, lim)

    def make_sim(k, m):
        s = jnp.abs(jax.random.normal(k, (m, m), jnp.float32))
        s = (s + s.T) / 2.0
        return s.at[jnp.arange(m), jnp.arange(m)].set(1.0)

    params = {
        "drug_size": drug_size,
        "dis_size": dis_size,
        "h1_gamma": h1_gamma, "h2_gamma": h2_gamma, "h3_gamma": h3_gamma,
        # GAT layer 1
        "w1": glorot(keys[2], (fin, F1)),
        "asrc1": glorot(keys[3], (1, F1)),
        "adst1": glorot(keys[4], (1, F1)),
        "b1": jnp.zeros((1, F1), jnp.float32),
        # GAT layer 2
        "w2": glorot(keys[5], (F1, F2)),
        "asrc2": glorot(keys[6], (1, F2)),
        "adst2": glorot(keys[7], (1, F2)),
        "b2": jnp.zeros((1, F2), jnp.float32),
        # GAT layer 3
        "w3": glorot(keys[8], (F2, F3)),
        "asrc3": glorot(keys[9], (1, F3)),
        "adst3": glorot(keys[10], (1, F3)),
        "b3": jnp.zeros((1, F3), jnp.float32),
        # alpha projections (t.randn in __init__)
        "alpha1": jax.random.normal(keys[11], (drug_size, dis_size), jnp.float32),
        "alpha2": jax.random.normal(keys[12], (dis_size, drug_size), jnp.float32),
        # precomputed similarity kernels
        "drug_sim": make_sim(keys[13], drug_size),
        "dis_sim": make_sim(keys[14], dis_size),
    }

    out = model_forward(params, feature, adj)
    out = jax.block_until_ready(out)
    assert out.shape == (drug_size, dis_size)
    assert bool(jnp.all(jnp.isfinite(out)))
    print("KERNEL_OK")
</pallas_src>

<mosaic_0001>
module attributes {stable_mosaic.version = 11 : i64} {
  func.func @_fused_forward_kernel(%arg0: memref<32x32xf32, #tpu.memory_space<vmem>>, %arg1: memref<32x32xi8, #tpu.memory_space<vmem>>, %arg2: memref<80x32xf32, #tpu.memory_space<vmem>>, %arg3: memref<11x32xf32, #tpu.memory_space<vmem>>, %arg4: memref<16x16xf32, #tpu.memory_space<vmem>>, %arg5: memref<16x16xf32, #tpu.memory_space<vmem>>, %arg6: memref<16x16xf32, #tpu.memory_space<vmem>>, %arg7: memref<16x16xf32, #tpu.memory_space<vmem>>, %arg8: memref<16x16xf32, #tpu.memory_space<vmem>>) attributes {dimension_semantics = [], scalar_prefetch = 0 : i64, scratch_operands = 0 : i64, tpu.core_type = #tpu.core_type<tc>} {
    %c0 = arith.constant 0 : index
    %c0_0 = arith.constant 0 : index
    %0 = vector.load %arg1[%c0, %c0_0] : memref<32x32xi8, #tpu.memory_space<vmem>>, vector<32x32xi8>
    %1 = arith.extsi %0 : vector<32x32xi8> to vector<32x32xi32>
    %c0_i32 = arith.constant 0 : i32
    %2 = vector.broadcast %c0_i32 : i32 to vector<32x32xi32>
    %3 = arith.cmpi sgt, %1, %2 : vector<32x32xi32>
    %c0_1 = arith.constant 0 : index
    %c0_2 = arith.constant 0 : index
    %4 = vector.load %arg3[%c0_1, %c0_2] : memref<11x32xf32, #tpu.memory_space<vmem>>, vector<11x32xf32>
    %c0_3 = arith.constant 0 : index
    %c0_4 = arith.constant 0 : index
    %5 = vector.load %arg0[%c0_3, %c0_4] : memref<32x32xf32, #tpu.memory_space<vmem>>, vector<32x32xf32>
    %c0_5 = arith.constant 0 : index
    %c0_6 = arith.constant 0 : index
    %6 = vector.load %arg2[%c0_5, %c0_6] : memref<80x32xf32, #tpu.memory_space<vmem>>, vector<32x32xf32>
    %7 = vector.extract_strided_slice %4 {offsets = [0, 0], sizes = [1, 32], strides = [1, 1]} : vector<11x32xf32> to vector<1x32xf32>
    %8 = vector.extract_strided_slice %4 {offsets = [1, 0], sizes = [1, 32], strides = [1, 1]} : vector<11x32xf32> to vector<1x32xf32>
    %9 = vector.extract_strided_slice %4 {offsets = [2, 0], sizes = [1, 32], strides = [1, 1]} : vector<11x32xf32> to vector<1x32xf32>
    %cst = arith.constant dense<0.000000e+00> : vector<32x32xf32>
    %10 = tpu.matmul %5, %6, %cst {dimension_numbers = #tpu.dot_dimension_numbers<[1], [0], [0], [1], [0, 0, 1, 1], [], []>} : vector<32x32xf32>, vector<32x32xf32>, vector<32x32xf32> -> vector<32x32xf32>
    %cst_7 = arith.constant dense<0.000000e+00> : vector<1x32xf32>
    %11 = tpu.matmul %7, %10, %cst_7 {dimension_numbers = #tpu.dot_dimension_numbers<[1], [1], [0], [0], [0, 0, 1, 0], [], []>} : vector<1x32xf32>, vector<32x32xf32>, vector<1x32xf32> -> vector<1x32xf32>
    %cst_8 = arith.constant dense<0.000000e+00> : vector<32x1xf32>
    %12 = tpu.matmul %10, %8, %cst_8 {dimension_numbers = #tpu.dot_dimension_numbers<[1], [1], [0], [0], [0, 0, 1, 0], [], []>} : vector<32x32xf32>, vector<1x32xf32>, vector<32x1xf32> -> vector<32x1xf32>
    %13 = vector.broadcast %12 : vector<32x1xf32> to vector<32x32xf32>
    %14 = vector.broadcast %11 : vector<1x32xf32> to vector<32x32xf32>
    %15 = arith.addf %13, %14 : vector<32x32xf32>
    %cst_9 = arith.constant 0.000000e+00 : f32
    %16 = vector.broadcast %cst_9 : f32 to vector<32x32xf32>
    %17 = arith.cmpf ogt, %15, %16 : vector<32x32xf32>
    %cst_10 = arith.constant 2.000000e-01 : f32
    %18 = vector.broadcast %cst_10 : f32 to vector<32x32xf32>
    %19 = arith.mulf %18, %15 : vector<32x32xf32>
    %20 = arith.select %17, %15, %19 : vector<32x32xi1>, vector<32x32xf32>
    %cst_11 = arith.constant -1.000000e+30 : f32
    %21 = vector.broadcast %cst_11 : f32 to vector<32x32xf32>
    %22 = arith.select %3, %20, %21 : vector<32x32xi1>, vector<32x32xf32>
    %cst_12 = arith.constant dense<0xFF800000> : vector<32xf32>
    %23 = vector.multi_reduction <maximumf>, %22, %cst_12 [1] : vector<32x32xf32> to vector<32xf32>
    %24 = vector.shape_cast %23 : vector<32xf32> to vector<32x1xf32>
    %25 = vector.broadcast %24 : vector<32x1xf32> to vector<32x32xf32>
    %26 = arith.subf %22, %25 : vector<32x32xf32>
    %27 = math.exp %26 : vector<32x32xf32>
    %cst_13 = arith.constant dense<0.000000e+00> : vector<32xf32>
    %28 = vector.multi_reduction <add>, %27, %cst_13 [1] : vector<32x32xf32> to vector<32xf32>
    %29 = vector.shape_cast %28 : vector<32xf32> to vector<32x1xf32>
    %cst_14 = arith.constant 1.000000e+00 : f32
    %30 = vector.broadcast %cst_14 : f32 to vector<32x1xf32>
    %31 = arith.divf %30, %29 : vector<32x1xf32>
    %cst_15 = arith.constant dense<0.000000e+00> : vector<32x32xf32>
    %32 = tpu.matmul %27, %10, %cst_15 {dimension_numbers = #tpu.dot_dimension_numbers<[1], [0], [0], [1], [0, 0, 1, 1], [], []>} : vector<32x32xf32>, vector<32x32xf32>, vector<32x32xf32> -> vector<32x32xf32>
    %33 = vector.broadcast %31 : vector<32x1xf32> to vector<32x32xf32>
    %34 = arith.mulf %32, %33 : vector<32x32xf32>
    %35 = vector.broadcast %9 : vector<1x32xf32> to vector<32x32xf32>
    %36 = arith.addf %34, %35 : vector<32x32xf32>
    %cst_16 = arith.constant 0.000000e+00 : f32
    %37 = vector.broadcast %cst_16 : f32 to vector<32x32xf32>
    %38 = arith.maximumf %36, %37 : vector<32x32xf32>
    %c32 = arith.constant 32 : index
    %c0_17 = arith.constant 0 : index
    %39 = vector.load %arg2[%c32, %c0_17] : memref<80x32xf32, #tpu.memory_space<vmem>>, vector<32x16xf32>
    %40 = vector.extract_strided_slice %4 {offsets = [3, 0], sizes = [1, 16], strides = [1, 1]} : vector<11x32xf32> to vector<1x16xf32>
    %41 = vector.extract_strided_slice %4 {offsets = [4, 0], sizes = [1, 16], strides = [1, 1]} : vector<11x32xf32> to vector<1x16xf32>
    %42 = vector.extract_strided_slice %4 {offsets = [5, 0], sizes = [1, 16], strides = [1, 1]} : vector<11x32xf32> to vector<1x16xf32>
    %cst_18 = arith.constant dense<0.000000e+00> : vector<32x16xf32>
    %43 = tpu.matmul %38, %39, %cst_18 {dimension_numbers = #tpu.dot_dimension_numbers<[1], [0], [0], [1], [0, 0, 1, 1], [], []>} : vector<32x32xf32>, vector<32x16xf32>, vector<32x16xf32> -> vector<32x16xf32>
    %cst_19 = arith.constant dense<0.000000e+00> : vector<1x32xf32>
    %44 = tpu.matmul %40, %43, %cst_19 {dimension_numbers = #tpu.dot_dimension_numbers<[1], [1], [0], [0], [0, 0, 1, 0], [], []>} : vector<1x16xf32>, vector<32x16xf32>, vector<1x32xf32> -> vector<1x32xf32>
    %cst_20 = arith.constant dense<0.000000e+00> : vector<32x1xf32>
    %45 = tpu.matmul %43, %41, %cst_20 {dimension_numbers = #tpu.dot_dimension_numbers<[1], [1], [0], [0], [0, 0, 1, 0], [], []>} : vector<32x16xf32>, vector<1x16xf32>, vector<32x1xf32> -> vector<32x1xf32>
    %46 = vector.broadcast %45 : vector<32x1xf32> to vector<32x32xf32>
    %47 = vector.broadcast %44 : vector<1x32xf32> to vector<32x32xf32>
    %48 = arith.addf %46, %47 : vector<32x32xf32>
    %cst_21 = arith.constant 0.000000e+00 : f32
    %49 = vector.broadcast %cst_21 : f32 to vector<32x32xf32>
    %50 = arith.cmpf ogt, %48, %49 : vector<32x32xf32>
    %cst_22 = arith.constant 2.000000e-01 : f32
    %51 = vector.broadcast %cst_22 : f32 to vector<32x32xf32>
    %52 = arith.mulf %51, %48 : vector<32x32xf32>
    %53 = arith.select %50, %48, %52 : vector<32x32xi1>, vector<32x32xf32>
    %cst_23 = arith.constant -1.000000e+30 : f32
    %54 = vector.broadcast %cst_23 : f32 to vector<32x32xf32>
    %55 = arith.select %3, %53, %54 : vector<32x32xi1>, vector<32x32xf32>
    %cst_24 = arith.constant dense<0xFF800000> : vector<32xf32>
    %56 = vector.multi_reduction <maximumf>, %55, %cst_24 [1] : vector<32x32xf32> to vector<32xf32>
    %57 = vector.shape_cast %56 : vector<32xf32> to vector<32x1xf32>
    %58 = vector.broadcast %57 : vector<32x1xf32> to vector<32x32xf32>
    %59 = arith.subf %55, %58 : vector<32x32xf32>
    %60 = math.exp %59 : vector<32x32xf32>
    %cst_25 = arith.constant dense<0.000000e+00> : vector<32xf32>
    %61 = vector.multi_reduction <add>, %60, %cst_25 [1] : vector<32x32xf32> to vector<32xf32>
    %62 = vector.shape_cast %61 : vector<32xf32> to vector<32x1xf32>
    %cst_26 = arith.constant 1.000000e+00 : f32
    %63 = vector.broadcast %cst_26 : f32 to vector<32x1xf32>
    %64 = arith.divf %63, %62 : vector<32x1xf32>
    %cst_27 = arith.constant dense<0.000000e+00> : vector<32x16xf32>
    %65 = tpu.matmul %60, %43, %cst_27 {dimension_numbers = #tpu.dot_dimension_numbers<[1], [0], [0], [1], [0, 0, 1, 1], [], []>} : vector<32x32xf32>, vector<32x16xf32>, vector<32x16xf32> -> vector<32x16xf32>
    %66 = vector.broadcast %64 : vector<32x1xf32> to vector<32x16xf32>
    %67 = arith.mulf %65, %66 : vector<32x16xf32>
    %68 = vector.broadcast %42 : vector<1x16xf32> to vector<32x16xf32>
    %69 = arith.addf %67, %68 : vector<32x16xf32>
    %cst_28 = arith.constant 0.000000e+00 : f32
    %70 = vector.broadcast %cst_28 : f32 to vector<32x16xf32>
    %71 = arith.maximumf %69, %70 : vector<32x16xf32>
    %c64 = arith.constant 64 : index
    %c0_29 = arith.constant 0 : index
    %72 = vector.load %arg2[%c64, %c0_29] : memref<80x32xf32, #tpu.memory_space<vmem>>, vector<16x8xf32>
    %73 = vector.extract_strided_slice %4 {offsets = [6, 0], sizes = [1, 8], strides = [1, 1]} : vector<11x32xf32> to vector<1x8xf32>
    %74 = vector.extract_strided_slice %4 {offsets = [7, 0], sizes = [1, 8], strides = [1, 1]} : vector<11x32xf32> to vector<1x8xf32>
    %75 = vector.extract_strided_slice %4 {offsets = [8, 0], sizes = [1, 8], strides = [1, 1]} : vector<11x32xf32> to vector<1x8xf32>
    %cst_30 = arith.constant dense<0.000000e+00> : vector<32x8xf32>
    %76 = tpu.matmul %71, %72, %cst_30 {dimension_numbers = #tpu.dot_dimension_numbers<[1], [0], [0], [1], [0, 0, 1, 1], [], []>} : vector<32x16xf32>, vector<16x8xf32>, vector<32x8xf32> -> vector<32x8xf32>
    %cst_31 = arith.constant dense<0.000000e+00> : vector<1x32xf32>
    %77 = tpu.matmul %73, %76, %cst_31 {dimension_numbers = #tpu.dot_dimension_numbers<[1], [1], [0], [0], [0, 0, 1, 0], [], []>} : vector<1x8xf32>, vector<32x8xf32>, vector<1x32xf32> -> vector<1x32xf32>
    %cst_32 = arith.constant dense<0.000000e+00> : vector<32x1xf32>
    %78 = tpu.matmul %76, %74, %cst_32 {dimension_numbers = #tpu.dot_dimension_numbers<[1], [1], [0], [0], [0, 0, 1, 0], [], []>} : vector<32x8xf32>, vector<1x8xf32>, vector<32x1xf32> -> vector<32x1xf32>
    %79 = vector.broadcast %78 : vector<32x1xf32> to vector<32x32xf32>
    %80 = vector.broadcast %77 : vector<1x32xf32> to vector<32x32xf32>
    %81 = arith.addf %79, %80 : vector<32x32xf32>
    %cst_33 = arith.constant 0.000000e+00 : f32
    %82 = vector.broadcast %cst_33 : f32 to vector<32x32xf32>
    %83 = arith.cmpf ogt, %81, %82 : vector<32x32xf32>
    %cst_34 = arith.constant 2.000000e-01 : f32
    %84 = vector.broadcast %cst_34 : f32 to vector<32x32xf32>
    %85 = arith.mulf %84, %81 : vector<32x32xf32>
    %86 = arith.select %83, %81, %85 : vector<32x32xi1>, vector<32x32xf32>
    %cst_35 = arith.constant -1.000000e+30 : f32
    %87 = vector.broadcast %cst_35 : f32 to vector<32x32xf32>
    %88 = arith.select %3, %86, %87 : vector<32x32xi1>, vector<32x32xf32>
    %cst_36 = arith.constant dense<0xFF800000> : vector<32xf32>
    %89 = vector.multi_reduction <maximumf>, %88, %cst_36 [1] : vector<32x32xf32> to vector<32xf32>
    %90 = vector.shape_cast %89 : vector<32xf32> to vector<32x1xf32>
    %91 = vector.broadcast %90 : vector<32x1xf32> to vector<32x32xf32>
    %92 = arith.subf %88, %91 : vector<32x32xf32>
    %93 = math.exp %92 : vector<32x32xf32>
    %cst_37 = arith.constant dense<0.000000e+00> : vector<32xf32>
    %94 = vector.multi_reduction <add>, %93, %cst_37 [1] : vector<32x32xf32> to vector<32xf32>
    %95 = vector.shape_cast %94 : vector<32xf32> to vector<32x1xf32>
    %cst_38 = arith.constant 1.000000e+00 : f32
    %96 = vector.broadcast %cst_38 : f32 to vector<32x1xf32>
    %97 = arith.divf %96, %95 : vector<32x1xf32>
    %cst_39 = arith.constant dense<0.000000e+00> : vector<32x8xf32>
    %98 = tpu.matmul %93, %76, %cst_39 {dimension_numbers = #tpu.dot_dimension_numbers<[1], [0], [0], [1], [0, 0, 1, 1], [], []>} : vector<32x32xf32>, vector<32x8xf32>, vector<32x8xf32> -> vector<32x8xf32>
    %99 = vector.broadcast %97 : vector<32x1xf32> to vector<32x8xf32>
    %100 = arith.mulf %98, %99 : vector<32x8xf32>
    %101 = vector.broadcast %75 : vector<1x8xf32> to vector<32x8xf32>
    %102 = arith.addf %100, %101 : vector<32x8xf32>
    %cst_40 = arith.constant 0.000000e+00 : f32
    %103 = vector.broadcast %cst_40 : f32 to vector<32x8xf32>
    %104 = arith.maximumf %102, %103 : vector<32x8xf32>
    %105 = vector.extract_strided_slice %38 {offsets = [0, 0], sizes = [16, 32], strides = [1, 1]} : vector<32x32xf32> to vector<16x32xf32>
    %cst_41 = arith.constant dense<0x7F800000> : vector<16xf32>
    %106 = vector.multi_reduction <minimumf>, %105, %cst_41 [1] : vector<16x32xf32> to vector<16xf32>
    %107 = vector.shape_cast %106 : vector<16xf32> to vector<16x1xf32>
    %cst_42 = arith.constant dense<0xFF800000> : vector<16xf32>
    %108 = vector.multi_reduction <maximumf>, %105, %cst_42 [1] : vector<16x32xf32> to vector<16xf32>
    %109 = vector.shape_cast %108 : vector<16xf32> to vector<16x1xf32>
    %110 = arith.subf %109, %107 : vector<16x1xf32>
    %cst_43 = arith.constant 0.000000e+00 : f32
    %111 = vector.broadcast %cst_43 : f32 to vector<16x1xf32>
    %112 = arith.cmpf oeq, %110, %111 : vector<16x1xf32>
    %cst_44 = arith.constant 1.000000e+00 : f32
    %113 = vector.broadcast %cst_44 : f32 to vector<16x1xf32>
    %114 = arith.select %112, %113, %110 : vector<16x1xi1>, vector<16x1xf32>
    %115 = vector.broadcast %107 : vector<16x1xf32> to vector<16x32xf32>
    %116 = arith.subf %105, %115 : vector<16x32xf32>
    %cst_45 = arith.constant 1.000000e+00 : f32
    %117 = vector.broadcast %cst_45 : f32 to vector<16x1xf32>
    %118 = arith.divf %117, %114 : vector<16x1xf32>
    %119 = vector.broadcast %118 : vector<16x1xf32> to vector<16x32xf32>
    %120 = arith.mulf %116, %119 : vector<16x32xf32>
    %cst_46 = arith.constant dense<0.000000e+00> : vector<16x16xf32>
    %121 = tpu.matmul %120, %120, %cst_46 {dimension_numbers = #tpu.dot_dimension_numbers<[1], [1], [0], [0], [0, 0, 1, 0], [], []>} : vector<16x32xf32>, vector<16x32xf32>, vector<16x16xf32> -> vector<16x16xf32>
    %122 = arith.mulf %120, %120 : vector<16x32xf32>
    %cst_47 = arith.constant dense<0.000000e+00> : vector<16xf32>
    %123 = vector.multi_reduction <add>, %122, %cst_47 [1] : vector<16x32xf32> to vector<16xf32>
    %124 = vector.shape_cast %123 : vector<16xf32> to vector<16x1xf32>
    %125 = vector.shape_cast %124 : vector<16x1xf32> to vector<1x16x1xf32>
    %cst_48 = arith.constant dense<0.000000e+00> : vector<1xf32>
    %126 = vector.multi_reduction <add>, %125, %cst_48 [1, 2] : vector<1x16x1xf32> to vector<1xf32>
    %127 = vector.shape_cast %126 : vector<1xf32> to vector<1x1x1xf32>
    %128 = vector.extract %127[0, 0, 0] : f32 from vector<1x1x1xf32>
    %cst_49 = arith.constant 1.600000e+01 : f32
    %129 = arith.divf %128, %cst_49 : f32
    %cst_50 = arith.constant 0.000000e+00 : f32
    %130 = arith.cmpf oeq, %129, %cst_50 : f32
    %cst_51 = arith.constant 1.000000e+00 : f32
    %131 = arith.select %130, %cst_51, %129 : f32
    %cst_52 = arith.constant 1.000000e+00 : f32
    %132 = arith.divf %cst_52, %131 : f32
    %133 = vector.broadcast %132 : f32 to vector<16x16xf32>
    %134 = arith.mulf %121, %133 : vector<16x16xf32>
    %135 = vector.broadcast %132 : f32 to vector<16x1xf32>
    %136 = arith.mulf %124, %135 : vector<16x1xf32>
    %137 = tpu.transpose %136, [1, 0] : vector<16x1xf32> -> vector<1x16xf32>
    %138 = vector.broadcast %136 : vector<16x1xf32> to vector<16x16xf32>
    %139 = vector.broadcast %137 : vector<1x16xf32> to vector<16x16xf32>
    %140 = arith.addf %138, %139 : vector<16x16xf32>
    %cst_53 = arith.constant 2.000000e+00 : f32
    %141 = vector.broadcast %cst_53 : f32 to vector<16x16xf32>
    %142 = arith.mulf %141, %134 : vector<16x16xf32>
    %143 = arith.subf %140, %142 : vector<16x16xf32>
    %cst_54 = arith.constant -5.000000e-01 : f32
    %144 = vector.broadcast %cst_54 : f32 to vector<16x16xf32>
    %145 = arith.mulf %144, %143 : vector<16x16xf32>
    %146 = math.exp %145 : vector<16x16xf32>
    %147 = vector.extract_strided_slice %71 {offsets = [0, 0], sizes = [16, 16], strides = [1, 1]} : vector<32x16xf32> to vector<16x16xf32>
    %cst_55 = arith.constant dense<0x7F800000> : vector<16xf32>
    %148 = vector.multi_reduction <minimumf>, %147, %cst_55 [1] : vector<16x16xf32> to vector<16xf32>
    %149 = vector.shape_cast %148 : vector<16xf32> to vector<16x1xf32>
    %cst_56 = arith.constant dense<0xFF800000> : vector<16xf32>
    %150 = vector.multi_reduction <maximumf>, %147, %cst_56 [1] : vector<16x16xf32> to vector<16xf32>
    %151 = vector.shape_cast %150 : vector<16xf32> to vector<16x1xf32>
    %152 = arith.subf %151, %149 : vector<16x1xf32>
    %cst_57 = arith.constant 0.000000e+00 : f32
    %153 = vector.broadcast %cst_57 : f32 to vector<16x1xf32>
    %154 = arith.cmpf oeq, %152, %153 : vector<16x1xf32>
    %cst_58 = arith.constant 1.000000e+00 : f32
    %155 = vector.broadcast %cst_58 : f32 to vector<16x1xf32>
    %156 = arith.select %154, %155, %152 : vector<16x1xi1>, vector<16x1xf32>
    %157 = vector.broadcast %149 : vector<16x1xf32> to vector<16x16xf32>
    %158 = arith.subf %147, %157 : vector<16x16xf32>
    %cst_59 = arith.constant 1.000000e+00 : f32
    %159 = vector.broadcast %cst_59 : f32 to vector<16x1xf32>
    %160 = arith.divf %159, %156 : vector<16x1xf32>
    %161 = vector.broadcast %160 : vector<16x1xf32> to vector<16x16xf32>
    %162 = arith.mulf %158, %161 : vector<16x16xf32>
    %cst_60 = arith.constant dense<0.000000e+00> : vector<16x16xf32>
    %163 = tpu.matmul %162, %162, %cst_60 {dimension_numbers = #tpu.dot_dimension_numbers<[1], [1], [0], [0], [0, 0, 1, 0], [], []>} : vector<16x16xf32>, vector<16x16xf32>, vector<16x16xf32> -> vector<16x16xf32>
    %164 = arith.mulf %162, %162 : vector<16x16xf32>
    %cst_61 = arith.constant dense<0.000000e+00> : vector<16xf32>
    %165 = vector.multi_reduction <add>, %164, %cst_61 [1] : vector<16x16xf32> to vector<16xf32>
    %166 = vector.shape_cast %165 : vector<16xf32> to vector<16x1xf32>
    %167 = vector.shape_cast %166 : vector<16x1xf32> to vector<1x16x1xf32>
    %cst_62 = arith.constant dense<0.000000e+00> : vector<1xf32>
    %168 = vector.multi_reduction <add>, %167, %cst_62 [1, 2] : vector<1x16x1xf32> to vector<1xf32>
    %169 = vector.shape_cast %168 : vector<1xf32> to vector<1x1x1xf32>
    %170 = vector.extract %169[0, 0, 0] : f32 from vector<1x1x1xf32>
    %cst_63 = arith.constant 1.600000e+01 : f32
    %171 = arith.divf %170, %cst_63 : f32
    %cst_64 = arith.constant 0.000000e+00 : f32
    %172 = arith.cmpf oeq, %171, %cst_64 : f32
    %cst_65 = arith.constant 1.000000e+00 : f32
    %173 = arith.select %172, %cst_65, %171 : f32
    %cst_66 = arith.constant 1.000000e+00 : f32
    %174 = arith.divf %cst_66, %173 : f32
    %175 = vector.broadcast %174 : f32 to vector<16x16xf32>
    %176 = arith.mulf %163, %175 : vector<16x16xf32>
    %177 = vector.broadcast %174 : f32 to vector<16x1xf32>
    %178 = arith.mulf %166, %177 : vector<16x1xf32>
    %179 = tpu.transpose %178, [1, 0] : vector<16x1xf32> -> vector<1x16xf32>
    %180 = vector.broadcast %178 : vector<16x1xf32> to vector<16x16xf32>
    %181 = vector.broadcast %179 : vector<1x16xf32> to vector<16x16xf32>
    %182 = arith.addf %180, %181 : vector<16x16xf32>
    %cst_67 = arith.constant 2.000000e+00 : f32
    %183 = vector.broadcast %cst_67 : f32 to vector<16x16xf32>
    %184 = arith.mulf %183, %176 : vector<16x16xf32>
    %185 = arith.subf %182, %184 : vector<16x16xf32>
    %cst_68 = arith.constant -5.000000e-01 : f32
    %186 = vector.broadcast %cst_68 : f32 to vector<16x16xf32>
    %187 = arith.mulf %186, %185 : vector<16x16xf32>
    %188 = math.exp %187 : vector<16x16xf32>
    %189 = vector.extract_strided_slice %104 {offsets = [0, 0], sizes = [16, 8], strides = [1, 1]} : vector<32x8xf32> to vector<16x8xf32>
    %cst_69 = arith.constant dense<0x7F800000> : vector<16xf32>
    %190 = vector.multi_reduction <minimumf>, %189, %cst_69 [1] : vector<16x8xf32> to vector<16xf32>
    %191 = vector.shape_cast %190 : vector<16xf32> to vector<16x1xf32>
    %cst_70 = arith.constant dense<0xFF800000> : vector<16xf32>
    %192 = vector.multi_reduction <maximumf>, %189, %cst_70 [1] : vector<16x8xf32> to vector<16xf32>
    %193 = vector.shape_cast %192 : vector<16xf32> to vector<16x1xf32>
    %194 = arith.subf %193, %191 : vector<16x1xf32>
    %cst_71 = arith.constant 0.000000e+00 : f32
    %195 = vector.broadcast %cst_71 : f32 to vector<16x1xf32>
    %196 = arith.cmpf oeq, %194, %195 : vector<16x1xf32>
    %cst_72 = arith.constant 1.000000e+00 : f32
    %197 = vector.broadcast %cst_72 : f32 to vector<16x1xf32>
    %198 = arith.select %196, %197, %194 : vector<16x1xi1>, vector<16x1xf32>
    %199 = vector.broadcast %191 : vector<16x1xf32> to vector<16x8xf32>
    %200 = arith.subf %189, %199 : vector<16x8xf32>
    %cst_73 = arith.constant 1.000000e+00 : f32
    %201 = vector.broadcast %cst_73 : f32 to vector<16x1xf32>
    %202 = arith.divf %201, %198 : vector<16x1xf32>
    %203 = vector.broadcast %202 : vector<16x1xf32> to vector<16x8xf32>
    %204 = arith.mulf %200, %203 : vector<16x8xf32>
    %cst_74 = arith.constant dense<0.000000e+00> : vector<16x16xf32>
    %205 = tpu.matmul %204, %204, %cst_74 {dimension_numbers = #tpu.dot_dimension_numbers<[1], [1], [0], [0], [0, 0, 1, 0], [], []>} : vector<16x8xf32>, vector<16x8xf32>, vector<16x16xf32> -> vector<16x16xf32>
    %206 = arith.mulf %204, %204 : vector<16x8xf32>
    %cst_75 = arith.constant dense<0.000000e+00> : vector<16xf32>
    %207 = vector.multi_reduction <add>, %206, %cst_75 [1] : vector<16x8xf32> to vector<16xf32>
    %208 = vector.shape_cast %207 : vector<16xf32> to vector<16x1xf32>
    %209 = vector.shape_cast %208 : vector<16x1xf32> to vector<1x16x1xf32>
    %cst_76 = arith.constant dense<0.000000e+00> : vector<1xf32>
    %210 = vector.multi_reduction <add>, %209, %cst_76 [1, 2] : vector<1x16x1xf32> to vector<1xf32>
    %211 = vector.shape_cast %210 : vector<1xf32> to vector<1x1x1xf32>
    %212 = vector.extract %211[0, 0, 0] : f32 from vector<1x1x1xf32>
    %cst_77 = arith.constant 1.600000e+01 : f32
    %213 = arith.divf %212, %cst_77 : f32
    %cst_78 = arith.constant 0.000000e+00 : f32
    %214 = arith.cmpf oeq, %213, %cst_78 : f32
    %cst_79 = arith.constant 1.000000e+00 : f32
    %215 = arith.select %214, %cst_79, %213 : f32
    %cst_80 = arith.constant 1.000000e+00 : f32
    %216 = arith.divf %cst_80, %215 : f32
    %217 = vector.broadcast %216 : f32 to vector<16x16xf32>
    %218 = arith.mulf %205, %217 : vector<16x16xf32>
    %219 = vector.broadcast %216 : f32 to vector<16x1xf32>
    %220 = arith.mulf %208, %219 : vector<16x1xf32>
    %221 = tpu.transpose %220, [1, 0] : vector<16x1xf32> -> vector<1x16xf32>
    %222 = vector.broadcast %220 : vector<16x1xf32> to vector<16x16xf32>
    %223 = vector.broadcast %221 : vector<1x16xf32> to vector<16x16xf32>
    %224 = arith.addf %222, %223 : vector<16x16xf32>
    %cst_81 = arith.constant 2.000000e+00 : f32
    %225 = vector.broadcast %cst_81 : f32 to vector<16x16xf32>
    %226 = arith.mulf %225, %218 : vector<16x16xf32>
    %227 = arith.subf %224, %226 : vector<16x16xf32>
    %cst_82 = arith.constant -5.000000e-01 : f32
    %228 = vector.broadcast %cst_82 : f32 to vector<16x16xf32>
    %229 = arith.mulf %228, %227 : vector<16x16xf32>
    %230 = math.exp %229 : vector<16x16xf32>
    %c0_83 = arith.constant 0 : index
    %c0_84 = arith.constant 0 : index
    %231 = vector.load %arg4[%c0_83, %c0_84] : memref<16x16xf32, #tpu.memory_space<vmem>>, vector<16x16xf32>
    %232 = vector.extract_strided_slice %38 {offsets = [16, 0], sizes = [16, 32], strides = [1, 1]} : vector<32x32xf32> to vector<16x32xf32>
    %cst_85 = arith.constant dense<0x7F800000> : vector<16xf32>
    %233 = vector.multi_reduction <minimumf>, %232, %cst_85 [1] : vector<16x32xf32> to vector<16xf32>
    %234 = vector.shape_cast %233 : vector<16xf32> to vector<16x1xf32>
    %cst_86 = arith.constant dense<0xFF800000> : vector<16xf32>
    %235 = vector.multi_reduction <maximumf>, %232, %cst_86 [1] : vector<16x32xf32> to vector<16xf32>
    %236 = vector.shape_cast %235 : vector<16xf32> to vector<16x1xf32>
    %237 = arith.subf %236, %234 : vector<16x1xf32>
    %cst_87 = arith.constant 0.000000e+00 : f32
    %238 = vector.broadcast %cst_87 : f32 to vector<16x1xf32>
    %239 = arith.cmpf oeq, %237, %238 : vector<16x1xf32>
    %cst_88 = arith.constant 1.000000e+00 : f32
    %240 = vector.broadcast %cst_88 : f32 to vector<16x1xf32>
    %241 = arith.select %239, %240, %237 : vector<16x1xi1>, vector<16x1xf32>
    %242 = vector.broadcast %234 : vector<16x1xf32> to vector<16x32xf32>
    %243 = arith.subf %232, %242 : vector<16x32xf32>
    %cst_89 = arith.constant 1.000000e+00 : f32
    %244 = vector.broadcast %cst_89 : f32 to vector<16x1xf32>
    %245 = arith.divf %244, %241 : vector<16x1xf32>
    %246 = vector.broadcast %245 : vector<16x1xf32> to vector<16x32xf32>
    %247 = arith.mulf %243, %246 : vector<16x32xf32>
    %cst_90 = arith.constant dense<0.000000e+00> : vector<16x16xf32>
    %248 = tpu.matmul %247, %247, %cst_90 {dimension_numbers = #tpu.dot_dimension_numbers<[1], [1], [0], [0], [0, 0, 1, 0], [], []>} : vector<16x32xf32>, vector<16x32xf32>, vector<16x16xf32> -> vector<16x16xf32>
    %249 = arith.mulf %247, %247 : vector<16x32xf32>
    %cst_91 = arith.constant dense<0.000000e+00> : vector<16xf32>
    %250 = vector.multi_reduction <add>, %249, %cst_91 [1] : vector<16x32xf32> to vector<16xf32>
    %251 = vector.shape_cast %250 : vector<16xf32> to vector<16x1xf32>
    %252 = vector.shape_cast %251 : vector<16x1xf32> to vector<1x16x1xf32>
    %cst_92 = arith.constant dense<0.000000e+00> : vector<1xf32>
    %253 = vector.multi_reduction <add>, %252, %cst_92 [1, 2] : vector<1x16x1xf32> to vector<1xf32>
    %254 = vector.shape_cast %253 : vector<1xf32> to vector<1x1x1xf32>
    %255 = vector.extract %254[0, 0, 0] : f32 from vector<1x1x1xf32>
    %cst_93 = arith.constant 1.600000e+01 : f32
    %256 = arith.divf %255, %cst_93 : f32
    %cst_94 = arith.constant 0.000000e+00 : f32
    %257 = arith.cmpf oeq, %256, %cst_94 : f32
    %cst_95 = arith.constant 1.000000e+00 : f32
    %258 = arith.select %257, %cst_95, %256 : f32
    %cst_96 = arith.constant 1.000000e+00 : f32
    %259 = arith.divf %cst_96, %258 : f32
    %260 = vector.broadcast %259 : f32 to vector<16x16xf32>
    %261 = arith.mulf %248, %260 : vector<16x16xf32>
    %262 = vector.broadcast %259 : f32 to vector<16x1xf32>
    %263 = arith.mulf %251, %262 : vector<16x1xf32>
    %264 = tpu.transpose %263, [1, 0] : vector<16x1xf32> -> vector<1x16xf32>
    %265 = vector.broadcast %263 : vector<16x1xf32> to vector<16x16xf32>
    %266 = vector.broadcast %264 : vector<1x16xf32> to vector<16x16xf32>
    %267 = arith.addf %265, %266 : vector<16x16xf32>
    %cst_97 = arith.constant 2.000000e+00 : f32
    %268 = vector.broadcast %cst_97 : f32 to vector<16x16xf32>
    %269 = arith.mulf %268, %261 : vector<16x16xf32>
    %270 = arith.subf %267, %269 : vector<16x16xf32>
    %cst_98 = arith.constant -5.000000e-01 : f32
    %271 = vector.broadcast %cst_98 : f32 to vector<16x16xf32>
    %272 = arith.mulf %271, %270 : vector<16x16xf32>
    %273 = math.exp %272 : vector<16x16xf32>
    %274 = vector.extract_strided_slice %71 {offsets = [16, 0], sizes = [16, 16], strides = [1, 1]} : vector<32x16xf32> to vector<16x16xf32>
    %cst_99 = arith.constant dense<0x7F800000> : vector<16xf32>
    %275 = vector.multi_reduction <minimumf>, %274, %cst_99 [1] : vector<16x16xf32> to vector<16xf32>
    %276 = vector.shape_cast %275 : vector<16xf32> to vector<16x1xf32>
    %cst_100 = arith.constant dense<0xFF800000> : vector<16xf32>
    %277 = vector.multi_reduction <maximumf>, %274, %cst_100 [1] : vector<16x16xf32> to vector<16xf32>
    %278 = vector.shape_cast %277 : vector<16xf32> to vector<16x1xf32>
    %279 = arith.subf %278, %276 : vector<16x1xf32>
    %cst_101 = arith.constant 0.000000e+00 : f32
    %280 = vector.broadcast %cst_101 : f32 to vector<16x1xf32>
    %281 = arith.cmpf oeq, %279, %280 : vector<16x1xf32>
    %cst_102 = arith.constant 1.000000e+00 : f32
    %282 = vector.broadcast %cst_102 : f32 to vector<16x1xf32>
    %283 = arith.select %281, %282, %279 : vector<16x1xi1>, vector<16x1xf32>
    %284 = vector.broadcast %276 : vector<16x1xf32> to vector<16x16xf32>
    %285 = arith.subf %274, %284 : vector<16x16xf32>
    %cst_103 = arith.constant 1.000000e+00 : f32
    %286 = vector.broadcast %cst_103 : f32 to vector<16x1xf32>
    %287 = arith.divf %286, %283 : vector<16x1xf32>
    %288 = vector.broadcast %287 : vector<16x1xf32> to vector<16x16xf32>
    %289 = arith.mulf %285, %288 : vector<16x16xf32>
    %cst_104 = arith.constant dense<0.000000e+00> : vector<16x16xf32>
    %290 = tpu.matmul %289, %289, %cst_104 {dimension_numbers = #tpu.dot_dimension_numbers<[1], [1], [0], [0], [0, 0, 1, 0], [], []>} : vector<16x16xf32>, vector<16x16xf32>, vector<16x16xf32> -> vector<16x16xf32>
    %291 = arith.mulf %289, %289 : vector<16x16xf32>
    %cst_105 = arith.constant dense<0.000000e+00> : vector<16xf32>
    %292 = vector.multi_reduction <add>, %291, %cst_105 [1] : vector<16x16xf32> to vector<16xf32>
    %293 = vector.shape_cast %292 : vector<16xf32> to vector<16x1xf32>
    %294 = vector.shape_cast %293 : vector<16x1xf32> to vector<1x16x1xf32>
    %cst_106 = arith.constant dense<0.000000e+00> : vector<1xf32>
    %295 = vector.multi_reduction <add>, %294, %cst_106 [1, 2] : vector<1x16x1xf32> to vector<1xf32>
    %296 = vector.shape_cast %295 : vector<1xf32> to vector<1x1x1xf32>
    %297 = vector.extract %296[0, 0, 0] : f32 from vector<1x1x1xf32>
    %cst_107 = arith.constant 1.600000e+01 : f32
    %298 = arith.divf %297, %cst_107 : f32
    %cst_108 = arith.constant 0.000000e+00 : f32
    %299 = arith.cmpf oeq, %298, %cst_108 : f32
    %cst_109 = arith.constant 1.000000e+00 : f32
    %300 = arith.select %299, %cst_109, %298 : f32
    %cst_110 = arith.constant 1.000000e+00 : f32
    %301 = arith.divf %cst_110, %300 : f32
    %302 = vector.broadcast %301 : f32 to vector<16x16xf32>
    %303 = arith.mulf %290, %302 : vector<16x16xf32>
    %304 = vector.broadcast %301 : f32 to vector<16x1xf32>
    %305 = arith.mulf %293, %304 : vector<16x1xf32>
    %306 = tpu.transpose %305, [1, 0] : vector<16x1xf32> -> vector<1x16xf32>
    %307 = vector.broadcast %305 : vector<16x1xf32> to vector<16x16xf32>
    %308 = vector.broadcast %306 : vector<1x16xf32> to vector<16x16xf32>
    %309 = arith.addf %307, %308 : vector<16x16xf32>
    %cst_111 = arith.constant 2.000000e+00 : f32
    %310 = vector.broadcast %cst_111 : f32 to vector<16x16xf32>
    %311 = arith.mulf %310, %303 : vector<16x16xf32>
    %312 = arith.subf %309, %311 : vector<16x16xf32>
    %cst_112 = arith.constant -5.000000e-01 : f32
    %313 = vector.broadcast %cst_112 : f32 to vector<16x16xf32>
    %314 = arith.mulf %313, %312 : vector<16x16xf32>
    %315 = math.exp %314 : vector<16x16xf32>
    %316 = vector.extract_strided_slice %104 {offsets = [16, 0], sizes = [16, 8], strides = [1, 1]} : vector<32x8xf32> to vector<16x8xf32>
    %cst_113 = arith.constant dense<0x7F800000> : vector<16xf32>
    %317 = vector.multi_reduction <minimumf>, %316, %cst_113 [1] : vector<16x8xf32> to vector<16xf32>
    %318 = vector.shape_cast %317 : vector<16xf32> to vector<16x1xf32>
    %cst_114 = arith.constant dense<0xFF800000> : vector<16xf32>
    %319 = vector.multi_reduction <maximumf>, %316, %cst_114 [1] : vector<16x8xf32> to vector<16xf32>
    %320 = vector.shape_cast %319 : vector<16xf32> to vector<16x1xf32>
    %321 = arith.subf %320, %318 : vector<16x1xf32>
    %cst_115 = arith.constant 0.000000e+00 : f32
    %322 = vector.broadcast %cst_115 : f32 to vector<16x1xf32>
    %323 = arith.cmpf oeq, %321, %322 : vector<16x1xf32>
    %cst_116 = arith.constant 1.000000e+00 : f32
    %324 = vector.broadcast %cst_116 : f32 to vector<16x1xf32>
    %325 = arith.select %323, %324, %321 : vector<16x1xi1>, vector<16x1xf32>
    %326 = vector.broadcast %318 : vector<16x1xf32> to vector<16x8xf32>
    %327 = arith.subf %316, %326 : vector<16x8xf32>
    %cst_117 = arith.constant 1.000000e+00 : f32
    %328 = vector.broadcast %cst_117 : f32 to vector<16x1xf32>
    %329 = arith.divf %328, %325 : vector<16x1xf32>
    %330 = vector.broadcast %329 : vector<16x1xf32> to vector<16x8xf32>
    %331 = arith.mulf %327, %330 : vector<16x8xf32>
    %cst_118 = arith.constant dense<0.000000e+00> : vector<16x16xf32>
    %332 = tpu.matmul %331, %331, %cst_118 {dimension_numbers = #tpu.dot_dimension_numbers<[1], [1], [0], [0], [0, 0, 1, 0], [], []>} : vector<16x8xf32>, vector<16x8xf32>, vector<16x16xf32> -> vector<16x16xf32>
    %333 = arith.mulf %331, %331 : vector<16x8xf32>
    %cst_119 = arith.constant dense<0.000000e+00> : vector<16xf32>
    %334 = vector.multi_reduction <add>, %333, %cst_119 [1] : vector<16x8xf32> to vector<16xf32>
    %335 = vector.shape_cast %334 : vector<16xf32> to vector<16x1xf32>
    %336 = vector.shape_cast %335 : vector<16x1xf32> to vector<1x16x1xf32>
    %cst_120 = arith.constant dense<0.000000e+00> : vector<1xf32>
    %337 = vector.multi_reduction <add>, %336, %cst_120 [1, 2] : vector<1x16x1xf32> to vector<1xf32>
    %338 = vector.shape_cast %337 : vector<1xf32> to vector<1x1x1xf32>
    %339 = vector.extract %338[0, 0, 0] : f32 from vector<1x1x1xf32>
    %cst_121 = arith.constant 1.600000e+01 : f32
    %340 = arith.divf %339, %cst_121 : f32
    %cst_122 = arith.constant 0.000000e+00 : f32
    %341 = arith.cmpf oeq, %340, %cst_122 : f32
    %cst_123 = arith.constant 1.000000e+00 : f32
    %342 = arith.select %341, %cst_123, %340 : f32
    %cst_124 = arith.constant 1.000000e+00 : f32
    %343 = arith.divf %cst_124, %342 : f32
    %344 = vector.broadcast %343 : f32 to vector<16x16xf32>
    %345 = arith.mulf %332, %344 : vector<16x16xf32>
    %346 = vector.broadcast %343 : f32 to vector<16x1xf32>
    %347 = arith.mulf %335, %346 : vector<16x1xf32>
    %348 = tpu.transpose %347, [1, 0] : vector<16x1xf32> -> vector<1x16xf32>
    %349 = vector.broadcast %347 : vector<16x1xf32> to vector<16x16xf32>
    %350 = vector.broadcast %348 : vector<1x16xf32> to vector<16x16xf32>
    %351 = arith.addf %349, %350 : vector<16x16xf32>
    %cst_125 = arith.constant 2.000000e+00 : f32
    %352 = vector.broadcast %cst_125 : f32 to vector<16x16xf32>
    %353 = arith.mulf %352, %345 : vector<16x16xf32>
    %354 = arith.subf %351, %353 : vector<16x16xf32>
    %cst_126 = arith.constant -5.000000e-01 : f32
    %355 = vector.broadcast %cst_126 : f32 to vector<16x16xf32>
    %356 = arith.mulf %355, %354 : vector<16x16xf32>
    %357 = math.exp %356 : vector<16x16xf32>
    %c0_127 = arith.constant 0 : index
    %c0_128 = arith.constant 0 : index
    %358 = vector.load %arg5[%c0_127, %c0_128] : memref<16x16xf32, #tpu.memory_space<vmem>>, vector<16x16xf32>
    %359 = vector.extract_strided_slice %4 {offsets = [9, 0], sizes = [1, 16], strides = [1, 1]} : vector<11x32xf32> to vector<1x16xf32>
    %cst_129 = arith.constant 2.500000e-01 : f32
    %360 = vector.broadcast %cst_129 : f32 to vector<16x16xf32>
    %361 = arith.mulf %360, %146 : vector<16x16xf32>
    %cst_130 = arith.constant 2.500000e-01 : f32
    %362 = vector.broadcast %cst_130 : f32 to vector<16x16xf32>
    %363 = arith.mulf %362, %188 : vector<16x16xf32>
    %364 = arith.addf %361, %363 : vector<16x16xf32>
    %cst_131 = arith.constant 2.500000e-01 : f32
    %365 = vector.broadcast %cst_131 : f32 to vector<16x16xf32>
    %366 = arith.mulf %365, %230 : vector<16x16xf32>
    %367 = arith.addf %364, %366 : vector<16x16xf32>
    %cst_132 = arith.constant 2.500000e-01 : f32
    %368 = vector.broadcast %cst_132 : f32 to vector<16x16xf32>
    %369 = arith.mulf %368, %231 : vector<16x16xf32>
    %370 = arith.addf %367, %369 : vector<16x16xf32>
    %371 = math.absf %370 : vector<16x16xf32>
    %cst_133 = arith.constant 0.000000e+00 : f32
    %372 = vector.broadcast %cst_133 : f32 to vector<16x16xf32>
    %373 = arith.cmpf oeq, %371, %372 : vector<16x16xf32>
    %cst_134 = arith.constant 0x7F800000 : f32
    %374 = vector.broadcast %cst_134 : f32 to vector<16x16xf32>
    %375 = arith.select %373, %374, %371 : vector<16x16xi1>, vector<16x16xf32>
    %376 = vector.shape_cast %375 : vector<16x16xf32> to vector<1x16x16xf32>
    %cst_135 = arith.constant dense<0x7F800000> : vector<1xf32>
    %377 = vector.multi_reduction <minimumf>, %376, %cst_135 [1, 2] : vector<1x16x16xf32> to vector<1xf32>
    %378 = vector.shape_cast %377 : vector<1xf32> to vector<1x1x1xf32>
    %379 = vector.extract %378[0, 0, 0] : f32 from vector<1x1x1xf32>
    %cst_136 = arith.constant 0x7F800000 : f32
    %380 = arith.cmpf oeq, %379, %cst_136 : f32
    %cst_137 = arith.constant 1.000000e+00 : f32
    %381 = arith.select %380, %cst_137, %379 : f32
    %cst_138 = arith.constant 0.000000e+00 : f32
    %382 = vector.broadcast %cst_138 : f32 to vector<16x16xf32>
    %383 = arith.cmpf oeq, %371, %382 : vector<16x16xf32>
    %384 = vector.broadcast %381 : f32 to vector<16x16xf32>
    %385 = arith.select %383, %384, %371 : vector<16x16xi1>, vector<16x16xf32>
    %386 = tpu.transpose %359, [1, 0] : vector<1x16xf32> -> vector<16x1xf32>
    %387 = vector.broadcast %386 : vector<16x1xf32> to vector<16x16xf32>
    %388 = arith.mulf %385, %387 : vector<16x16xf32>
    %389 = vector.broadcast %359 : vector<1x16xf32> to vector<16x16xf32>
    %390 = arith.mulf %388, %389 : vector<16x16xf32>
    %391 = vector.extract_strided_slice %4 {offsets = [10, 0], sizes = [1, 16], strides = [1, 1]} : vector<11x32xf32> to vector<1x16xf32>
    %cst_139 = arith.constant 2.500000e-01 : f32
    %392 = vector.broadcast %cst_139 : f32 to vector<16x16xf32>
    %393 = arith.mulf %392, %273 : vector<16x16xf32>
    %cst_140 = arith.constant 2.500000e-01 : f32
    %394 = vector.broadcast %cst_140 : f32 to vector<16x16xf32>
    %395 = arith.mulf %394, %315 : vector<16x16xf32>
    %396 = arith.addf %393, %395 : vector<16x16xf32>
    %cst_141 = arith.constant 2.500000e-01 : f32
    %397 = vector.broadcast %cst_141 : f32 to vector<16x16xf32>
    %398 = arith.mulf %397, %357 : vector<16x16xf32>
    %399 = arith.addf %396, %398 : vector<16x16xf32>
    %cst_142 = arith.constant 2.500000e-01 : f32
    %400 = vector.broadcast %cst_142 : f32 to vector<16x16xf32>
    %401 = arith.mulf %400, %358 : vector<16x16xf32>
    %402 = arith.addf %399, %401 : vector<16x16xf32>
    %403 = math.absf %402 : vector<16x16xf32>
    %cst_143 = arith.constant 0.000000e+00 : f32
    %404 = vector.broadcast %cst_143 : f32 to vector<16x16xf32>
    %405 = arith.cmpf oeq, %403, %404 : vector<16x16xf32>
    %cst_144 = arith.constant 0x7F800000 : f32
    %406 = vector.broadcast %cst_144 : f32 to vector<16x16xf32>
    %407 = arith.select %405, %406, %403 : vector<16x16xi1>, vector<16x16xf32>
    %408 = vector.shape_cast %407 : vector<16x16xf32> to vector<1x16x16xf32>
    %cst_145 = arith.constant dense<0x7F800000> : vector<1xf32>
    %409 = vector.multi_reduction <minimumf>, %408, %cst_145 [1, 2] : vector<1x16x16xf32> to vector<1xf32>
    %410 = vector.shape_cast %409 : vector<1xf32> to vector<1x1x1xf32>
    %411 = vector.extract %410[0, 0, 0] : f32 from vector<1x1x1xf32>
    %cst_146 = arith.constant 0x7F800000 : f32
    %412 = arith.cmpf oeq, %411, %cst_146 : f32
    %cst_147 = arith.constant 1.000000e+00 : f32
    %413 = arith.select %412, %cst_147, %411 : f32
    %cst_148 = arith.constant 0.000000e+00 : f32
    %414 = vector.broadcast %cst_148 : f32 to vector<16x16xf32>
    %415 = arith.cmpf oeq, %403, %414 : vector<16x16xf32>
    %416 = vector.broadcast %413 : f32 to vector<16x16xf32>
    %417 = arith.select %415, %416, %403 : vector<16x16xi1>, vector<16x16xf32>
    %418 = tpu.transpose %391, [1, 0] : vector<1x16xf32> -> vector<16x1xf32>
    %419 = vector.broadcast %418 : vector<16x1xf32> to vector<16x16xf32>
    %420 = arith.mulf %417, %419 : vector<16x16xf32>
    %421 = vector.broadcast %391 : vector<1x16xf32> to vector<16x16xf32>
    %422 = arith.mulf %420, %421 : vector<16x16xf32>
    %c0_149 = arith.constant 0 : index
    %c0_150 = arith.constant 0 : index
    %423 = vector.load %arg6[%c0_149, %c0_150] : memref<16x16xf32, #tpu.memory_space<vmem>>, vector<16x16xf32>
    %cst_151 = arith.constant dense<0.000000e+00> : vector<16x16xf32>
    %424 = tpu.matmul %390, %423, %cst_151 {dimension_numbers = #tpu.dot_dimension_numbers<[1], [0], [0], [1], [0, 0, 1, 1], [], []>} : vector<16x16xf32>, vector<16x16xf32>, vector<16x16xf32> -> vector<16x16xf32>
    %c0_152 = arith.constant 0 : index
    %c0_153 = arith.constant 0 : index
    %425 = vector.load %arg7[%c0_152, %c0_153] : memref<16x16xf32, #tpu.memory_space<vmem>>, vector<16x16xf32>
    %cst_154 = arith.constant dense<0.000000e+00> : vector<16x16xf32>
    %426 = tpu.matmul %425, %422, %cst_154 {dimension_numbers = #tpu.dot_dimension_numbers<[1], [0], [0], [1], [0, 0, 1, 1], [], []>} : vector<16x16xf32>, vector<16x16xf32>, vector<16x16xf32> -> vector<16x16xf32>
    %427 = arith.addf %424, %426 : vector<16x16xf32>
    %cst_155 = arith.constant 5.000000e-01 : f32
    %428 = vector.broadcast %cst_155 : f32 to vector<16x16xf32>
    %429 = arith.mulf %427, %428 : vector<16x16xf32>
    %c0_156 = arith.constant 0 : index
    %c0_157 = arith.constant 0 : index
    %430 = vector.load %arg8[%c0_156, %c0_157] : memref<16x16xf32, #tpu.memory_space<vmem>>, vector<16x16xf32>
    tpu.vector_store %arg8[%c0_156, %c0_157], %429 {strides = array<i32>} : memref<16x16xf32, #tpu.memory_space<vmem>>, vector<16x16xf32>,
    return
  }
}

</mosaic_0001>

<llo_original>
// kernel: tpu_custom_call.1
$region0: #{tpu_custom_call.1}
  #allocation0 [shape = 'u32[]', space=smem, size = 0x4, offset = 0x4, fixed_abs, tag = 'smem constant byte address 0x4 - core index']
  #allocation1 [shape = 'u32[144,128]{1,0:T(1,128)}', space=vmem, size = 0x12000, scoped, tag = 'internal scratch']
  %s0 = inlined_call_operand.vmem [shape: f32[32,32], index: 0, kind: input, shape index: {}]
  %s1 = inlined_call_operand.hbm [shape: s8[32,32], index: 1, kind: input, shape index: {}]
  %s2 = inlined_call_operand.vmem [shape: f32[80,32], index: 2, kind: input, shape index: {}]
  %s3 = inlined_call_operand.vmem [shape: f32[11,32], index: 3, kind: input, shape index: {}]
  %s4 = inlined_call_operand.vmem [shape: f32[16,16], index: 4, kind: input, shape index: {}]
  %s5 = inlined_call_operand.vmem [shape: f32[16,16], index: 5, kind: input, shape index: {}]
  %s6 = inlined_call_operand.vmem [shape: f32[16,16], index: 6, kind: input, shape index: {}]
  %s7 = inlined_call_operand.vmem [shape: f32[16,16], index: 7, kind: input, shape index: {}]
  %s8 = inlined_call_operand.hbm [shape: f32[16,16], index: 8, kind: output, shape index: {}]
  %s9 = sld [smem:[#allocation0]]
  $region46: #{tpu_custom_call.1} parent=0
    _
  %s11 = ssub.s32 1, %s9
  %s12 = scalar_select 0, %s11, %s9
  $region1: #{tpu_custom_call.1} parent=0
    #allocation2 [shape = 'u8[4096]{0}', space=vmem, size = 0x1000, scoped, tag = 'input window, operand 1, single buffered']
    #allocation3 [shape = 's32[1]{0}', space=sflag, size = 0x4, scoped, tag = 'scoped memory for tpu_custom_call.1']
    #allocation4 [shape = 's32[1]{0}', space=sflag, size = 0x4, scoped, tag = 'scoped memory for tpu_custom_call.1']
    #allocation5 [shape = 'u8[8192]{0}', space=vmem, size = 0x2000, scoped, tag = 'output window, operand 0, single buffered']
    %13 = vsyncpa [#allocation3], 0
    %14 = vsyncpa [#allocation4], 0
    // Predicated region
    $region2: #{tpu_custom_call.1} parent=1 // pred_check
      _
    $region3: #{tpu_custom_call.1} parent=1 // pred_check_branch
      %16 = sbr.rel (0) target = $region5
    $region4: #{tpu_custom_call.1} parent=1 // pred_region
      _
    $region5: #{tpu_custom_call.1} parent=1 // pred_fallthru
      _
    // Predicated region
    $region6: #{tpu_custom_call.1} parent=1 // pred_check
      _
    $region7: #{tpu_custom_call.1} parent=1 // pred_check_branch
      %18 = sbr.rel (0) target = $region9
    $region8: #{tpu_custom_call.1} parent=1 // pred_region
      %s20 = ssub.s32 128, 128
      %21 = vsyncadd [#allocation3], %s20
      %s23 = sshll.u32 [#allocation2], 4
      %s24 = int_to_ptr.vmem [resolvable:$true] %s23
      %26 = dma.hbm_to_vmem [thread:$0]  %s1, 128, %s24, [#allocation3]
    $region9: #{tpu_custom_call.1} parent=1 // pred_fallthru
      _
    // Predicated region
    $region10: #{tpu_custom_call.1} parent=1 // pred_check
      _
    $region11: #{tpu_custom_call.1} parent=1 // pred_check_branch
      %28 = sbr.rel (0) target = $region13
    $region12: #{tpu_custom_call.1} parent=1 // pred_region
      _
    $region13: #{tpu_custom_call.1} parent=1 // pred_fallthru
      _
    // Predicated region
    $region14: #{tpu_custom_call.1} parent=1 // pred_check
      _
    $region15: #{tpu_custom_call.1} parent=1 // pred_check_branch
      %30 = sbr.rel (0) target = $region17
    $region16: #{tpu_custom_call.1} parent=1 // pred_region
      _
    $region17: #{tpu_custom_call.1} parent=1 // pred_fallthru
      _
    // Predicated region
    $region18: #{tpu_custom_call.1} parent=1 // pred_check
      _
    $region19: #{tpu_custom_call.1} parent=1 // pred_check_branch
      %32 = sbr.rel (0) target = $region21
    $region20: #{tpu_custom_call.1} parent=1 // pred_region
      _
    $region21: #{tpu_custom_call.1} parent=1 // pred_fallthru
      _
    // Predicated region
    $region22: #{tpu_custom_call.1} parent=1 // pred_check
      _
    $region23: #{tpu_custom_call.1} parent=1 // pred_check_branch
      %34 = sbr.rel (0) target = $region25
    $region24: #{tpu_custom_call.1} parent=1 // pred_region
      _
    $region25: #{tpu_custom_call.1} parent=1 // pred_fallthru
      _
    // Predicated region
    $region26: #{tpu_custom_call.1} parent=1 // pred_check
      _
    $region27: #{tpu_custom_call.1} parent=1 // pred_check_branch
      %36 = sbr.rel (0) target = $region29
    $region28: #{tpu_custom_call.1} parent=1 // pred_region
      _
    $region29: #{tpu_custom_call.1} parent=1 // pred_fallthru
      _
    // Predicated region
    $region30: #{tpu_custom_call.1} parent=1 // pred_check
      _
    $region31: #{tpu_custom_call.1} parent=1 // pred_check_branch
      %38 = sbr.rel (0) target = $region33
    $region32: #{tpu_custom_call.1} parent=1 // pred_region
      _
    $region33: #{tpu_custom_call.1} parent=1 // pred_fallthru
      _
    // Predicated region
    $region34: #{tpu_custom_call.1} parent=1 // pred_check
      _
    $region35: #{tpu_custom_call.1} parent=1 // pred_check_branch
      %40 = sbr.rel (0) target = $region37
    $region36: #{tpu_custom_call.1} parent=1 // pred_region
      %41 = dma.done [#allocation3], 128
    $region37: #{tpu_custom_call.1} parent=1 // pred_fallthru
      _
    %v42 = vld [vmem:[#allocation2] sm:$0xff]
    %v43 = vunpack.c.0.s8 %v42
    %v44 = vunpack.c.1.s8 %v42
    %v45 = vunpack.c.2.s8 %v42
    %v46 = vunpack.c.3.s8 %v42
    %vm47 = vcmp.gt.s32.totalorder %v43, 0
    %vm48 = vcmp.gt.s32.totalorder %v44, 0
    %vm49 = vcmp.gt.s32.totalorder %v45, 0
    %vm50 = vcmp.gt.s32.totalorder %v46, 0
    %v51 = vld [vmem:[%s3] sm:$0xff]
    %v52 = vld [vmem:[%s3 + $0x8] sm:$0x7]
    %v53 = vld [vmem:[%s0] sm:$0xff]
    %v54 = vld [vmem:[%s0 + $0x8] sm:$0xff]
    %v55 = vld [vmem:[%s0 + $0x10] sm:$0xff]
    %v56 = vld [vmem:[%s0 + $0x18] sm:$0xff]
    %v57 = vld [vmem:[%s2] sm:$0xff]
    %v58 = vld [vmem:[%s2 + $0x8] sm:$0xff]
    %v59 = vld [vmem:[%s2 + $0x10] sm:$0xff]
    %v60 = vld [vmem:[%s2 + $0x18] sm:$0xff]
    %vm61 = vcmask 261120
    %v63 = vsel %vm61, %v53, 0
    %v66 = vsel %vm61, %v54, 0
    %v69 = vsel %vm61, %v55, 0
    %v72 = vsel %vm61, %v56, 0
    %74 = vmatprep.subr.mxu0 0.0
    %75 = vmatpush1.msra.mxu0 0.0
    %76 = vmatprep.subr.mxu0 0.0
    %77 = vmatpush1.msra.mxu0 0.0
    %78 = vmatprep.subr.mxu0 0.0
    %79 = vmatpush1.msra.mxu0 0.0
    %80 = vmatprep.subr.mxu0 0.0
    %81 = vmatpush1.msra.mxu0 0.0
    %82 = vmatprep.subr.mxu0 0.0
    %83 = vmatpush1.msra.mxu0 0.0
    %84 = vmatprep.subr.mxu0 0.0
    %85 = vmatpush1.msra.mxu0 0.0
    %86 = vmatprep.subr.mxu0 0.0
    %87 = vmatpush1.msra.mxu0 0.0
    %88 = vmatprep.subr.mxu0 0.0
    %89 = vmatpush1.msra.mxu0 0.0
    %90 = vmatprep.subr.mxu0 0.0
    %91 = vmatpush1.msra.mxu0 0.0
    %92 = vmatprep.subr.mxu0 0.0
    %93 = vmatpush1.msra.mxu0 0.0
    %94 = vmatprep.subr.mxu0 0.0
    %95 = vmatpush1.msra.mxu0 0.0
    %96 = vmatprep.subr.mxu0 0.0
    %97 = vmatpush1.msra.mxu0 0.0
    %98 = vmatprep.subr.mxu0 0.0
    %99 = vmatpush1.msra.mxu0 %v60
    %100 = vmatprep.subr.mxu0 0.0
    %101 = vmatpush1.msra.mxu0 %v59
    %102 = vmatprep.subr.mxu0 0.0
    %103 = vmatpush1.msra.mxu0 %v58
    %104 = vmatprep.subr.mxu0 0.0
    %105 = vmatpush1.msra.mxu0 %v57
    %106 = vmatprep.subr.mxu0 0.0
    %107 = vmatpush2.msra.mxu0 0.0
    %108 = vmatprep.subr.mxu0 0.0
    %109 = vmatpush2.msra.mxu0 0.0
    %110 = vmatprep.subr.mxu0 0.0
    %111 = vmatpush2.msra.mxu0 0.0
    %112 = vmatprep.subr.mxu0 0.0
    %113 = vmatpush2.msra.mxu0 0.0
    %114 = vmatprep.subr.mxu0 0.0
    %115 = vmatpush2.msra.mxu0 0.0
    %116 = vmatprep.subr.mxu0 0.0
    %117 = vmatpush2.msra.mxu0 0.0
    %118 = vmatprep.subr.mxu0 0.0
    %119 = vmatpush2.msra.mxu0 0.0
    %120 = vmatprep.subr.mxu0 0.0
    %121 = vmatpush2.msra.mxu0 0.0
    %122 = vmatprep.subr.mxu0 0.0
    %123 = vmatpush2.msra.mxu0 0.0
    %124 = vmatprep.subr.mxu0 0.0
    %125 = vmatpush2.msra.mxu0 0.0
    %126 = vmatprep.subr.mxu0 0.0
    %127 = vmatpush2.msra.mxu0 0.0
    %128 = vmatprep.subr.mxu0 0.0
    %129 = vmatpush2.msra.mxu0 0.0
    %130 = vmatprep.subr.mxu0 0.0
    %131 = vmatpush2.msra.mxu0 0.0
    %132 = vmatprep.subr.mxu0 0.0
    %133 = vmatpush2.msra.mxu0 0.0
    %134 = vmatprep.subr.mxu0 0.0
    %135 = vmatpush2.msra.mxu0 0.0
    %136 = vmatprep.subr.mxu0 0.0
    %137 = vmatpush2.msra.mxu0 0.0
    %138 = vmatprep.mubr.f32.mxu0 0.0
    %139 = vmatmul.mubr.f32.gmra.mxu0 %v63
    %v140 = vpop.f32.mrf.mxu0
    %v141 = vadd.f32 0.0, %v140
    %v142 = vpop.f32.mrf.mxu0
    %143 = vmatprep.mubr.f32.mxu0 0.0
    %144 = vmatmul.mubr.f32.gmra.mxu0 %v66
    %v145 = vpop.f32.mrf.mxu0
    %v146 = vadd.f32 0.0, %v145
    %v147 = vpop.f32.mrf.mxu0
    %148 = vmatprep.mubr.f32.mxu0 0.0
    %149 = vmatmul.mubr.f32.gmra.mxu0 %v69
    %v150 = vpop.f32.mrf.mxu0
    %v151 = vadd.f32 0.0, %v150
    %v152 = vpop.f32.mrf.mxu0
    %153 = vmatprep.mubr.f32.mxu0 0.0
    %154 = vmatmul.mubr.f32.gmra.mxu0 %v72
    %v155 = vpop.f32.mrf.mxu0
    %v156 = vadd.f32 0.0, %v155
    %v157 = vpop.f32.mrf.mxu0
    %158 = vdwg.mxu0
    %v160 = vsel %vm61, %v51, 0
    %v163 = vsel %vm61, %v141, 0
    %v166 = vsel %vm61, %v146, 0
    %v169 = vsel %vm61, %v151, 0
    %v172 = vsel %vm61, %v156, 0
    %174 = vmatprep.subr.mxu0 0.0
    %175 = vmatpush1.xpose.msra.mxu0 0.0
    %176 = vmatprep.subr.mxu0 0.0
    %177 = vmatpush1.xpose.msra.mxu0 0.0
    %178 = vmatprep.subr.mxu0 0.0
    %179 = vmatpush1.xpose.msra.mxu0 0.0
    %180 = vmatprep.subr.mxu0 0.0
    %181 = vmatpush1.xpose.msra.mxu0 0.0
    %182 = vmatprep.subr.mxu0 0.0
    %183 = vmatpush1.xpose.msra.mxu0 0.0
    %184 = vmatprep.subr.mxu0 0.0
    %185 = vmatpush1.xpose.msra.mxu0 0.0
    %186 = vmatprep.subr.mxu0 0.0
    %187 = vmatpush1.xpose.msra.mxu0 0.0
    %188 = vmatprep.subr.mxu0 0.0
    %189 = vmatpush1.xpose.msra.mxu0 0.0
    %190 = vmatprep.subr.mxu0 0.0
    %191 = vmatpush1.xpose.msra.mxu0 0.0
    %192 = vmatprep.subr.mxu0 0.0
    %193 = vmatpush1.xpose.msra.mxu0 0.0
    %194 = vmatprep.subr.mxu0 0.0
    %195 = vmatpush1.xpose.msra.mxu0 0.0
    %196 = vmatprep.subr.mxu0 0.0
    %197 = vmatpush1.xpose.msra.mxu0 0.0
    %198 = vmatprep.subr.mxu0 0.0
    %199 = vmatpush1.xpose.msra.mxu0 %v172
    %200 = vmatprep.subr.mxu0 0.0
    %201 = vmatpush1.xpose.msra.mxu0 %v169
    %202 = vmatprep.subr.mxu0 0.0
    %203 = vmatpush1.xpose.msra.mxu0 %v166
    %204 = vmatprep.subr.mxu0 0.0
    %205 = vmatpush1.xpose.msra.mxu0 %v163
    %206 = vmatprep.subr.mxu0 0.0
    %207 = vmatpush2.xpose.msra.mxu0 0.0
    %208 = vmatprep.subr.mxu0 0.0
    %209 = vmatpush2.xpose.msra.mxu0 0.0
    %210 = vmatprep.subr.mxu0 0.0
    %211 = vmatpush2.xpose.msra.mxu0 0.0
    %212 = vmatprep.subr.mxu0 0.0
    %213 = vmatpush2.xpose.msra.mxu0 0.0
    %214 = vmatprep.subr.mxu0 0.0
    %215 = vmatpush2.xpose.msra.mxu0 0.0
    %216 = vmatprep.subr.mxu0 0.0
    %217 = vmatpush2.xpose.msra.mxu0 0.0
    %218 = vmatprep.subr.mxu0 0.0
    %219 = vmatpush2.xpose.msra.mxu0 0.0
    %220 = vmatprep.subr.mxu0 0.0
    %221 = vmatpush2.xpose.msra.mxu0 0.0
    %222 = vmatprep.subr.mxu0 0.0
    %223 = vmatpush2.xpose.msra.mxu0 0.0
    %224 = vmatprep.subr.mxu0 0.0
    %225 = vmatpush2.xpose.msra.mxu0 0.0
    %226 = vmatprep.subr.mxu0 0.0
    %227 = vmatpush2.xpose.msra.mxu0 0.0
    %228 = vmatprep.subr.mxu0 0.0
    %229 = vmatpush2.xpose.msra.mxu0 0.0
    %230 = vmatprep.subr.mxu0 0.0
    %231 = vmatpush2.xpose.msra.mxu0 0.0
    %232 = vmatprep.subr.mxu0 0.0
    %233 = vmatpush2.xpose.msra.mxu0 0.0
    %234 = vmatprep.subr.mxu0 0.0
    %235 = vmatpush2.xpose.msra.mxu0 0.0
    %236 = vmatprep.subr.mxu0 0.0
    %237 = vmatpush2.xpose.msra.mxu0 0.0
    %238 = vmatprep.mubr.f32.mxu0 0.0
    %239 = vmatmul.mubr.f32.gmra.mxu0 %v160
    %v240 = vpop.f32.mrf.mxu0
    %v241 = vadd.f32 0.0, %v240
    %v242 = vpop.f32.mrf.mxu0
    %243 = vdwg.mxu0
    %v244 = vlaneseq
    %v245 = vshrl.u32 %v244, 7
    %v246 = vsub.s32 1, %v245
    %v247 = vrot.slane %v51, %v246
    %v248 = vmul.f32 %v141, %v247
    %v249 = vmul.f32 %v146, %v247
    %v250 = vmul.f32 %v151, %v247
    %v251 = vmul.f32 %v156, %v247
    %v252 = vsel %vm61, %v248, 0.0
    %253 = vadd.xlane.f32.xlu0 %v252
    %v254 = vpop.xlane.xlu0 %253
    %v255 = vsel %vm61, %v249, 0.0
    %256 = vadd.xlane.f32.xlu0 %v255
    %v257 = vpop.xlane.xlu0 %256
    %v258 = vsel %vm61, %v250, 0.0
    %259 = vadd.xlane.f32.xlu0 %v258
    %v260 = vpop.xlane.xlu0 %259
    %v261 = vsel %vm61, %v251, 0.0
    %262 = vadd.xlane.f32.xlu0 %v261
    %v263 = vpop.xlane.xlu0 %262
    %v264 = vlaneseq
    %v265 = vshrl.u32 %v264, 7
    %v266 = vsub.s32 0, %v265
    %v267 = vrot.slane %v241, %v266
    %v268 = vadd.f32 %v254, %v267
    %v269 = vadd.f32 %v257, %v267
    %v270 = vadd.f32 %v260, %v267
    %v271 = vadd.f32 %v263, %v267
    %vm272 = vcmp.gt.f32.partialorder %v268, 0.0
    %vm273 = vcmp.gt.f32.partialorder %v269, 0.0
    %vm274 = vcmp.gt.f32.partialorder %v270, 0.0
    %vm275 = vcmp.gt.f32.partialorder %v271, 0.0
    %v276 = vmul.f32 %v268, 0.2
    %v277 = vmul.f32 %v269, 0.2
    %v278 = vmul.f32 %v270, 0.2
    %v279 = vmul.f32 %v271, 0.2
    %v280 = vsel %vm272, %v268, %v276
    %v281 = vsel %vm273, %v269, %v277
    %v282 = vsel %vm274, %v270, %v278
    %v283 = vsel %vm275, %v271, %v279
    %v284 = vsel %vm47, %v280, -1e+30
    %v285 = vsel %vm48, %v281, -1e+30
    %v286 = vsel %vm49, %v282, -1e+30
    %v287 = vsel %vm50, %v283, -1e+30
    %v288 = vsel %vm61, %v284, -inf
    %289 = vmax.xlane.f32.xlu0 %v288
    %v290 = vpop.xlane.xlu0 %289
    %v291 = vsel %vm61, %v285, -inf
    %292 = vmax.xlane.f32.xlu0 %v291
    %v293 = vpop.xlane.xlu0 %292
    %v294 = vsel %vm61, %v286, -inf
    %295 = vmax.xlane.f32.xlu0 %v294
    %v296 = vpop.xlane.xlu0 %295
    %v297 = vsel %vm61, %v287, -inf
    %298 = vmax.xlane.f32.xlu0 %v297
    %v299 = vpop.xlane.xlu0 %298
    %v300 = vsub.f32 %v284, %v290
    %v301 = vsub.f32 %v285, %v293
    %v302 = vsub.f32 %v286, %v296
    %v303 = vsub.f32 %v287, %v299
    %v304 = vmul.f32 %v300, 1.442695
    %v305 = vpow.pop %v304
    %v306 = vmul.f32 %v301, 1.442695
    %v307 = vpow.pop %v306
    %v308 = vmul.f32 %v302, 1.442695
    %v309 = vpow.pop %v308
    %v310 = vmul.f32 %v303, 1.442695
    %v311 = vpow.pop %v310
    %v312 = vsel %vm61, %v305, 0.0
    %313 = vadd.xlane.f32.xlu0 %v312
    %v314 = vpop.xlane.xlu0 %313
    %v315 = vsel %vm61, %v307, 0.0
    %316 = vadd.xlane.f32.xlu0 %v315
    %v317 = vpop.xlane.xlu0 %316
    %v318 = vsel %vm61, %v309, 0.0
    %319 = vadd.xlane.f32.xlu0 %v318
    %v320 = vpop.xlane.xlu0 %319
    %v321 = vsel %vm61, %v311, 0.0
    %322 = vadd.xlane.f32.xlu0 %v321
    %v323 = vpop.xlane.xlu0 %322
    %v324 = vrcp.pop %v314
    %v325 = vmul.f32 1.0, %v324
    %v326 = vrcp.pop %v317
    %v327 = vmul.f32 1.0, %v326
    %v328 = vrcp.pop %v320
    %v329 = vmul.f32 1.0, %v328
    %v330 = vrcp.pop %v323
    %v331 = vmul.f32 1.0, %v330
    %v333 = vsel %vm61, %v305, 0
    %v336 = vsel %vm61, %v307, 0
    %v339 = vsel %vm61, %v309, 0
    %v342 = vsel %vm61, %v311, 0
    %344 = vmatprep.subr.mxu0 0.0
    %345 = vmatpush1.msra.mxu0 0.0
    %346 = vmatprep.subr.mxu0 0.0
    %347 = vmatpush1.msra.mxu0 0.0
    %348 = vmatprep.subr.mxu0 0.0
    %349 = vmatpush1.msra.mxu0 0.0
    %350 = vmatprep.subr.mxu0 0.0
    %351 = vmatpush1.msra.mxu0 0.0
    %352 = vmatprep.subr.mxu0 0.0
    %353 = vmatpush1.msra.mxu0 0.0
    %354 = vmatprep.subr.mxu0 0.0
    %355 = vmatpush1.msra.mxu0 0.0
    %356 = vmatprep.subr.mxu0 0.0
    %357 = vmatpush1.msra.mxu0 0.0
    %358 = vmatprep.subr.mxu0 0.0
    %359 = vmatpush1.msra.mxu0 0.0
    %360 = vmatprep.subr.mxu0 0.0
    %361 = vmatpush1.msra.mxu0 0.0
    %362 = vmatprep.subr.mxu0 0.0
    %363 = vmatpush1.msra.mxu0 0.0
    %364 = vmatprep.subr.mxu0 0.0
    %365 = vmatpush1.msra.mxu0 0.0
    %366 = vmatprep.subr.mxu0 0.0
    %367 = vmatpush1.msra.mxu0 0.0
    %368 = vmatprep.subr.mxu0 0.0
    %369 = vmatpush1.msra.mxu0 %v156
    %370 = vmatprep.subr.mxu0 0.0
    %371 = vmatpush1.msra.mxu0 %v151
    %372 = vmatprep.subr.mxu0 0.0
    %373 = vmatpush1.msra.mxu0 %v146
    %374 = vmatprep.subr.mxu0 0.0
    %375 = vmatpush1.msra.mxu0 %v141
    %376 = vmatprep.subr.mxu0 0.0
    %377 = vmatpush2.msra.mxu0 0.0
    %378 = vmatprep.subr.mxu0 0.0
    %379 = vmatpush2.msra.mxu0 0.0
    %380 = vmatprep.subr.mxu0 0.0
    %381 = vmatpush2.msra.mxu0 0.0
    %382 = vmatprep.subr.mxu0 0.0
    %383 = vmatpush2.msra.mxu0 0.0
    %384 = vmatprep.subr.mxu0 0.0
    %385 = vmatpush2.msra.mxu0 0.0
    %386 = vmatprep.subr.mxu0 0.0
    %387 = vmatpush2.msra.mxu0 0.0
    %388 = vmatprep.subr.mxu0 0.0
    %389 = vmatpush2.msra.mxu0 0.0
    %390 = vmatprep.subr.mxu0 0.0
    %391 = vmatpush2.msra.mxu0 0.0
    %392 = vmatprep.subr.mxu0 0.0
    %393 = vmatpush2.msra.mxu0 0.0
    %394 = vmatprep.subr.mxu0 0.0
    %395 = vmatpush2.msra.mxu0 0.0
    %396 = vmatprep.subr.mxu0 0.0
    %397 = vmatpush2.msra.mxu0 0.0
    %398 = vmatprep.subr.mxu0 0.0
    %399 = vmatpush2.msra.mxu0 0.0
    %400 = vmatprep.subr.mxu0 0.0
    %401 = vmatpush2.msra.mxu0 0.0
    %402 = vmatprep.subr.mxu0 0.0
    %403 = vmatpush2.msra.mxu0 0.0
    %404 = vmatprep.subr.mxu0 0.0
    %405 = vmatpush2.msra.mxu0 0.0
    %406 = vmatprep.subr.mxu0 0.0
    %407 = vmatpush2.msra.mxu0 0.0
    %408 = vmatprep.mubr.f32.mxu0 0.0
    %409 = vmatmul.mubr.f32.gmra.mxu0 %v333
    %v410 = vpop.f32.mrf.mxu0
    %v411 = vadd.f32 0.0, %v410
    %v412 = vpop.f32.mrf.mxu0
    %413 = vmatprep.mubr.f32.mxu0 0.0
    %414 = vmatmul.mubr.f32.gmra.mxu0 %v336
    %v415 = vpop.f32.mrf.mxu0
    %v416 = vadd.f32 0.0, %v415
    %v417 = vpop.f32.mrf.mxu0
    %418 = vmatprep.mubr.f32.mxu0 0.0
    %419 = vmatmul.mubr.f32.gmra.mxu0 %v339
    %v420 = vpop.f32.mrf.mxu0
    %v421 = vadd.f32 0.0, %v420
    %v422 = vpop.f32.mrf.mxu0
    %423 = vmatprep.mubr.f32.mxu0 0.0
    %424 = vmatmul.mubr.f32.gmra.mxu0 %v342
    %v425 = vpop.f32.mrf.mxu0
    %v426 = vadd.f32 0.0, %v425
    %v427 = vpop.f32.mrf.mxu0
    %428 = vdwg.mxu0
    %v429 = vmul.f32 %v411, %v325
    %v430 = vmul.f32 %v416, %v327
    %v431 = vmul.f32 %v421, %v329
    %v432 = vmul.f32 %v426, %v331
    %v433 = vlaneseq
    %v434 = vshrl.u32 %v433, 7
    %v435 = vsub.s32 2, %v434
    %v436 = vrot.slane %v51, %v435
    %v437 = vadd.f32 %v429, %v436
    %v438 = vadd.f32 %v430, %v436
    %v439 = vadd.f32 %v431, %v436
    %v440 = vadd.f32 %v432, %v436
    %v441 = vmax.f32 %v437, 0.0
    %v442 = vmax.f32 %v438, 0.0
    %v443 = vmax.f32 %v439, 0.0
    %v444 = vmax.f32 %v440, 0.0
    %v445 = vld [vmem:[%s2 + $0x20] sm:$0xff]
    %v446 = vld [vmem:[%s2 + $0x28] sm:$0xff]
    %v447 = vld [vmem:[%s2 + $0x30] sm:$0xff]
    %v448 = vld [vmem:[%s2 + $0x38] sm:$0xff]
    %v450 = vsel %vm61, %v441, 0
    %v453 = vsel %vm61, %v442, 0
    %v456 = vsel %vm61, %v443, 0
    %v459 = vsel %vm61, %v444, 0
    %461 = vmatprep.subr.mxu0 0.0
    %462 = vmatpush1.msra.mxu0 0.0
    %463 = vmatprep.subr.mxu0 0.0
    %464 = vmatpush1.msra.mxu0 0.0
    %465 = vmatprep.subr.mxu0 0.0
    %466 = vmatpush1.msra.mxu0 0.0
    %467 = vmatprep.subr.mxu0 0.0
    %468 = vmatpush1.msra.mxu0 0.0
    %469 = vmatprep.subr.mxu0 0.0
    %470 = vmatpush1.msra.mxu0 0.0
    %471 = vmatprep.subr.mxu0 0.0
    %472 = vmatpush1.msra.mxu0 0.0
    %473 = vmatprep.subr.mxu0 0.0
    %474 = vmatpush1.msra.mxu0 0.0
    %475 = vmatprep.subr.mxu0 0.0
    %476 = vmatpush1.msra.mxu0 0.0
    %477 = vmatprep.subr.mxu0 0.0
    %478 = vmatpush1.msra.mxu0 0.0
    %479 = vmatprep.subr.mxu0 0.0
    %480 = vmatpush1.msra.mxu0 0.0
    %481 = vmatprep.subr.mxu0 0.0
    %482 = vmatpush1.msra.mxu0 0.0
    %483 = vmatprep.subr.mxu0 0.0
    %484 = vmatpush1.msra.mxu0 0.0
    %485 = vmatprep.subr.mxu0 0.0
    %486 = vmatpush1.msra.mxu0 %v448
    %487 = vmatprep.subr.mxu0 0.0
    %488 = vmatpush1.msra.mxu0 %v447
    %489 = vmatprep.subr.mxu0 0.0
    %490 = vmatpush1.msra.mxu0 %v446
    %491 = vmatprep.subr.mxu0 0.0
    %492 = vmatpush1.msra.mxu0 %v445
    %493 = vmatprep.subr.mxu0 0.0
    %494 = vmatpush2.msra.mxu0 0.0
    %495 = vmatprep.subr.mxu0 0.0
    %496 = vmatpush2.msra.mxu0 0.0
    %497 = vmatprep.subr.mxu0 0.0
    %498 = vmatpush2.msra.mxu0 0.0
    %499 = vmatprep.subr.mxu0 0.0
    %500 = vmatpush2.msra.mxu0 0.0
    %501 = vmatprep.subr.mxu0 0.0
    %502 = vmatpush2.msra.mxu0 0.0
    %503 = vmatprep.subr.mxu0 0.0
    %504 = vmatpush2.msra.mxu0 0.0
    %505 = vmatprep.subr.mxu0 0.0
    %506 = vmatpush2.msra.mxu0 0.0
    %507 = vmatprep.subr.mxu0 0.0
    %508 = vmatpush2.msra.mxu0 0.0
    %509 = vmatprep.subr.mxu0 0.0
    %510 = vmatpush2.msra.mxu0 0.0
    %511 = vmatprep.subr.mxu0 0.0
    %512 = vmatpush2.msra.mxu0 0.0
    %513 = vmatprep.subr.mxu0 0.0
    %514 = vmatpush2.msra.mxu0 0.0
    %515 = vmatprep.subr.mxu0 0.0
    %516 = vmatpush2.msra.mxu0 0.0
    %517 = vmatprep.subr.mxu0 0.0
    %518 = vmatpush2.msra.mxu0 0.0
    %519 = vmatprep.subr.mxu0 0.0
    %520 = vmatpush2.msra.mxu0 0.0
    %521 = vmatprep.subr.mxu0 0.0
    %522 = vmatpush2.msra.mxu0 0.0
    %523 = vmatprep.subr.mxu0 0.0
    %524 = vmatpush2.msra.mxu0 0.0
    %525 = vmatprep.mubr.f32.mxu0 0.0
    %526 = vmatmul.mubr.f32.gmra.mxu0 %v450
    %v527 = vpop.f32.mrf.mxu0
    %v528 = vadd.f32 0.0, %v527
    %v529 = vpop.f32.mrf.mxu0
    %530 = vmatprep.mubr.f32.mxu0 0.0
    %531 = vmatmul.mubr.f32.gmra.mxu0 %v453
    %v532 = vpop.f32.mrf.mxu0
    %v533 = vadd.f32 0.0, %v532
    %v534 = vpop.f32.mrf.mxu0
    %535 = vmatprep.mubr.f32.mxu0 0.0
    %536 = vmatmul.mubr.f32.gmra.mxu0 %v456
    %v537 = vpop.f32.mrf.mxu0
    %v538 = vadd.f32 0.0, %v537
    %v539 = vpop.f32.mrf.mxu0
    %540 = vmatprep.mubr.f32.mxu0 0.0
    %541 = vmatmul.mubr.f32.gmra.mxu0 %v459
    %v542 = vpop.f32.mrf.mxu0
    %v543 = vadd.f32 0.0, %v542
    %v544 = vpop.f32.mrf.mxu0
    %545 = vdwg.mxu0
    %v546 = vrot.slane %v51, 3
    %vm547 = vcmask 130048
    %v548 = vsel %vm547, %v546, 0
    %v551 = vsel %vm547, %v528, 0
    %v554 = vsel %vm547, %v533, 0
    %v557 = vsel %vm547, %v538, 0
    %v560 = vsel %vm547, %v543, 0
    %562 = vmatprep.subr.mxu0 0.0
    %563 = vmatpush1.xpose.msra.mxu0 0.0
    %564 = vmatprep.subr.mxu0 0.0
    %565 = vmatpush1.xpose.msra.mxu0 0.0
    %566 = vmatprep.subr.mxu0 0.0
    %567 = vmatpush1.xpose.msra.mxu0 0.0
    %568 = vmatprep.subr.mxu0 0.0
    %569 = vmatpush1.xpose.msra.mxu0 0.0
    %570 = vmatprep.subr.mxu0 0.0
    %571 = vmatpush1.xpose.msra.mxu0 0.0
    %572 = vmatprep.subr.mxu0 0.0
    %573 = vmatpush1.xpose.msra.mxu0 0.0
    %574 = vmatprep.subr.mxu0 0.0
    %575 = vmatpush1.xpose.msra.mxu0 0.0
    %576 = vmatprep.subr.mxu0 0.0
    %577 = vmatpush1.xpose.msra.mxu0 0.0
    %578 = vmatprep.subr.mxu0 0.0
    %579 = vmatpush1.xpose.msra.mxu0 0.0
    %580 = vmatprep.subr.mxu0 0.0
    %581 = vmatpush1.xpose.msra.mxu0 0.0
    %582 = vmatprep.subr.mxu0 0.0
    %583 = vmatpush1.xpose.msra.mxu0 0.0
    %584 = vmatprep.subr.mxu0 0.0
    %585 = vmatpush1.xpose.msra.mxu0 0.0
    %586 = vmatprep.subr.mxu0 0.0
    %587 = vmatpush1.xpose.msra.mxu0 %v560
    %588 = vmatprep.subr.mxu0 0.0
    %589 = vmatpush1.xpose.msra.mxu0 %v557
    %590 = vmatprep.subr.mxu0 0.0
    %591 = vmatpush1.xpose.msra.mxu0 %v554
    %592 = vmatprep.subr.mxu0 0.0
    %593 = vmatpush1.xpose.msra.mxu0 %v551
    %594 = vmatprep.subr.mxu0 0.0
    %595 = vmatpush2.xpose.msra.mxu0 0.0
    %596 = vmatprep.subr.mxu0 0.0
    %597 = vmatpush2.xpose.msra.mxu0 0.0
    %598 = vmatprep.subr.mxu0 0.0
    %599 = vmatpush2.xpose.msra.mxu0 0.0
    %600 = vmatprep.subr.mxu0 0.0
    %601 = vmatpush2.xpose.msra.mxu0 0.0
    %602 = vmatprep.subr.mxu0 0.0
    %603 = vmatpush2.xpose.msra.mxu0 0.0
    %604 = vmatprep.subr.mxu0 0.0
    %605 = vmatpush2.xpose.msra.mxu0 0.0
    %606 = vmatprep.subr.mxu0 0.0
    %607 = vmatpush2.xpose.msra.mxu0 0.0
    %608 = vmatprep.subr.mxu0 0.0
    %609 = vmatpush2.xpose.msra.mxu0 0.0
    %610 = vmatprep.subr.mxu0 0.0
    %611 = vmatpush2.xpose.msra.mxu0 0.0
    %612 = vmatprep.subr.mxu0 0.0
    %613 = vmatpush2.xpose.msra.mxu0 0.0
    %614 = vmatprep.subr.mxu0 0.0
    %615 = vmatpush2.xpose.msra.mxu0 0.0
    %616 = vmatprep.subr.mxu0 0.0
    %617 = vmatpush2.xpose.msra.mxu0 0.0
    %618 = vmatprep.subr.mxu0 0.0
    %619 = vmatpush2.xpose.msra.mxu0 0.0
    %620 = vmatprep.subr.mxu0 0.0
    %621 = vmatpush2.xpose.msra.mxu0 0.0
    %622 = vmatprep.subr.mxu0 0.0
    %623 = vmatpush2.xpose.msra.mxu0 0.0
    %624 = vmatprep.subr.mxu0 0.0
    %625 = vmatpush2.xpose.msra.mxu0 0.0
    %626 = vmatprep.mubr.f32.mxu0 0.0
    %627 = vmatmul.mubr.f32.gmra.mxu0 %v548
    %v628 = vpop.f32.mrf.mxu0
    %v629 = vadd.f32 0.0, %v628
    %v630 = vpop.f32.mrf.mxu0
    %631 = vdwg.mxu0
    %v632 = vlaneseq
    %v633 = vshrl.u32 %v632, 7
    %v634 = vsub.s32 4, %v633
    %v635 = vrot.slane %v51, %v634
    %v636 = vmul.f32 %v528, %v635
    %v637 = vmul.f32 %v533, %v635
    %v638 = vmul.f32 %v538, %v635
    %v639 = vmul.f32 %v543, %v635
    %v640 = vsel %vm547, %v636, 0.0
    %641 = vadd.xlane.f32.xlu0 %v640
    %v642 = vpop.xlane.xlu0 %641
    %v643 = vsel %vm547, %v637, 0.0
    %644 = vadd.xlane.f32.xlu0 %v643
    %v645 = vpop.xlane.xlu0 %644
    %v646 = vsel %vm547, %v638, 0.0
    %647 = vadd.xlane.f32.xlu0 %v646
    %v648 = vpop.xlane.xlu0 %647
    %v649 = vsel %vm547, %v639, 0.0
    %650 = vadd.xlane.f32.xlu0 %v649
    %v651 = vpop.xlane.xlu0 %650
    %v652 = vlaneseq
    %v653 = vshrl.u32 %v652, 7
    %v654 = vsub.s32 0, %v653
    %v655 = vrot.slane %v629, %v654
    %v656 = vadd.f32 %v642, %v655
    %v657 = vadd.f32 %v645, %v655
    %v658 = vadd.f32 %v648, %v655
    %v659 = vadd.f32 %v651, %v655
    %vm660 = vcmp.gt.f32.partialorder %v656, 0.0
    %vm661 = vcmp.gt.f32.partialorder %v657, 0.0
    %vm662 = vcmp.gt.f32.partialorder %v658, 0.0
    %vm663 = vcmp.gt.f32.partialorder %v659, 0.0
    %v664 = vmul.f32 %v656, 0.2
    %v665 = vmul.f32 %v657, 0.2
    %v666 = vmul.f32 %v658, 0.2
    %v667 = vmul.f32 %v659, 0.2
    %v668 = vsel %vm660, %v656, %v664
    %v669 = vsel %vm661, %v657, %v665
    %v670 = vsel %vm662, %v658, %v666
    %v671 = vsel %vm663, %v659, %v667
    %v672 = vsel %vm47, %v668, -1e+30
    %v673 = vsel %vm48, %v669, -1e+30
    %v674 = vsel %vm49, %v670, -1e+30
    %v675 = vsel %vm50, %v671, -1e+30
    %v676 = vsel %vm61, %v672, -inf
    %677 = vmax.xlane.f32.xlu0 %v676
    %v678 = vpop.xlane.xlu0 %677
    %v679 = vsel %vm61, %v673, -inf
    %680 = vmax.xlane.f32.xlu0 %v679
    %v681 = vpop.xlane.xlu0 %680
    %v682 = vsel %vm61, %v674, -inf
    %683 = vmax.xlane.f32.xlu0 %v682
    %v684 = vpop.xlane.xlu0 %683
    %v685 = vsel %vm61, %v675, -inf
    %686 = vmax.xlane.f32.xlu0 %v685
    %v687 = vpop.xlane.xlu0 %686
    %v688 = vsub.f32 %v672, %v678
    %v689 = vsub.f32 %v673, %v681
    %v690 = vsub.f32 %v674, %v684
    %v691 = vsub.f32 %v675, %v687
    %v692 = vmul.f32 %v688, 1.442695
    %v693 = vpow.pop %v692
    %v694 = vmul.f32 %v689, 1.442695
    %v695 = vpow.pop %v694
    %v696 = vmul.f32 %v690, 1.442695
    %v697 = vpow.pop %v696
    %v698 = vmul.f32 %v691, 1.442695
    %v699 = vpow.pop %v698
    %v700 = vsel %vm61, %v693, 0.0
    %701 = vadd.xlane.f32.xlu0 %v700
    %v702 = vpop.xlane.xlu0 %701
    %v703 = vsel %vm61, %v695, 0.0
    %704 = vadd.xlane.f32.xlu0 %v703
    %v705 = vpop.xlane.xlu0 %704
    %v706 = vsel %vm61, %v697, 0.0
    %707 = vadd.xlane.f32.xlu0 %v706
    %v708 = vpop.xlane.xlu0 %707
    %v709 = vsel %vm61, %v699, 0.0
    %710 = vadd.xlane.f32.xlu0 %v709
    %v711 = vpop.xlane.xlu0 %710
    %v712 = vrcp.pop %v702
    %v713 = vmul.f32 1.0, %v712
    %v714 = vrcp.pop %v705
    %v715 = vmul.f32 1.0, %v714
    %v716 = vrcp.pop %v708
    %v717 = vmul.f32 1.0, %v716
    %v718 = vrcp.pop %v711
    %v719 = vmul.f32 1.0, %v718
    %v721 = vsel %vm61, %v693, 0
    %v724 = vsel %vm61, %v695, 0
    %v727 = vsel %vm61, %v697, 0
    %v730 = vsel %vm61, %v699, 0
    %732 = vmatprep.subr.mxu0 0.0
    %733 = vmatpush1.msra.mxu0 0.0
    %734 = vmatprep.subr.mxu0 0.0
    %735 = vmatpush1.msra.mxu0 0.0
    %736 = vmatprep.subr.mxu0 0.0
    %737 = vmatpush1.msra.mxu0 0.0
    %738 = vmatprep.subr.mxu0 0.0
    %739 = vmatpush1.msra.mxu0 0.0
    %740 = vmatprep.subr.mxu0 0.0
    %741 = vmatpush1.msra.mxu0 0.0
    %742 = vmatprep.subr.mxu0 0.0
    %743 = vmatpush1.msra.mxu0 0.0
    %744 = vmatprep.subr.mxu0 0.0
    %745 = vmatpush1.msra.mxu0 0.0
    %746 = vmatprep.subr.mxu0 0.0
    %747 = vmatpush1.msra.mxu0 0.0
    %748 = vmatprep.subr.mxu0 0.0
    %749 = vmatpush1.msra.mxu0 0.0
    %750 = vmatprep.subr.mxu0 0.0
    %751 = vmatpush1.msra.mxu0 0.0
    %752 = vmatprep.subr.mxu0 0.0
    %753 = vmatpush1.msra.mxu0 0.0
    %754 = vmatprep.subr.mxu0 0.0
    %755 = vmatpush1.msra.mxu0 0.0
    %756 = vmatprep.subr.mxu0 0.0
    %757 = vmatpush1.msra.mxu0 %v543
    %758 = vmatprep.subr.mxu0 0.0
    %759 = vmatpush1.msra.mxu0 %v538
    %760 = vmatprep.subr.mxu0 0.0
    %761 = vmatpush1.msra.mxu0 %v533
    %762 = vmatprep.subr.mxu0 0.0
    %763 = vmatpush1.msra.mxu0 %v528
    %764 = vmatprep.subr.mxu0 0.0
    %765 = vmatpush2.msra.mxu0 0.0
    %766 = vmatprep.subr.mxu0 0.0
    %767 = vmatpush2.msra.mxu0 0.0
    %768 = vmatprep.subr.mxu0 0.0
    %769 = vmatpush2.msra.mxu0 0.0
    %770 = vmatprep.subr.mxu0 0.0
    %771 = vmatpush2.msra.mxu0 0.0
    %772 = vmatprep.subr.mxu0 0.0
    %773 = vmatpush2.msra.mxu0 0.0
    %774 = vmatprep.subr.mxu0 0.0
    %775 = vmatpush2.msra.mxu0 0.0
    %776 = vmatprep.subr.mxu0 0.0
    %777 = vmatpush2.msra.mxu0 0.0
    %778 = vmatprep.subr.mxu0 0.0
    %779 = vmatpush2.msra.mxu0 0.0
    %780 = vmatprep.subr.mxu0 0.0
    %781 = vmatpush2.msra.mxu0 0.0
    %782 = vmatprep.subr.mxu0 0.0
    %783 = vmatpush2.msra.mxu0 0.0
    %784 = vmatprep.subr.mxu0 0.0
    %785 = vmatpush2.msra.mxu0 0.0
    %786 = vmatprep.subr.mxu0 0.0
    %787 = vmatpush2.msra.mxu0 0.0
    %788 = vmatprep.subr.mxu0 0.0
    %789 = vmatpush2.msra.mxu0 0.0
    %790 = vmatprep.subr.mxu0 0.0
    %791 = vmatpush2.msra.mxu0 0.0
    %792 = vmatprep.subr.mxu0 0.0
    %793 = vmatpush2.msra.mxu0 0.0
    %794 = vmatprep.subr.mxu0 0.0
    %795 = vmatpush2.msra.mxu0 0.0
    %796 = vmatprep.mubr.f32.mxu0 0.0
    %797 = vmatmul.mubr.f32.gmra.mxu0 %v721
    %v798 = vpop.f32.mrf.mxu0
    %v799 = vadd.f32 0.0, %v798
    %v800 = vpop.f32.mrf.mxu0
    %801 = vmatprep.mubr.f32.mxu0 0.0
    %802 = vmatmul.mubr.f32.gmra.mxu0 %v724
    %v803 = vpop.f32.mrf.mxu0
    %v804 = vadd.f32 0.0, %v803
    %v805 = vpop.f32.mrf.mxu0
    %806 = vmatprep.mubr.f32.mxu0 0.0
    %807 = vmatmul.mubr.f32.gmra.mxu0 %v727
    %v808 = vpop.f32.mrf.mxu0
    %v809 = vadd.f32 0.0, %v808
    %v810 = vpop.f32.mrf.mxu0
    %811 = vmatprep.mubr.f32.mxu0 0.0
    %812 = vmatmul.mubr.f32.gmra.mxu0 %v730
    %v813 = vpop.f32.mrf.mxu0
    %v814 = vadd.f32 0.0, %v813
    %v815 = vpop.f32.mrf.mxu0
    %816 = vdwg.mxu0
    %v817 = vmul.f32 %v799, %v713
    %v818 = vmul.f32 %v804, %v715
    %v819 = vmul.f32 %v809, %v717
    %v820 = vmul.f32 %v814, %v719
    %v821 = vlaneseq
    %v822 = vshrl.u32 %v821, 7
    %v823 = vsub.s32 5, %v822
    %v824 = vrot.slane %v51, %v823
    %v825 = vadd.f32 %v817, %v824
    %v826 = vadd.f32 %v818, %v824
    %v827 = vadd.f32 %v819, %v824
    %v828 = vadd.f32 %v820, %v824
    %v829 = vmax.f32 %v825, 0.0
    %v830 = vmax.f32 %v826, 0.0
    %v831 = vmax.f32 %v827, 0.0
    %v832 = vmax.f32 %v828, 0.0
    %v833 = vld [vmem:[%s2 + $0x40] sm:$0xff]
    %v834 = vld [vmem:[%s2 + $0x48] sm:$0xff]
    %v836 = vsel %vm547, %v829, 0
    %v839 = vsel %vm547, %v830, 0
    %v842 = vsel %vm547, %v831, 0
    %v845 = vsel %vm547, %v832, 0
    %847 = vmatprep.subr.mxu0 0.0
    %848 = vmatpush1.msra.mxu0 0.0
    %849 = vmatprep.subr.mxu0 0.0
    %850 = vmatpush1.msra.mxu0 0.0
    %851 = vmatprep.subr.mxu0 0.0
    %852 = vmatpush1.msra.mxu0 0.0
    %853 = vmatprep.subr.mxu0 0.0
    %854 = vmatpush1.msra.mxu0 0.0
    %855 = vmatprep.subr.mxu0 0.0
    %856 = vmatpush1.msra.mxu0 0.0
    %857 = vmatprep.subr.mxu0 0.0
    %858 = vmatpush1.msra.mxu0 0.0
    %859 = vmatprep.subr.mxu0 0.0
    %860 = vmatpush1.msra.mxu0 0.0
    %861 = vmatprep.subr.mxu0 0.0
    %862 = vmatpush1.msra.mxu0 0.0
    %863 = vmatprep.subr.mxu0 0.0
    %864 = vmatpush1.msra.mxu0 0.0
    %865 = vmatprep.subr.mxu0 0.0
    %866 = vmatpush1.msra.mxu0 0.0
    %867 = vmatprep.subr.mxu0 0.0
    %868 = vmatpush1.msra.mxu0 0.0
    %869 = vmatprep.subr.mxu0 0.0
    %870 = vmatpush1.msra.mxu0 0.0
    %871 = vmatprep.subr.mxu0 0.0
    %872 = vmatpush1.msra.mxu0 0.0
    %873 = vmatprep.subr.mxu0 0.0
    %874 = vmatpush1.msra.mxu0 0.0
    %875 = vmatprep.subr.mxu0 0.0
    %876 = vmatpush1.msra.mxu0 %v834
    %877 = vmatprep.subr.mxu0 0.0
    %878 = vmatpush1.msra.mxu0 %v833
    %879 = vmatprep.subr.mxu0 0.0
    %880 = vmatpush2.msra.mxu0 0.0
    %881 = vmatprep.subr.mxu0 0.0
    %882 = vmatpush2.msra.mxu0 0.0
    %883 = vmatprep.subr.mxu0 0.0
    %884 = vmatpush2.msra.mxu0 0.0
    %885 = vmatprep.subr.mxu0 0.0
    %886 = vmatpush2.msra.mxu0 0.0
    %887 = vmatprep.subr.mxu0 0.0
    %888 = vmatpush2.msra.mxu0 0.0
    %889 = vmatprep.subr.mxu0 0.0
    %890 = vmatpush2.msra.mxu0 0.0
    %891 = vmatprep.subr.mxu0 0.0
    %892 = vmatpush2.msra.mxu0 0.0
    %893 = vmatprep.subr.mxu0 0.0
    %894 = vmatpush2.msra.mxu0 0.0
    %895 = vmatprep.subr.mxu0 0.0
    %896 = vmatpush2.msra.mxu0 0.0
    %897 = vmatprep.subr.mxu0 0.0
    %898 = vmatpush2.msra.mxu0 0.0
    %899 = vmatprep.subr.mxu0 0.0
    %900 = vmatpush2.msra.mxu0 0.0
    %901 = vmatprep.subr.mxu0 0.0
    %902 = vmatpush2.msra.mxu0 0.0
    %903 = vmatprep.subr.mxu0 0.0
    %904 = vmatpush2.msra.mxu0 0.0
    %905 = vmatprep.subr.mxu0 0.0
    %906 = vmatpush2.msra.mxu0 0.0
    %907 = vmatprep.subr.mxu0 0.0
    %908 = vmatpush2.msra.mxu0 0.0
    %909 = vmatprep.subr.mxu0 0.0
    %910 = vmatpush2.msra.mxu0 0.0
    %911 = vmatprep.mubr.f32.mxu0 0.0
    %912 = vmatmul.mubr.f32.gmra.mxu0 %v836
    %v913 = vpop.f32.mrf.mxu0
    %v914 = vadd.f32 0.0, %v913
    %v915 = vpop.f32.mrf.mxu0
    %916 = vmatprep.mubr.f32.mxu0 0.0
    %917 = vmatmul.mubr.f32.gmra.mxu0 %v839
    %v918 = vpop.f32.mrf.mxu0
    %v919 = vadd.f32 0.0, %v918
    %v920 = vpop.f32.mrf.mxu0
    %921 = vmatprep.mubr.f32.mxu0 0.0
    %922 = vmatmul.mubr.f32.gmra.mxu0 %v842
    %v923 = vpop.f32.mrf.mxu0
    %v924 = vadd.f32 0.0, %v923
    %v925 = vpop.f32.mrf.mxu0
    %926 = vmatprep.mubr.f32.mxu0 0.0
    %927 = vmatmul.mubr.f32.gmra.mxu0 %v845
    %v928 = vpop.f32.mrf.mxu0
    %v929 = vadd.f32 0.0, %v928
    %v930 = vpop.f32.mrf.mxu0
    %931 = vdwg.mxu0
    %v932 = vrot.slane %v51, 6
    %vm933 = vcmask 64512
    %v934 = vsel %vm933, %v932, 0
    %v937 = vsel %vm933, %v914, 0
    %v940 = vsel %vm933, %v919, 0
    %v943 = vsel %vm933, %v924, 0
    %v946 = vsel %vm933, %v929, 0
    %948 = vmatprep.subr.mxu0 0.0
    %949 = vmatpush1.xpose.msra.mxu0 0.0
    %950 = vmatprep.subr.mxu0 0.0
    %951 = vmatpush1.xpose.msra.mxu0 0.0
    %952 = vmatprep.subr.mxu0 0.0
    %953 = vmatpush1.xpose.msra.mxu0 0.0
    %954 = vmatprep.subr.mxu0 0.0
    %955 = vmatpush1.xpose.msra.mxu0 0.0
    %956 = vmatprep.subr.mxu0 0.0
    %957 = vmatpush1.xpose.msra.mxu0 0.0
    %958 = vmatprep.subr.mxu0 0.0
    %959 = vmatpush1.xpose.msra.mxu0 0.0
    %960 = vmatprep.subr.mxu0 0.0
    %961 = vmatpush1.xpose.msra.mxu0 0.0
    %962 = vmatprep.subr.mxu0 0.0
    %963 = vmatpush1.xpose.msra.mxu0 0.0
    %964 = vmatprep.subr.mxu0 0.0
    %965 = vmatpush1.xpose.msra.mxu0 0.0
    %966 = vmatprep.subr.mxu0 0.0
    %967 = vmatpush1.xpose.msra.mxu0 0.0
    %968 = vmatprep.subr.mxu0 0.0
    %969 = vmatpush1.xpose.msra.mxu0 0.0
    %970 = vmatprep.subr.mxu0 0.0
    %971 = vmatpush1.xpose.msra.mxu0 0.0
    %972 = vmatprep.subr.mxu0 0.0
    %973 = vmatpush1.xpose.msra.mxu0 %v946
    %974 = vmatprep.subr.mxu0 0.0
    %975 = vmatpush1.xpose.msra.mxu0 %v943
    %976 = vmatprep.subr.mxu0 0.0
    %977 = vmatpush1.xpose.msra.mxu0 %v940
    %978 = vmatprep.subr.mxu0 0.0
    %979 = vmatpush1.xpose.msra.mxu0 %v937
    %980 = vmatprep.subr.mxu0 0.0
    %981 = vmatpush2.xpose.msra.mxu0 0.0
    %982 = vmatprep.subr.mxu0 0.0
    %983 = vmatpush2.xpose.msra.mxu0 0.0
    %984 = vmatprep.subr.mxu0 0.0
    %985 = vmatpush2.xpose.msra.mxu0 0.0
    %986 = vmatprep.subr.mxu0 0.0
    %987 = vmatpush2.xpose.msra.mxu0 0.0
    %988 = vmatprep.subr.mxu0 0.0
    %989 = vmatpush2.xpose.msra.mxu0 0.0
    %990 = vmatprep.subr.mxu0 0.0
    %991 = vmatpush2.xpose.msra.mxu0 0.0
    %992 = vmatprep.subr.mxu0 0.0
    %993 = vmatpush2.xpose.msra.mxu0 0.0
    %994 = vmatprep.subr.mxu0 0.0
    %995 = vmatpush2.xpose.msra.mxu0 0.0
    %996 = vmatprep.subr.mxu0 0.0
    %997 = vmatpush2.xpose.msra.mxu0 0.0
    %998 = vmatprep.subr.mxu0 0.0
    %999 = vmatpush2.xpose.msra.mxu0 0.0
    %1000 = vmatprep.subr.mxu0 0.0
    %1001 = vmatpush2.xpose.msra.mxu0 0.0
    %1002 = vmatprep.subr.mxu0 0.0
    %1003 = vmatpush2.xpose.msra.mxu0 0.0
    %1004 = vmatprep.subr.mxu0 0.0
    %1005 = vmatpush2.xpose.msra.mxu0 0.0
    %1006 = vmatprep.subr.mxu0 0.0
    %1007 = vmatpush2.xpose.msra.mxu0 0.0
    %1008 = vmatprep.subr.mxu0 0.0
    %1009 = vmatpush2.xpose.msra.mxu0 0.0
    %1010 = vmatprep.subr.mxu0 0.0
    %1011 = vmatpush2.xpose.msra.mxu0 0.0
    %1012 = vmatprep.mubr.f32.mxu0 0.0
    %1013 = vmatmul.mubr.f32.gmra.mxu0 %v934
    %v1014 = vpop.f32.mrf.mxu0
    %v1015 = vadd.f32 0.0, %v1014
    %v1016 = vpop.f32.mrf.mxu0
    %1017 = vdwg.mxu0
    %v1018 = vlaneseq
    %v1019 = vshrl.u32 %v1018, 7
    %v1020 = vsub.s32 7, %v1019
    %v1021 = vrot.slane %v51, %v1020
    %v1022 = vmul.f32 %v914, %v1021
    %v1023 = vmul.f32 %v919, %v1021
    %v1024 = vmul.f32 %v924, %v1021
    %v1025 = vmul.f32 %v929, %v1021
    %v1026 = vsel %vm933, %v1022, 0.0
    %1027 = vadd.xlane.f32.xlu0 %v1026
    %v1028 = vpop.xlane.xlu0 %1027
    %v1029 = vsel %vm933, %v1023, 0.0
    %1030 = vadd.xlane.f32.xlu0 %v1029
    %v1031 = vpop.xlane.xlu0 %1030
    %v1032 = vsel %vm933, %v1024, 0.0
    %1033 = vadd.xlane.f32.xlu0 %v1032
    %v1034 = vpop.xlane.xlu0 %1033
    %v1035 = vsel %vm933, %v1025, 0.0
    %1036 = vadd.xlane.f32.xlu0 %v1035
    %v1037 = vpop.xlane.xlu0 %1036
    %v1038 = vlaneseq
    %v1039 = vshrl.u32 %v1038, 7
    %v1040 = vsub.s32 0, %v1039
    %v1041 = vrot.slane %v1015, %v1040
    %v1042 = vadd.f32 %v1028, %v1041
    %v1043 = vadd.f32 %v1031, %v1041
    %v1044 = vadd.f32 %v1034, %v1041
    %v1045 = vadd.f32 %v1037, %v1041
    %vm1046 = vcmp.gt.f32.partialorder %v1042, 0.0
    %vm1047 = vcmp.gt.f32.partialorder %v1043, 0.0
    %vm1048 = vcmp.gt.f32.partialorder %v1044, 0.0
    %vm1049 = vcmp.gt.f32.partialorder %v1045, 0.0
    %v1050 = vmul.f32 %v1042, 0.2
    %v1051 = vmul.f32 %v1043, 0.2
    %v1052 = vmul.f32 %v1044, 0.2
    %v1053 = vmul.f32 %v1045, 0.2
    %v1054 = vsel %vm1046, %v1042, %v1050
    %v1055 = vsel %vm1047, %v1043, %v1051
    %v1056 = vsel %vm1048, %v1044, %v1052
    %v1057 = vsel %vm1049, %v1045, %v1053
    %v1058 = vsel %vm47, %v1054, -1e+30
    %v1059 = vsel %vm48, %v1055, -1e+30
    %v1060 = vsel %vm49, %v1056, -1e+30
    %v1061 = vsel %vm50, %v1057, -1e+30
    %v1062 = vsel %vm61, %v1058, -inf
    %1063 = vmax.xlane.f32.xlu0 %v1062
    %v1064 = vpop.xlane.xlu0 %1063
    %v1065 = vsel %vm61, %v1059, -inf
    %1066 = vmax.xlane.f32.xlu0 %v1065
    %v1067 = vpop.xlane.xlu0 %1066
    %v1068 = vsel %vm61, %v1060, -inf
    %1069 = vmax.xlane.f32.xlu0 %v1068
    %v1070 = vpop.xlane.xlu0 %1069
    %v1071 = vsel %vm61, %v1061, -inf
    %1072 = vmax.xlane.f32.xlu0 %v1071
    %v1073 = vpop.xlane.xlu0 %1072
    %v1074 = vsub.f32 %v1058, %v1064
    %v1075 = vsub.f32 %v1059, %v1067
    %v1076 = vsub.f32 %v1060, %v1070
    %v1077 = vsub.f32 %v1061, %v1073
    %v1078 = vmul.f32 %v1074, 1.442695
    %v1079 = vpow.pop %v1078
    %v1080 = vmul.f32 %v1075, 1.442695
    %v1081 = vpow.pop %v1080
    %v1082 = vmul.f32 %v1076, 1.442695
    %v1083 = vpow.pop %v1082
    %v1084 = vmul.f32 %v1077, 1.442695
    %v1085 = vpow.pop %v1084
    %v1086 = vsel %vm61, %v1079, 0.0
    %1087 = vadd.xlane.f32.xlu0 %v1086
    %v1088 = vpop.xlane.xlu0 %1087
    %v1089 = vsel %vm61, %v1081, 0.0
    %1090 = vadd.xlane.f32.xlu0 %v1089
    %v1091 = vpop.xlane.xlu0 %1090
    %v1092 = vsel %vm61, %v1083, 0.0
    %1093 = vadd.xlane.f32.xlu0 %v1092
    %v1094 = vpop.xlane.xlu0 %1093
    %v1095 = vsel %vm61, %v1085, 0.0
    %1096 = vadd.xlane.f32.xlu0 %v1095
    %v1097 = vpop.xlane.xlu0 %1096
    %v1098 = vrcp.pop %v1088
    %v1099 = vmul.f32 1.0, %v1098
    %v1100 = vrcp.pop %v1091
    %v1101 = vmul.f32 1.0, %v1100
    %v1102 = vrcp.pop %v1094
    %v1103 = vmul.f32 1.0, %v1102
    %v1104 = vrcp.pop %v1097
    %v1105 = vmul.f32 1.0, %v1104
    %v1107 = vsel %vm61, %v1079, 0
    %v1110 = vsel %vm61, %v1081, 0
    %v1113 = vsel %vm61, %v1083, 0
    %v1116 = vsel %vm61, %v1085, 0
    %1118 = vmatprep.subr.mxu0 0.0
    %1119 = vmatpush1.msra.mxu0 0.0
    %1120 = vmatprep.subr.mxu0 0.0
    %1121 = vmatpush1.msra.mxu0 0.0
    %1122 = vmatprep.subr.mxu0 0.0
    %1123 = vmatpush1.msra.mxu0 0.0
    %1124 = vmatprep.subr.mxu0 0.0
    %1125 = vmatpush1.msra.mxu0 0.0
    %1126 = vmatprep.subr.mxu0 0.0
    %1127 = vmatpush1.msra.mxu0 0.0
    %1128 = vmatprep.subr.mxu0 0.0
    %1129 = vmatpush1.msra.mxu0 0.0
    %1130 = vmatprep.subr.mxu0 0.0
    %1131 = vmatpush1.msra.mxu0 0.0
    %1132 = vmatprep.subr.mxu0 0.0
    %1133 = vmatpush1.msra.mxu0 0.0
    %1134 = vmatprep.subr.mxu0 0.0
    %1135 = vmatpush1.msra.mxu0 0.0
    %1136 = vmatprep.subr.mxu0 0.0
    %1137 = vmatpush1.msra.mxu0 0.0
    %1138 = vmatprep.subr.mxu0 0.0
    %1139 = vmatpush1.msra.mxu0 0.0
    %1140 = vmatprep.subr.mxu0 0.0
    %1141 = vmatpush1.msra.mxu0 0.0
    %1142 = vmatprep.subr.mxu0 0.0
    %1143 = vmatpush1.msra.mxu0 %v929
    %1144 = vmatprep.subr.mxu0 0.0
    %1145 = vmatpush1.msra.mxu0 %v924
    %1146 = vmatprep.subr.mxu0 0.0
    %1147 = vmatpush1.msra.mxu0 %v919
    %1148 = vmatprep.subr.mxu0 0.0
    %1149 = vmatpush1.msra.mxu0 %v914
    %1150 = vmatprep.subr.mxu0 0.0
    %1151 = vmatpush2.msra.mxu0 0.0
    %1152 = vmatprep.subr.mxu0 0.0
    %1153 = vmatpush2.msra.mxu0 0.0
    %1154 = vmatprep.subr.mxu0 0.0
    %1155 = vmatpush2.msra.mxu0 0.0
    %1156 = vmatprep.subr.mxu0 0.0
    %1157 = vmatpush2.msra.mxu0 0.0
    %1158 = vmatprep.subr.mxu0 0.0
    %1159 = vmatpush2.msra.mxu0 0.0
    %1160 = vmatprep.subr.mxu0 0.0
    %1161 = vmatpush2.msra.mxu0 0.0
    %1162 = vmatprep.subr.mxu0 0.0
    %1163 = vmatpush2.msra.mxu0 0.0
    %1164 = vmatprep.subr.mxu0 0.0
    %1165 = vmatpush2.msra.mxu0 0.0
    %1166 = vmatprep.subr.mxu0 0.0
    %1167 = vmatpush2.msra.mxu0 0.0
    %1168 = vmatprep.subr.mxu0 0.0
    %1169 = vmatpush2.msra.mxu0 0.0
    %1170 = vmatprep.subr.mxu0 0.0
    %1171 = vmatpush2.msra.mxu0 0.0
    %1172 = vmatprep.subr.mxu0 0.0
    %1173 = vmatpush2.msra.mxu0 0.0
    %1174 = vmatprep.subr.mxu0 0.0
    %1175 = vmatpush2.msra.mxu0 0.0
    %1176 = vmatprep.subr.mxu0 0.0
    %1177 = vmatpush2.msra.mxu0 0.0
    %1178 = vmatprep.subr.mxu0 0.0
    %1179 = vmatpush2.msra.mxu0 0.0
    %1180 = vmatprep.subr.mxu0 0.0
    %1181 = vmatpush2.msra.mxu0 0.0
    %1182 = vmatprep.mubr.f32.mxu0 0.0
    %1183 = vmatmul.mubr.f32.gmra.mxu0 %v1107
    %v1184 = vpop.f32.mrf.mxu0
    %v1185 = vadd.f32 0.0, %v1184
    %v1186 = vpop.f32.mrf.mxu0
    %1187 = vmatprep.mubr.f32.mxu0 0.0
    %1188 = vmatmul.mubr.f32.gmra.mxu0 %v1110
    %v1189 = vpop.f32.mrf.mxu0
    %v1190 = vadd.f32 0.0, %v1189
    %v1191 = vpop.f32.mrf.mxu0
    %1192 = vmatprep.mubr.f32.mxu0 0.0
    %1193 = vmatmul.mubr.f32.gmra.mxu0 %v1113
    %v1194 = vpop.f32.mrf.mxu0
    %v1195 = vadd.f32 0.0, %v1194
    %v1196 = vpop.f32.mrf.mxu0
    %1197 = vmatprep.mubr.f32.mxu0 0.0
    %1198 = vmatmul.mubr.f32.gmra.mxu0 %v1116
    %v1199 = vpop.f32.mrf.mxu0
    %v1200 = vadd.f32 0.0, %v1199
    %v1201 = vpop.f32.mrf.mxu0
    %1202 = vdwg.mxu0
    %v1203 = vmul.f32 %v1185, %v1099
    %v1204 = vmul.f32 %v1190, %v1101
    %v1205 = vmul.f32 %v1195, %v1103
    %v1206 = vmul.f32 %v1200, %v1105
    %v1207 = vlaneseq
    %v1208 = vshrl.u32 %v1207, 7
    %v1209 = vsub.s32 0, %v1208
    %v1210 = vrot.slane %v52, %v1209
    %v1211 = vadd.f32 %v1203, %v1210
    %v1212 = vadd.f32 %v1204, %v1210
    %v1213 = vadd.f32 %v1205, %v1210
    %v1214 = vadd.f32 %v1206, %v1210
    %v1215 = vmax.f32 %v1211, 0.0
    %v1216 = vmax.f32 %v1212, 0.0
    %v1217 = vmax.f32 %v1213, 0.0
    %v1218 = vmax.f32 %v1214, 0.0
    %v1219 = vsel %vm61, %v441, inf
    %1220 = vmin.xlane.f32.xlu0 %v1219
    %v1221 = vpop.xlane.xlu0 %1220
    %v1222 = vsel %vm61, %v442, inf
    %1223 = vmin.xlane.f32.xlu0 %v1222
    %v1224 = vpop.xlane.xlu0 %1223
    %v1225 = vsel %vm61, %v441, -inf
    %1226 = vmax.xlane.f32.xlu0 %v1225
    %v1227 = vpop.xlane.xlu0 %1226
    %v1228 = vsel %vm61, %v442, -inf
    %1229 = vmax.xlane.f32.xlu0 %v1228
    %v1230 = vpop.xlane.xlu0 %1229
    %v1231 = vsub.f32 %v1227, %v1221
    %v1232 = vsub.f32 %v1230, %v1224
    %vm1233 = vcmp.eq.f32.partialorder %v1231, 0.0
    %vm1234 = vcmp.eq.f32.partialorder %v1232, 0.0
    %v1235 = vsel %vm1233, 1.0, %v1231
    %v1236 = vsel %vm1234, 1.0, %v1232
    %v1237 = vsub.f32 %v441, %v1221
    %v1238 = vsub.f32 %v442, %v1224
    %v1239 = vrcp.pop %v1235
    %v1240 = vmul.f32 1.0, %v1239
    %v1241 = vrcp.pop %v1236
    %v1242 = vmul.f32 1.0, %v1241
    %v1243 = vmul.f32 %v1237, %v1240
    %v1244 = vmul.f32 %v1238, %v1242
    %v1246 = vsel %vm61, %v1243, 0
    %v1249 = vsel %vm61, %v1244, 0
    %1251 = vmatprep.subr.mxu0 0.0
    %1252 = vmatpush1.xpose.msra.mxu0 0.0
    %1253 = vmatprep.subr.mxu0 0.0
    %1254 = vmatpush1.xpose.msra.mxu0 0.0
    %1255 = vmatprep.subr.mxu0 0.0
    %1256 = vmatpush1.xpose.msra.mxu0 0.0
    %1257 = vmatprep.subr.mxu0 0.0
    %1258 = vmatpush1.xpose.msra.mxu0 0.0
    %1259 = vmatprep.subr.mxu0 0.0
    %1260 = vmatpush1.xpose.msra.mxu0 0.0
    %1261 = vmatprep.subr.mxu0 0.0
    %1262 = vmatpush1.xpose.msra.mxu0 0.0
    %1263 = vmatprep.subr.mxu0 0.0
    %1264 = vmatpush1.xpose.msra.mxu0 0.0
    %1265 = vmatprep.subr.mxu0 0.0
    %1266 = vmatpush1.xpose.msra.mxu0 0.0
    %1267 = vmatprep.subr.mxu0 0.0
    %1268 = vmatpush1.xpose.msra.mxu0 0.0
    %1269 = vmatprep.subr.mxu0 0.0
    %1270 = vmatpush1.xpose.msra.mxu0 0.0
    %1271 = vmatprep.subr.mxu0 0.0
    %1272 = vmatpush1.xpose.msra.mxu0 0.0
    %1273 = vmatprep.subr.mxu0 0.0
    %1274 = vmatpush1.xpose.msra.mxu0 0.0
    %1275 = vmatprep.subr.mxu0 0.0
    %1276 = vmatpush1.xpose.msra.mxu0 0.0
    %1277 = vmatprep.subr.mxu0 0.0
    %1278 = vmatpush1.xpose.msra.mxu0 0.0
    %1279 = vmatprep.subr.mxu0 0.0
    %1280 = vmatpush1.xpose.msra.mxu0 %v1249
    %1281 = vmatprep.subr.mxu0 0.0
    %1282 = vmatpush1.xpose.msra.mxu0 %v1246
    %1283 = vmatprep.subr.mxu0 0.0
    %1284 = vmatpush2.xpose.msra.mxu0 0.0
    %1285 = vmatprep.subr.mxu0 0.0
    %1286 = vmatpush2.xpose.msra.mxu0 0.0
    %1287 = vmatprep.subr.mxu0 0.0
    %1288 = vmatpush2.xpose.msra.mxu0 0.0
    %1289 = vmatprep.subr.mxu0 0.0
    %1290 = vmatpush2.xpose.msra.mxu0 0.0
    %1291 = vmatprep.subr.mxu0 0.0
    %1292 = vmatpush2.xpose.msra.mxu0 0.0
    %1293 = vmatprep.subr.mxu0 0.0
    %1294 = vmatpush2.xpose.msra.mxu0 0.0
    %1295 = vmatprep.subr.mxu0 0.0
    %1296 = vmatpush2.xpose.msra.mxu0 0.0
    %1297 = vmatprep.subr.mxu0 0.0
    %1298 = vmatpush2.xpose.msra.mxu0 0.0
    %1299 = vmatprep.subr.mxu0 0.0
    %1300 = vmatpush2.xpose.msra.mxu0 0.0
    %1301 = vmatprep.subr.mxu0 0.0
    %1302 = vmatpush2.xpose.msra.mxu0 0.0
    %1303 = vmatprep.subr.mxu0 0.0
    %1304 = vmatpush2.xpose.msra.mxu0 0.0
    %1305 = vmatprep.subr.mxu0 0.0
    %1306 = vmatpush2.xpose.msra.mxu0 0.0
    %1307 = vmatprep.subr.mxu0 0.0
    %1308 = vmatpush2.xpose.msra.mxu0 0.0
    %1309 = vmatprep.subr.mxu0 0.0
    %1310 = vmatpush2.xpose.msra.mxu0 0.0
    %1311 = vmatprep.subr.mxu0 0.0
    %1312 = vmatpush2.xpose.msra.mxu0 0.0
    %1313 = vmatprep.subr.mxu0 0.0
    %1314 = vmatpush2.xpose.msra.mxu0 0.0
    %1315 = vmatprep.mubr.f32.mxu0 0.0
    %1316 = vmatmul.mubr.f32.gmra.mxu0 %v1246
    %v1317 = vpop.f32.mrf.mxu0
    %v1318 = vadd.f32 0.0, %v1317
    %v1319 = vpop.f32.mrf.mxu0
    %1320 = vmatprep.mubr.f32.mxu0 0.0
    %1321 = vmatmul.mubr.f32.gmra.mxu0 %v1249
    %v1322 = vpop.f32.mrf.mxu0
    %v1323 = vadd.f32 0.0, %v1322
    %v1324 = vpop.f32.mrf.mxu0
    %1325 = vdwg.mxu0
    %v1326 = vmul.f32 %v1243, %v1243
    %v1327 = vmul.f32 %v1244, %v1244
    %v1328 = vsel %vm61, %v1326, 0.0
    %1329 = vadd.xlane.f32.xlu0 %v1328
    %v1330 = vpop.xlane.xlu0 %1329
    %v1331 = vsel %vm61, %v1327, 0.0
    %1332 = vadd.xlane.f32.xlu0 %v1331
    %v1333 = vpop.xlane.xlu0 %1332
    %vm1334 = vcmask 7168
    %v1335 = vsel %vm1334, %v1330, 0.0
    %v1336 = vsel %vm1334, %v1333, 0.0
    %v1337 = vadd.f32 %v1335, %v1336
    %1338 = vadd.xlane.f32.xlu0 %v1337
    %v1339 = vpop.xlane.xlu0 %1338
    %v1340 = vrot.slane %v1339, 4
    %v1341 = vadd.f32 %v1339, %v1340
    %v1342 = vrot.slane %v1341, 2
    %v1343 = vadd.f32 %v1341, %v1342
    %v1344 = vrot.slane %v1343, 1
    %v1345 = vadd.f32 %v1343, %v1344
    %s1346 = vtos %v1345
    %v1347 = vrcp.pop 16.0
    %s1348 = vtos %v1347
    %s1349 = smul.f32 %s1346, %s1348
    %p1350 = scmp.eq.f32.partialorder %s1349, 0.0
    %s1351 = scalar_select %p1350, 1.0, %s1349
    %v1352 = vstv %s1351
    %v1353 = vrcp.pop %v1352
    %s1354 = vtos %v1353
    %v1355 = vstv %s1354
    %v1356 = vmul.f32 %v1318, %v1355
    %v1357 = vmul.f32 %v1323, %v1355
    %v1358 = vmul.f32 %v1330, %v1355
    %v1359 = vmul.f32 %v1333, %v1355
    %1360 = vxpose.xlu0.b32.start [1/16] %v1358, 128
    %1361 = vxpose.xlu0.b32.cont [2/16] %v1359, 128
    %1362 = vxpose.xlu0.b32.cont [3/16] 0.0, 128
    %1363 = vxpose.xlu0.b32.cont [4/16] 0.0, 128
    %1364 = vxpose.xlu0.b32.cont [5/16] 0.0, 128
    %1365 = vxpose.xlu0.b32.cont [6/16] 0.0, 128
    %1366 = vxpose.xlu0.b32.cont [7/16] 0.0, 128
    %1367 = vxpose.xlu0.b32.cont [8/16] 0.0, 128
    %1368 = vxpose.xlu0.b32.cont [9/16] 0.0, 128
    %1369 = vxpose.xlu0.b32.cont [10/16] 0.0, 128
    %1370 = vxpose.xlu0.b32.cont [11/16] 0.0, 128
    %1371 = vxpose.xlu0.b32.cont [12/16] 0.0, 128
    %1372 = vxpose.xlu0.b32.cont [13/16] 0.0, 128
    %1373 = vxpose.xlu0.b32.cont [14/16] 0.0, 128
    %1374 = vxpose.xlu0.b32.cont [15/16] 0.0, 128
    %1375 = vxpose.xlu0.b32.end [16/16] 0.0, 128
    %v1376 = vpop.trf.xlu0
    %v1377 = vpop.trf.xlu0
    %v1378 = vpop.trf.xlu0
    %v1379 = vpop.trf.xlu0
    %v1380 = vpop.trf.xlu0
    %v1381 = vpop.trf.xlu0
    %v1382 = vpop.trf.xlu0
    %v1383 = vpop.trf.xlu0
    %v1384 = vpop.trf.xlu0
    %v1385 = vpop.trf.xlu0
    %v1386 = vpop.trf.xlu0
    %v1387 = vpop.trf.xlu0
    %v1388 = vpop.trf.xlu0
    %v1389 = vpop.trf.xlu0
    %v1390 = vpop.trf.xlu0
    %v1391 = vpop.trf.xlu0
    %v1392 = vlaneseq
    %v1393 = vshrl.u32 %v1392, 7
    %v1394 = vsub.s32 0, %v1393
    %v1395 = vrot.slane %v1376, %v1394
    %v1396 = vadd.f32 %v1358, %v1395
    %v1397 = vadd.f32 %v1359, %v1395
    %v1398 = vmul.f32 %v1356, 2.0
    %v1399 = vmul.f32 %v1357, 2.0
    %v1400 = vsub.f32 %v1396, %v1398
    %v1401 = vsub.f32 %v1397, %v1399
    %v1402 = vmul.f32 %v1400, -0.5
    %v1403 = vmul.f32 %v1401, -0.5
    %v1404 = vmul.f32 %v1402, 1.442695
    %v1405 = vpow.pop %v1404
    %v1406 = vmul.f32 %v1403, 1.442695
    %v1407 = vpow.pop %v1406
    %v1408 = vsel %vm547, %v829, inf
    %1409 = vmin.xlane.f32.xlu0 %v1408
    %v1410 = vpop.xlane.xlu0 %1409
    %v1411 = vsel %vm547, %v830, inf
    %1412 = vmin.xlane.f32.xlu0 %v1411
    %v1413 = vpop.xlane.xlu0 %1412
    %v1414 = vsel %vm547, %v829, -inf
    %1415 = vmax.xlane.f32.xlu0 %v1414
    %v1416 = vpop.xlane.xlu0 %1415
    %v1417 = vsel %vm547, %v830, -inf
    %1418 = vmax.xlane.f32.xlu0 %v1417
    %v1419 = vpop.xlane.xlu0 %1418
    %v1420 = vsub.f32 %v1416, %v1410
    %v1421 = vsub.f32 %v1419, %v1413
    %vm1422 = vcmp.eq.f32.partialorder %v1420, 0.0
    %vm1423 = vcmp.eq.f32.partialorder %v1421, 0.0
    %v1424 = vsel %vm1422, 1.0, %v1420
    %v1425 = vsel %vm1423, 1.0, %v1421
    %v1426 = vsub.f32 %v829, %v1410
    %v1427 = vsub.f32 %v830, %v1413
    %v1428 = vrcp.pop %v1424
    %v1429 = vmul.f32 1.0, %v1428
    %v1430 = vrcp.pop %v1425
    %v1431 = vmul.f32 1.0, %v1430
    %v1432 = vmul.f32 %v1426, %v1429
    %v1433 = vmul.f32 %v1427, %v1431
    %v1435 = vsel %vm547, %v1432, 0
    %v1438 = vsel %vm547, %v1433, 0
    %1440 = vmatprep.subr.mxu0 0.0
    %1441 = vmatpush1.xpose.msra.mxu0 0.0
    %1442 = vmatprep.subr.mxu0 0.0
    %1443 = vmatpush1.xpose.msra.mxu0 0.0
    %1444 = vmatprep.subr.mxu0 0.0
    %1445 = vmatpush1.xpose.msra.mxu0 0.0
    %1446 = vmatprep.subr.mxu0 0.0
    %1447 = vmatpush1.xpose.msra.mxu0 0.0
    %1448 = vmatprep.subr.mxu0 0.0
    %1449 = vmatpush1.xpose.msra.mxu0 0.0
    %1450 = vmatprep.subr.mxu0 0.0
    %1451 = vmatpush1.xpose.msra.mxu0 0.0
    %1452 = vmatprep.subr.mxu0 0.0
    %1453 = vmatpush1.xpose.msra.mxu0 0.0
    %1454 = vmatprep.subr.mxu0 0.0
    %1455 = vmatpush1.xpose.msra.mxu0 0.0
    %1456 = vmatprep.subr.mxu0 0.0
    %1457 = vmatpush1.xpose.msra.mxu0 0.0
    %1458 = vmatprep.subr.mxu0 0.0
    %1459 = vmatpush1.xpose.msra.mxu0 0.0
    %1460 = vmatprep.subr.mxu0 0.0
    %1461 = vmatpush1.xpose.msra.mxu0 0.0
    %1462 = vmatprep.subr.mxu0 0.0
    %1463 = vmatpush1.xpose.msra.mxu0 0.0
    %1464 = vmatprep.subr.mxu0 0.0
    %1465 = vmatpush1.xpose.msra.mxu0 0.0
    %1466 = vmatprep.subr.mxu0 0.0
    %1467 = vmatpush1.xpose.msra.mxu0 0.0
    %1468 = vmatprep.subr.mxu0 0.0
    %1469 = vmatpush1.xpose.msra.mxu0 %v1438
    %1470 = vmatprep.subr.mxu0 0.0
    %1471 = vmatpush1.xpose.msra.mxu0 %v1435
    %1472 = vmatprep.subr.mxu0 0.0
    %1473 = vmatpush2.xpose.msra.mxu0 0.0
    %1474 = vmatprep.subr.mxu0 0.0
    %1475 = vmatpush2.xpose.msra.mxu0 0.0
    %1476 = vmatprep.subr.mxu0 0.0
    %1477 = vmatpush2.xpose.msra.mxu0 0.0
    %1478 = vmatprep.subr.mxu0 0.0
    %1479 = vmatpush2.xpose.msra.mxu0 0.0
    %1480 = vmatprep.subr.mxu0 0.0
    %1481 = vmatpush2.xpose.msra.mxu0 0.0
    %1482 = vmatprep.subr.mxu0 0.0
    %1483 = vmatpush2.xpose.msra.mxu0 0.0
    %1484 = vmatprep.subr.mxu0 0.0
    %1485 = vmatpush2.xpose.msra.mxu0 0.0
    %1486 = vmatprep.subr.mxu0 0.0
    %1487 = vmatpush2.xpose.msra.mxu0 0.0
    %1488 = vmatprep.subr.mxu0 0.0
    %1489 = vmatpush2.xpose.msra.mxu0 0.0
    %1490 = vmatprep.subr.mxu0 0.0
    %1491 = vmatpush2.xpose.msra.mxu0 0.0
    %1492 = vmatprep.subr.mxu0 0.0
    %1493 = vmatpush2.xpose.msra.mxu0 0.0
    %1494 = vmatprep.subr.mxu0 0.0
    %1495 = vmatpush2.xpose.msra.mxu0 0.0
    %1496 = vmatprep.subr.mxu0 0.0
    %1497 = vmatpush2.xpose.msra.mxu0 0.0
    %1498 = vmatprep.subr.mxu0 0.0
    %1499 = vmatpush2.xpose.msra.mxu0 0.0
    %1500 = vmatprep.subr.mxu0 0.0
    %1501 = vmatpush2.xpose.msra.mxu0 0.0
    %1502 = vmatprep.subr.mxu0 0.0
    %1503 = vmatpush2.xpose.msra.mxu0 0.0
    %1504 = vmatprep.mubr.f32.mxu0 0.0
    %1505 = vmatmul.mubr.f32.gmra.mxu0 %v1435
    %v1506 = vpop.f32.mrf.mxu0
    %v1507 = vadd.f32 0.0, %v1506
    %v1508 = vpop.f32.mrf.mxu0
    %1509 = vmatprep.mubr.f32.mxu0 0.0
    %1510 = vmatmul.mubr.f32.gmra.mxu0 %v1438
    %v1511 = vpop.f32.mrf.mxu0
    %v1512 = vadd.f32 0.0, %v1511
    %v1513 = vpop.f32.mrf.mxu0
    %1514 = vdwg.mxu0
    %v1515 = vmul.f32 %v1432, %v1432
    %v1516 = vmul.f32 %v1433, %v1433
    %v1517 = vsel %vm547, %v1515, 0.0
    %1518 = vadd.xlane.f32.xlu0 %v1517
    %v1519 = vpop.xlane.xlu0 %1518
    %v1520 = vsel %vm547, %v1516, 0.0
    %1521 = vadd.xlane.f32.xlu0 %v1520
    %v1522 = vpop.xlane.xlu0 %1521
    %v1523 = vsel %vm1334, %v1519, 0.0
    %v1524 = vsel %vm1334, %v1522, 0.0
    %v1525 = vadd.f32 %v1523, %v1524
    %1526 = vadd.xlane.f32.xlu0 %v1525
    %v1527 = vpop.xlane.xlu0 %1526
    %v1528 = vrot.slane %v1527, 4
    %v1529 = vadd.f32 %v1527, %v1528
    %v1530 = vrot.slane %v1529, 2
    %v1531 = vadd.f32 %v1529, %v1530
    %v1532 = vrot.slane %v1531, 1
    %v1533 = vadd.f32 %v1531, %v1532
    %s1534 = vtos %v1533
    %v1535 = vrcp.pop 16.0
    %s1536 = vtos %v1535
    %s1537 = smul.f32 %s1534, %s1536
    %p1538 = scmp.eq.f32.partialorder %s1537, 0.0
    %s1539 = scalar_select %p1538, 1.0, %s1537
    %v1540 = vstv %s1539
    %v1541 = vrcp.pop %v1540
    %s1542 = vtos %v1541
    %v1543 = vstv %s1542
    %v1544 = vmul.f32 %v1507, %v1543
    %v1545 = vmul.f32 %v1512, %v1543
    %v1546 = vmul.f32 %v1519, %v1543
    %v1547 = vmul.f32 %v1522, %v1543
    %1548 = vxpose.xlu0.b32.start [1/16] %v1546, 128
    %1549 = vxpose.xlu0.b32.cont [2/16] %v1547, 128
    %1550 = vxpose.xlu0.b32.cont [3/16] 0.0, 128
    %1551 = vxpose.xlu0.b32.cont [4/16] 0.0, 128
    %1552 = vxpose.xlu0.b32.cont [5/16] 0.0, 128
    %1553 = vxpose.xlu0.b32.cont [6/16] 0.0, 128
    %1554 = vxpose.xlu0.b32.cont [7/16] 0.0, 128
    %1555 = vxpose.xlu0.b32.cont [8/16] 0.0, 128
    %1556 = vxpose.xlu0.b32.cont [9/16] 0.0, 128
    %1557 = vxpose.xlu0.b32.cont [10/16] 0.0, 128
    %1558 = vxpose.xlu0.b32.cont [11/16] 0.0, 128
    %1559 = vxpose.xlu0.b32.cont [12/16] 0.0, 128
    %1560 = vxpose.xlu0.b32.cont [13/16] 0.0, 128
    %1561 = vxpose.xlu0.b32.cont [14/16] 0.0, 128
    %1562 = vxpose.xlu0.b32.cont [15/16] 0.0, 128
    %1563 = vxpose.xlu0.b32.end [16/16] 0.0, 128
    %v1564 = vpop.trf.xlu0
    %v1565 = vpop.trf.xlu0
    %v1566 = vpop.trf.xlu0
    %v1567 = vpop.trf.xlu0
    %v1568 = vpop.trf.xlu0
    %v1569 = vpop.trf.xlu0
    %v1570 = vpop.trf.xlu0
    %v1571 = vpop.trf.xlu0
    %v1572 = vpop.trf.xlu0
    %v1573 = vpop.trf.xlu0
    %v1574 = vpop.trf.xlu0
    %v1575 = vpop.trf.xlu0
    %v1576 = vpop.trf.xlu0
    %v1577 = vpop.trf.xlu0
    %v1578 = vpop.trf.xlu0
    %v1579 = vpop.trf.xlu0
    %v1580 = vlaneseq
    %v1581 = vshrl.u32 %v1580, 7
    %v1582 = vsub.s32 0, %v1581
    %v1583 = vrot.slane %v1564, %v1582
    %v1584 = vadd.f32 %v1546, %v1583
    %v1585 = vadd.f32 %v1547, %v1583
    %v1586 = vmul.f32 %v1544, 2.0
    %v1587 = vmul.f32 %v1545, 2.0
    %v1588 = vsub.f32 %v1584, %v1586
    %v1589 = vsub.f32 %v1585, %v1587
    %v1590 = vmul.f32 %v1588, -0.5
    %v1591 = vmul.f32 %v1589, -0.5
    %v1592 = vmul.f32 %v1590, 1.442695
    %v1593 = vpow.pop %v1592
    %v1594 = vmul.f32 %v1591, 1.442695
    %v1595 = vpow.pop %v1594
    %v1596 = vsel %vm933, %v1215, inf
    %1597 = vmin.xlane.f32.xlu0 %v1596
    %v1598 = vpop.xlane.xlu0 %1597
    %v1599 = vsel %vm933, %v1216, inf
    %1600 = vmin.xlane.f32.xlu0 %v1599
    %v1601 = vpop.xlane.xlu0 %1600
    %v1602 = vsel %vm933, %v1215, -inf
    %1603 = vmax.xlane.f32.xlu0 %v1602
    %v1604 = vpop.xlane.xlu0 %1603
    %v1605 = vsel %vm933, %v1216, -inf
    %1606 = vmax.xlane.f32.xlu0 %v1605
    %v1607 = vpop.xlane.xlu0 %1606
    %v1608 = vsub.f32 %v1604, %v1598
    %v1609 = vsub.f32 %v1607, %v1601
    %vm1610 = vcmp.eq.f32.partialorder %v1608, 0.0
    %vm1611 = vcmp.eq.f32.partialorder %v1609, 0.0
    %v1612 = vsel %vm1610, 1.0, %v1608
    %v1613 = vsel %vm1611, 1.0, %v1609
    %v1614 = vsub.f32 %v1215, %v1598
    %v1615 = vsub.f32 %v1216, %v1601
    %v1616 = vrcp.pop %v1612
    %v1617 = vmul.f32 1.0, %v1616
    %v1618 = vrcp.pop %v1613
    %v1619 = vmul.f32 1.0, %v1618
    %v1620 = vmul.f32 %v1614, %v1617
    %v1621 = vmul.f32 %v1615, %v1619
    %v1623 = vsel %vm933, %v1620, 0
    %v1626 = vsel %vm933, %v1621, 0
    %1628 = vmatprep.subr.mxu0 0.0
    %1629 = vmatpush1.xpose.msra.mxu0 0.0
    %1630 = vmatprep.subr.mxu0 0.0
    %1631 = vmatpush1.xpose.msra.mxu0 0.0
    %1632 = vmatprep.subr.mxu0 0.0
    %1633 = vmatpush1.xpose.msra.mxu0 0.0
    %1634 = vmatprep.subr.mxu0 0.0
    %1635 = vmatpush1.xpose.msra.mxu0 0.0
    %1636 = vmatprep.subr.mxu0 0.0
    %1637 = vmatpush1.xpose.msra.mxu0 0.0
    %1638 = vmatprep.subr.mxu0 0.0
    %1639 = vmatpush1.xpose.msra.mxu0 0.0
    %1640 = vmatprep.subr.mxu0 0.0
    %1641 = vmatpush1.xpose.msra.mxu0 0.0
    %1642 = vmatprep.subr.mxu0 0.0
    %1643 = vmatpush1.xpose.msra.mxu0 0.0
    %1644 = vmatprep.subr.mxu0 0.0
    %1645 = vmatpush1.xpose.msra.mxu0 0.0
    %1646 = vmatprep.subr.mxu0 0.0
    %1647 = vmatpush1.xpose.msra.mxu0 0.0
    %1648 = vmatprep.subr.mxu0 0.0
    %1649 = vmatpush1.xpose.msra.mxu0 0.0
    %1650 = vmatprep.subr.mxu0 0.0
    %1651 = vmatpush1.xpose.msra.mxu0 0.0
    %1652 = vmatprep.subr.mxu0 0.0
    %1653 = vmatpush1.xpose.msra.mxu0 0.0
    %1654 = vmatprep.subr.mxu0 0.0
    %1655 = vmatpush1.xpose.msra.mxu0 0.0
    %1656 = vmatprep.subr.mxu0 0.0
    %1657 = vmatpush1.xpose.msra.mxu0 %v1626
    %1658 = vmatprep.subr.mxu0 0.0
    %1659 = vmatpush1.xpose.msra.mxu0 %v1623
    %1660 = vmatprep.subr.mxu0 0.0
    %1661 = vmatpush2.xpose.msra.mxu0 0.0
    %1662 = vmatprep.subr.mxu0 0.0
    %1663 = vmatpush2.xpose.msra.mxu0 0.0
    %1664 = vmatprep.subr.mxu0 0.0
    %1665 = vmatpush2.xpose.msra.mxu0 0.0
    %1666 = vmatprep.subr.mxu0 0.0
    %1667 = vmatpush2.xpose.msra.mxu0 0.0
    %1668 = vmatprep.subr.mxu0 0.0
    %1669 = vmatpush2.xpose.msra.mxu0 0.0
    %1670 = vmatprep.subr.mxu0 0.0
    %1671 = vmatpush2.xpose.msra.mxu0 0.0
    %1672 = vmatprep.subr.mxu0 0.0
    %1673 = vmatpush2.xpose.msra.mxu0 0.0
    %1674 = vmatprep.subr.mxu0 0.0
    %1675 = vmatpush2.xpose.msra.mxu0 0.0
    %1676 = vmatprep.subr.mxu0 0.0
    %1677 = vmatpush2.xpose.msra.mxu0 0.0
    %1678 = vmatprep.subr.mxu0 0.0
    %1679 = vmatpush2.xpose.msra.mxu0 0.0
    %1680 = vmatprep.subr.mxu0 0.0
    %1681 = vmatpush2.xpose.msra.mxu0 0.0
    %1682 = vmatprep.subr.mxu0 0.0
    %1683 = vmatpush2.xpose.msra.mxu0 0.0
    %1684 = vmatprep.subr.mxu0 0.0
    %1685 = vmatpush2.xpose.msra.mxu0 0.0
    %1686 = vmatprep.subr.mxu0 0.0
    %1687 = vmatpush2.xpose.msra.mxu0 0.0
    %1688 = vmatprep.subr.mxu0 0.0
    %1689 = vmatpush2.xpose.msra.mxu0 0.0
    %1690 = vmatprep.subr.mxu0 0.0
    %1691 = vmatpush2.xpose.msra.mxu0 0.0
    %1692 = vmatprep.mubr.f32.mxu0 0.0
    %1693 = vmatmul.mubr.f32.gmra.mxu0 %v1623
    %v1694 = vpop.f32.mrf.mxu0
    %v1695 = vadd.f32 0.0, %v1694
    %v1696 = vpop.f32.mrf.mxu0
    %1697 = vmatprep.mubr.f32.mxu0 0.0
    %1698 = vmatmul.mubr.f32.gmra.mxu0 %v1626
    %v1699 = vpop.f32.mrf.mxu0
    %v1700 = vadd.f32 0.0, %v1699
    %v1701 = vpop.f32.mrf.mxu0
    %1702 = vdwg.mxu0
    %v1703 = vmul.f32 %v1620, %v1620
    %v1704 = vmul.f32 %v1621, %v1621
    %v1705 = vsel %vm933, %v1703, 0.0
    %1706 = vadd.xlane.f32.xlu0 %v1705
    %v1707 = vpop.xlane.xlu0 %1706
    %v1708 = vsel %vm933, %v1704, 0.0
    %1709 = vadd.xlane.f32.xlu0 %v1708
    %v1710 = vpop.xlane.xlu0 %1709
    %v1711 = vsel %vm1334, %v1707, 0.0
    %v1712 = vsel %vm1334, %v1710, 0.0
    %v1713 = vadd.f32 %v1711, %v1712
    %1714 = vadd.xlane.f32.xlu0 %v1713
    %v1715 = vpop.xlane.xlu0 %1714
    %v1716 = vrot.slane %v1715, 4
    %v1717 = vadd.f32 %v1715, %v1716
    %v1718 = vrot.slane %v1717, 2
    %v1719 = vadd.f32 %v1717, %v1718
    %v1720 = vrot.slane %v1719, 1
    %v1721 = vadd.f32 %v1719, %v1720
    %s1722 = vtos %v1721
    %v1723 = vrcp.pop 16.0
    %s1724 = vtos %v1723
    %s1725 = smul.f32 %s1722, %s1724
    %p1726 = scmp.eq.f32.partialorder %s1725, 0.0
    %s1727 = scalar_select %p1726, 1.0, %s1725
    %v1728 = vstv %s1727
    %v1729 = vrcp.pop %v1728
    %s1730 = vtos %v1729
    %v1731 = vstv %s1730
    %v1732 = vmul.f32 %v1695, %v1731
    %v1733 = vmul.f32 %v1700, %v1731
    %v1734 = vmul.f32 %v1707, %v1731
    %v1735 = vmul.f32 %v1710, %v1731
    %1736 = vxpose.xlu0.b32.start [1/16] %v1734, 128
    %1737 = vxpose.xlu0.b32.cont [2/16] %v1735, 128
    %1738 = vxpose.xlu0.b32.cont [3/16] 0.0, 128
    %1739 = vxpose.xlu0.b32.cont [4/16] 0.0, 128
    %1740 = vxpose.xlu0.b32.cont [5/16] 0.0, 128
    %1741 = vxpose.xlu0.b32.cont [6/16] 0.0, 128
    %1742 = vxpose.xlu0.b32.cont [7/16] 0.0, 128
    %1743 = vxpose.xlu0.b32.cont [8/16] 0.0, 128
    %1744 = vxpose.xlu0.b32.cont [9/16] 0.0, 128
    %1745 = vxpose.xlu0.b32.cont [10/16] 0.0, 128
    %1746 = vxpose.xlu0.b32.cont [11/16] 0.0, 128
    %1747 = vxpose.xlu0.b32.cont [12/16] 0.0, 128
    %1748 = vxpose.xlu0.b32.cont [13/16] 0.0, 128
    %1749 = vxpose.xlu0.b32.cont [14/16] 0.0, 128
    %1750 = vxpose.xlu0.b32.cont [15/16] 0.0, 128
    %1751 = vxpose.xlu0.b32.end [16/16] 0.0, 128
    %v1752 = vpop.trf.xlu0
    %v1753 = vpop.trf.xlu0
    %v1754 = vpop.trf.xlu0
    %v1755 = vpop.trf.xlu0
    %v1756 = vpop.trf.xlu0
    %v1757 = vpop.trf.xlu0
    %v1758 = vpop.trf.xlu0
    %v1759 = vpop.trf.xlu0
    %v1760 = vpop.trf.xlu0
    %v1761 = vpop.trf.xlu0
    %v1762 = vpop.trf.xlu0
    %v1763 = vpop.trf.xlu0
    %v1764 = vpop.trf.xlu0
    %v1765 = vpop.trf.xlu0
    %v1766 = vpop.trf.xlu0
    %v1767 = vpop.trf.xlu0
    %v1768 = vlaneseq
    %v1769 = vshrl.u32 %v1768, 7
    %v1770 = vsub.s32 0, %v1769
    %v1771 = vrot.slane %v1752, %v1770
    %v1772 = vadd.f32 %v1734, %v1771
    %v1773 = vadd.f32 %v1735, %v1771
    %v1774 = vmul.f32 %v1732, 2.0
    %v1775 = vmul.f32 %v1733, 2.0
    %v1776 = vsub.f32 %v1772, %v1774
    %v1777 = vsub.f32 %v1773, %v1775
    %v1778 = vmul.f32 %v1776, -0.5
    %v1779 = vmul.f32 %v1777, -0.5
    %v1780 = vmul.f32 %v1778, 1.442695
    %v1781 = vpow.pop %v1780
    %v1782 = vmul.f32 %v1779, 1.442695
    %v1783 = vpow.pop %v1782
    %v1784 = vld [vmem:[%s4] sm:$0xff]
    %v1785 = vld [vmem:[%s4 + $0x8] sm:$0xff]
    %v1786 = vsel %vm61, %v443, inf
    %1787 = vmin.xlane.f32.xlu0 %v1786
    %v1788 = vpop.xlane.xlu0 %1787
    %v1789 = vsel %vm61, %v444, inf
    %1790 = vmin.xlane.f32.xlu0 %v1789
    %v1791 = vpop.xlane.xlu0 %1790
    %v1792 = vsel %vm61, %v443, -inf
    %1793 = vmax.xlane.f32.xlu0 %v1792
    %v1794 = vpop.xlane.xlu0 %1793
    %v1795 = vsel %vm61, %v444, -inf
    %1796 = vmax.xlane.f32.xlu0 %v1795
    %v1797 = vpop.xlane.xlu0 %1796
    %v1798 = vsub.f32 %v1794, %v1788
    %v1799 = vsub.f32 %v1797, %v1791
    %vm1800 = vcmp.eq.f32.partialorder %v1798, 0.0
    %vm1801 = vcmp.eq.f32.partialorder %v1799, 0.0
    %v1802 = vsel %vm1800, 1.0, %v1798
    %v1803 = vsel %vm1801, 1.0, %v1799
    %v1804 = vsub.f32 %v443, %v1788
    %v1805 = vsub.f32 %v444, %v1791
    %v1806 = vrcp.pop %v1802
    %v1807 = vmul.f32 1.0, %v1806
    %v1808 = vrcp.pop %v1803
    %v1809 = vmul.f32 1.0, %v1808
    %v1810 = vmul.f32 %v1804, %v1807
    %v1811 = vmul.f32 %v1805, %v1809
    %v1813 = vsel %vm61, %v1810, 0
    %v1816 = vsel %vm61, %v1811, 0
    %1818 = vmatprep.subr.mxu0 0.0
    %1819 = vmatpush1.xpose.msra.mxu0 0.0
    %1820 = vmatprep.subr.mxu0 0.0
    %1821 = vmatpush1.xpose.msra.mxu0 0.0
    %1822 = vmatprep.subr.mxu0 0.0
    %1823 = vmatpush1.xpose.msra.mxu0 0.0
    %1824 = vmatprep.subr.mxu0 0.0
    %1825 = vmatpush1.xpose.msra.mxu0 0.0
    %1826 = vmatprep.subr.mxu0 0.0
    %1827 = vmatpush1.xpose.msra.mxu0 0.0
    %1828 = vmatprep.subr.mxu0 0.0
    %1829 = vmatpush1.xpose.msra.mxu0 0.0
    %1830 = vmatprep.subr.mxu0 0.0
    %1831 = vmatpush1.xpose.msra.mxu0 0.0
    %1832 = vmatprep.subr.mxu0 0.0
    %1833 = vmatpush1.xpose.msra.mxu0 0.0
    %1834 = vmatprep.subr.mxu0 0.0
    %1835 = vmatpush1.xpose.msra.mxu0 0.0
    %1836 = vmatprep.subr.mxu0 0.0
    %1837 = vmatpush1.xpose.msra.mxu0 0.0
    %1838 = vmatprep.subr.mxu0 0.0
    %1839 = vmatpush1.xpose.msra.mxu0 0.0
    %1840 = vmatprep.subr.mxu0 0.0
    %1841 = vmatpush1.xpose.msra.mxu0 0.0
    %1842 = vmatprep.subr.mxu0 0.0
    %1843 = vmatpush1.xpose.msra.mxu0 0.0
    %1844 = vmatprep.subr.mxu0 0.0
    %1845 = vmatpush1.xpose.msra.mxu0 0.0
    %1846 = vmatprep.subr.mxu0 0.0
    %1847 = vmatpush1.xpose.msra.mxu0 %v1816
    %1848 = vmatprep.subr.mxu0 0.0
    %1849 = vmatpush1.xpose.msra.mxu0 %v1813
    %1850 = vmatprep.subr.mxu0 0.0
    %1851 = vmatpush2.xpose.msra.mxu0 0.0
    %1852 = vmatprep.subr.mxu0 0.0
    %1853 = vmatpush2.xpose.msra.mxu0 0.0
    %1854 = vmatprep.subr.mxu0 0.0
    %1855 = vmatpush2.xpose.msra.mxu0 0.0
    %1856 = vmatprep.subr.mxu0 0.0
    %1857 = vmatpush2.xpose.msra.mxu0 0.0
    %1858 = vmatprep.subr.mxu0 0.0
    %1859 = vmatpush2.xpose.msra.mxu0 0.0
    %1860 = vmatprep.subr.mxu0 0.0
    %1861 = vmatpush2.xpose.msra.mxu0 0.0
    %1862 = vmatprep.subr.mxu0 0.0
    %1863 = vmatpush2.xpose.msra.mxu0 0.0
    %1864 = vmatprep.subr.mxu0 0.0
    %1865 = vmatpush2.xpose.msra.mxu0 0.0
    %1866 = vmatprep.subr.mxu0 0.0
    %1867 = vmatpush2.xpose.msra.mxu0 0.0
    %1868 = vmatprep.subr.mxu0 0.0
    %1869 = vmatpush2.xpose.msra.mxu0 0.0
    %1870 = vmatprep.subr.mxu0 0.0
    %1871 = vmatpush2.xpose.msra.mxu0 0.0
    %1872 = vmatprep.subr.mxu0 0.0
    %1873 = vmatpush2.xpose.msra.mxu0 0.0
    %1874 = vmatprep.subr.mxu0 0.0
    %1875 = vmatpush2.xpose.msra.mxu0 0.0
    %1876 = vmatprep.subr.mxu0 0.0
    %1877 = vmatpush2.xpose.msra.mxu0 0.0
    %1878 = vmatprep.subr.mxu0 0.0
    %1879 = vmatpush2.xpose.msra.mxu0 0.0
    %1880 = vmatprep.subr.mxu0 0.0
    %1881 = vmatpush2.xpose.msra.mxu0 0.0
    %1882 = vmatprep.mubr.f32.mxu0 0.0
    %1883 = vmatmul.mubr.f32.gmra.mxu0 %v1813
    %v1884 = vpop.f32.mrf.mxu0
    %v1885 = vadd.f32 0.0, %v1884
    %v1886 = vpop.f32.mrf.mxu0
    %1887 = vmatprep.mubr.f32.mxu0 0.0
    %1888 = vmatmul.mubr.f32.gmra.mxu0 %v1816
    %v1889 = vpop.f32.mrf.mxu0
    %v1890 = vadd.f32 0.0, %v1889
    %v1891 = vpop.f32.mrf.mxu0
    %1892 = vdwg.mxu0
    %v1893 = vmul.f32 %v1810, %v1810
    %v1894 = vmul.f32 %v1811, %v1811
    %v1895 = vsel %vm61, %v1893, 0.0
    %1896 = vadd.xlane.f32.xlu0 %v1895
    %v1897 = vpop.xlane.xlu0 %1896
    %v1898 = vsel %vm61, %v1894, 0.0
    %1899 = vadd.xlane.f32.xlu0 %v1898
    %v1900 = vpop.xlane.xlu0 %1899
    %v1901 = vsel %vm1334, %v1897, 0.0
    %v1902 = vsel %vm1334, %v1900, 0.0
    %v1903 = vadd.f32 %v1901, %v1902
    %1904 = vadd.xlane.f32.xlu0 %v1903
    %v1905 = vpop.xlane.xlu0 %1904
    %v1906 = vrot.slane %v1905, 4
    %v1907 = vadd.f32 %v1905, %v1906
    %v1908 = vrot.slane %v1907, 2
    %v1909 = vadd.f32 %v1907, %v1908
    %v1910 = vrot.slane %v1909, 1
    %v1911 = vadd.f32 %v1909, %v1910
    %s1912 = vtos %v1911
    %v1913 = vrcp.pop 16.0
    %s1914 = vtos %v1913
    %s1915 = smul.f32 %s1912, %s1914
    %p1916 = scmp.eq.f32.partialorder %s1915, 0.0
    %s1917 = scalar_select %p1916, 1.0, %s1915
    %v1918 = vstv %s1917
    %v1919 = vrcp.pop %v1918
    %s1920 = vtos %v1919
    %v1921 = vstv %s1920
    %v1922 = vmul.f32 %v1885, %v1921
    %v1923 = vmul.f32 %v1890, %v1921
    %v1924 = vmul.f32 %v1897, %v1921
    %v1925 = vmul.f32 %v1900, %v1921
    %1926 = vxpose.xlu0.b32.start [1/16] %v1924, 128
    %1927 = vxpose.xlu0.b32.cont [2/16] %v1925, 128
    %1928 = vxpose.xlu0.b32.cont [3/16] 0.0, 128
    %1929 = vxpose.xlu0.b32.cont [4/16] 0.0, 128
    %1930 = vxpose.xlu0.b32.cont [5/16] 0.0, 128
    %1931 = vxpose.xlu0.b32.cont [6/16] 0.0, 128
    %1932 = vxpose.xlu0.b32.cont [7/16] 0.0, 128
    %1933 = vxpose.xlu0.b32.cont [8/16] 0.0, 128
    %1934 = vxpose.xlu0.b32.cont [9/16] 0.0, 128
    %1935 = vxpose.xlu0.b32.cont [10/16] 0.0, 128
    %1936 = vxpose.xlu0.b32.cont [11/16] 0.0, 128
    %1937 = vxpose.xlu0.b32.cont [12/16] 0.0, 128
    %1938 = vxpose.xlu0.b32.cont [13/16] 0.0, 128
    %1939 = vxpose.xlu0.b32.cont [14/16] 0.0, 128
    %1940 = vxpose.xlu0.b32.cont [15/16] 0.0, 128
    %1941 = vxpose.xlu0.b32.end [16/16] 0.0, 128
    %v1942 = vpop.trf.xlu0
    %v1943 = vpop.trf.xlu0
    %v1944 = vpop.trf.xlu0
    %v1945 = vpop.trf.xlu0
    %v1946 = vpop.trf.xlu0
    %v1947 = vpop.trf.xlu0
    %v1948 = vpop.trf.xlu0
    %v1949 = vpop.trf.xlu0
    %v1950 = vpop.trf.xlu0
    %v1951 = vpop.trf.xlu0
    %v1952 = vpop.trf.xlu0
    %v1953 = vpop.trf.xlu0
    %v1954 = vpop.trf.xlu0
    %v1955 = vpop.trf.xlu0
    %v1956 = vpop.trf.xlu0
    %v1957 = vpop.trf.xlu0
    %v1958 = vlaneseq
    %v1959 = vshrl.u32 %v1958, 7
    %v1960 = vsub.s32 0, %v1959
    %v1961 = vrot.slane %v1942, %v1960
    %v1962 = vadd.f32 %v1924, %v1961
    %v1963 = vadd.f32 %v1925, %v1961
    %v1964 = vmul.f32 %v1922, 2.0
    %v1965 = vmul.f32 %v1923, 2.0
    %v1966 = vsub.f32 %v1962, %v1964
    %v1967 = vsub.f32 %v1963, %v1965
    %v1968 = vmul.f32 %v1966, -0.5
    %v1969 = vmul.f32 %v1967, -0.5
    %v1970 = vmul.f32 %v1968, 1.442695
    %v1971 = vpow.pop %v1970
    %v1972 = vmul.f32 %v1969, 1.442695
    %v1973 = vpow.pop %v1972
    %v1974 = vsel %vm547, %v831, inf
    %1975 = vmin.xlane.f32.xlu0 %v1974
    %v1976 = vpop.xlane.xlu0 %1975
    %v1977 = vsel %vm547, %v832, inf
    %1978 = vmin.xlane.f32.xlu0 %v1977
    %v1979 = vpop.xlane.xlu0 %1978
    %v1980 = vsel %vm547, %v831, -inf
    %1981 = vmax.xlane.f32.xlu0 %v1980
    %v1982 = vpop.xlane.xlu0 %1981
    %v1983 = vsel %vm547, %v832, -inf
    %1984 = vmax.xlane.f32.xlu0 %v1983
    %v1985 = vpop.xlane.xlu0 %1984
    %v1986 = vsub.f32 %v1982, %v1976
    %v1987 = vsub.f32 %v1985, %v1979
    %vm1988 = vcmp.eq.f32.partialorder %v1986, 0.0
    %vm1989 = vcmp.eq.f32.partialorder %v1987, 0.0
    %v1990 = vsel %vm1988, 1.0, %v1986
    %v1991 = vsel %vm1989, 1.0, %v1987
    %v1992 = vsub.f32 %v831, %v1976
    %v1993 = vsub.f32 %v832, %v1979
    %v1994 = vrcp.pop %v1990
    %v1995 = vmul.f32 1.0, %v1994
    %v1996 = vrcp.pop %v1991
    %v1997 = vmul.f32 1.0, %v1996
    %v1998 = vmul.f32 %v1992, %v1995
    %v1999 = vmul.f32 %v1993, %v1997
    %v2001 = vsel %vm547, %v1998, 0
    %v2004 = vsel %vm547, %v1999, 0
    %2006 = vmatprep.subr.mxu0 0.0
    %2007 = vmatpush1.xpose.msra.mxu0 0.0
    %2008 = vmatprep.subr.mxu0 0.0
    %2009 = vmatpush1.xpose.msra.mxu0 0.0
    %2010 = vmatprep.subr.mxu0 0.0
    %2011 = vmatpush1.xpose.msra.mxu0 0.0
    %2012 = vmatprep.subr.mxu0 0.0
    %2013 = vmatpush1.xpose.msra.mxu0 0.0
    %2014 = vmatprep.subr.mxu0 0.0
    %2015 = vmatpush1.xpose.msra.mxu0 0.0
    %2016 = vmatprep.subr.mxu0 0.0
    %2017 = vmatpush1.xpose.msra.mxu0 0.0
    %2018 = vmatprep.subr.mxu0 0.0
    %2019 = vmatpush1.xpose.msra.mxu0 0.0
    %2020 = vmatprep.subr.mxu0 0.0
    %2021 = vmatpush1.xpose.msra.mxu0 0.0
    %2022 = vmatprep.subr.mxu0 0.0
    %2023 = vmatpush1.xpose.msra.mxu0 0.0
    %2024 = vmatprep.subr.mxu0 0.0
    %2025 = vmatpush1.xpose.msra.mxu0 0.0
    %2026 = vmatprep.subr.mxu0 0.0
    %2027 = vmatpush1.xpose.msra.mxu0 0.0
    %2028 = vmatprep.subr.mxu0 0.0
    %2029 = vmatpush1.xpose.msra.mxu0 0.0
    %2030 = vmatprep.subr.mxu0 0.0
    %2031 = vmatpush1.xpose.msra.mxu0 0.0
    %2032 = vmatprep.subr.mxu0 0.0
    %2033 = vmatpush1.xpose.msra.mxu0 0.0
    %2034 = vmatprep.subr.mxu0 0.0
    %2035 = vmatpush1.xpose.msra.mxu0 %v2004
    %2036 = vmatprep.subr.mxu0 0.0
    %2037 = vmatpush1.xpose.msra.mxu0 %v2001
    %2038 = vmatprep.subr.mxu0 0.0
    %2039 = vmatpush2.xpose.msra.mxu0 0.0
    %2040 = vmatprep.subr.mxu0 0.0
    %2041 = vmatpush2.xpose.msra.mxu0 0.0
    %2042 = vmatprep.subr.mxu0 0.0
    %2043 = vmatpush2.xpose.msra.mxu0 0.0
    %2044 = vmatprep.subr.mxu0 0.0
    %2045 = vmatpush2.xpose.msra.mxu0 0.0
    %2046 = vmatprep.subr.mxu0 0.0
    %2047 = vmatpush2.xpose.msra.mxu0 0.0
    %2048 = vmatprep.subr.mxu0 0.0
    %2049 = vmatpush2.xpose.msra.mxu0 0.0
    %2050 = vmatprep.subr.mxu0 0.0
    %2051 = vmatpush2.xpose.msra.mxu0 0.0
    %2052 = vmatprep.subr.mxu0 0.0
    %2053 = vmatpush2.xpose.msra.mxu0 0.0
    %2054 = vmatprep.subr.mxu0 0.0
    %2055 = vmatpush2.xpose.msra.mxu0 0.0
    %2056 = vmatprep.subr.mxu0 0.0
    %2057 = vmatpush2.xpose.msra.mxu0 0.0
    %2058 = vmatprep.subr.mxu0 0.0
    %2059 = vmatpush2.xpose.msra.mxu0 0.0
    %2060 = vmatprep.subr.mxu0 0.0
    %2061 = vmatpush2.xpose.msra.mxu0 0.0
    %2062 = vmatprep.subr.mxu0 0.0
    %2063 = vmatpush2.xpose.msra.mxu0 0.0
    %2064 = vmatprep.subr.mxu0 0.0
    %2065 = vmatpush2.xpose.msra.mxu0 0.0
    %2066 = vmatprep.subr.mxu0 0.0
    %2067 = vmatpush2.xpose.msra.mxu0 0.0
    %2068 = vmatprep.subr.mxu0 0.0
    %2069 = vmatpush2.xpose.msra.mxu0 0.0
    %2070 = vmatprep.mubr.f32.mxu0 0.0
    %2071 = vmatmul.mubr.f32.gmra.mxu0 %v2001
    %v2072 = vpop.f32.mrf.mxu0
    %v2073 = vadd.f32 0.0, %v2072
    %v2074 = vpop.f32.mrf.mxu0
    %2075 = vmatprep.mubr.f32.mxu0 0.0
    %2076 = vmatmul.mubr.f32.gmra.mxu0 %v2004
    %v2077 = vpop.f32.mrf.mxu0
    %v2078 = vadd.f32 0.0, %v2077
    %v2079 = vpop.f32.mrf.mxu0
    %2080 = vdwg.mxu0
    %v2081 = vmul.f32 %v1998, %v1998
    %v2082 = vmul.f32 %v1999, %v1999
    %v2083 = vsel %vm547, %v2081, 0.0
    %2084 = vadd.xlane.f32.xlu0 %v2083
    %v2085 = vpop.xlane.xlu0 %2084
    %v2086 = vsel %vm547, %v2082, 0.0
    %2087 = vadd.xlane.f32.xlu0 %v2086
    %v2088 = vpop.xlane.xlu0 %2087
    %v2089 = vsel %vm1334, %v2085, 0.0
    %v2090 = vsel %vm1334, %v2088, 0.0
    %v2091 = vadd.f32 %v2089, %v2090
    %2092 = vadd.xlane.f32.xlu0 %v2091
    %v2093 = vpop.xlane.xlu0 %2092
    %v2094 = vrot.slane %v2093, 4
    %v2095 = vadd.f32 %v2093, %v2094
    %v2096 = vrot.slane %v2095, 2
    %v2097 = vadd.f32 %v2095, %v2096
    %v2098 = vrot.slane %v2097, 1
    %v2099 = vadd.f32 %v2097, %v2098
    %s2100 = vtos %v2099
    %v2101 = vrcp.pop 16.0
    %s2102 = vtos %v2101
    %s2103 = smul.f32 %s2100, %s2102
    %p2104 = scmp.eq.f32.partialorder %s2103, 0.0
    %s2105 = scalar_select %p2104, 1.0, %s2103
    %v2106 = vstv %s2105
    %v2107 = vrcp.pop %v2106
    %s2108 = vtos %v2107
    %v2109 = vstv %s2108
    %v2110 = vmul.f32 %v2073, %v2109
    %v2111 = vmul.f32 %v2078, %v2109
    %v2112 = vmul.f32 %v2085, %v2109
    %v2113 = vmul.f32 %v2088, %v2109
    %2114 = vxpose.xlu0.b32.start [1/16] %v2112, 128
    %2115 = vxpose.xlu0.b32.cont [2/16] %v2113, 128
    %2116 = vxpose.xlu0.b32.cont [3/16] 0.0, 128
    %2117 = vxpose.xlu0.b32.cont [4/16] 0.0, 128
    %2118 = vxpose.xlu0.b32.cont [5/16] 0.0, 128
    %2119 = vxpose.xlu0.b32.cont [6/16] 0.0, 128
    %2120 = vxpose.xlu0.b32.cont [7/16] 0.0, 128
    %2121 = vxpose.xlu0.b32.cont [8/16] 0.0, 128
    %2122 = vxpose.xlu0.b32.cont [9/16] 0.0, 128
    %2123 = vxpose.xlu0.b32.cont [10/16] 0.0, 128
    %2124 = vxpose.xlu0.b32.cont [11/16] 0.0, 128
    %2125 = vxpose.xlu0.b32.cont [12/16] 0.0, 128
    %2126 = vxpose.xlu0.b32.cont [13/16] 0.0, 128
    %2127 = vxpose.xlu0.b32.cont [14/16] 0.0, 128
    %2128 = vxpose.xlu0.b32.cont [15/16] 0.0, 128
    %2129 = vxpose.xlu0.b32.end [16/16] 0.0, 128
    %v2130 = vpop.trf.xlu0
    %v2131 = vpop.trf.xlu0
    %v2132 = vpop.trf.xlu0
    %v2133 = vpop.trf.xlu0
    %v2134 = vpop.trf.xlu0
    %v2135 = vpop.trf.xlu0
    %v2136 = vpop.trf.xlu0
    %v2137 = vpop.trf.xlu0
    %v2138 = vpop.trf.xlu0
    %v2139 = vpop.trf.xlu0
    %v2140 = vpop.trf.xlu0
    %v2141 = vpop.trf.xlu0
    %v2142 = vpop.trf.xlu0
    %v2143 = vpop.trf.xlu0
    %v2144 = vpop.trf.xlu0
    %v2145 = vpop.trf.xlu0
    %v2146 = vlaneseq
    %v2147 = vshrl.u32 %v2146, 7
    %v2148 = vsub.s32 0, %v2147
    %v2149 = vrot.slane %v2130, %v2148
    %v2150 = vadd.f32 %v2112, %v2149
    %v2151 = vadd.f32 %v2113, %v2149
    %v2152 = vmul.f32 %v2110, 2.0
    %v2153 = vmul.f32 %v2111, 2.0
    %v2154 = vsub.f32 %v2150, %v2152
    %v2155 = vsub.f32 %v2151, %v2153
    %v2156 = vmul.f32 %v2154, -0.5
    %v2157 = vmul.f32 %v2155, -0.5
    %v2158 = vmul.f32 %v2156, 1.442695
    %v2159 = vpow.pop %v2158
    %v2160 = vmul.f32 %v2157, 1.442695
    %v2161 = vpow.pop %v2160
    %v2162 = vsel %vm933, %v1217, inf
    %2163 = vmin.xlane.f32.xlu0 %v2162
    %v2164 = vpop.xlane.xlu0 %2163
    %v2165 = vsel %vm933, %v1218, inf
    %2166 = vmin.xlane.f32.xlu0 %v2165
    %v2167 = vpop.xlane.xlu0 %2166
    %v2168 = vsel %vm933, %v1217, -inf
    %2169 = vmax.xlane.f32.xlu0 %v2168
    %v2170 = vpop.xlane.xlu0 %2169
    %v2171 = vsel %vm933, %v1218, -inf
    %2172 = vmax.xlane.f32.xlu0 %v2171
    %v2173 = vpop.xlane.xlu0 %2172
    %v2174 = vsub.f32 %v2170, %v2164
    %v2175 = vsub.f32 %v2173, %v2167
    %vm2176 = vcmp.eq.f32.partialorder %v2174, 0.0
    %vm2177 = vcmp.eq.f32.partialorder %v2175, 0.0
    %v2178 = vsel %vm2176, 1.0, %v2174
    %v2179 = vsel %vm2177, 1.0, %v2175
    %v2180 = vsub.f32 %v1217, %v2164
    %v2181 = vsub.f32 %v1218, %v2167
    %v2182 = vrcp.pop %v2178
    %v2183 = vmul.f32 1.0, %v2182
    %v2184 = vrcp.pop %v2179
    %v2185 = vmul.f32 1.0, %v2184
    %v2186 = vmul.f32 %v2180, %v2183
    %v2187 = vmul.f32 %v2181, %v2185
    %v2189 = vsel %vm933, %v2186, 0
    %v2192 = vsel %vm933, %v2187, 0
    %2194 = vmatprep.subr.mxu0 0.0
    %2195 = vmatpush1.xpose.msra.mxu0 0.0
    %2196 = vmatprep.subr.mxu0 0.0
    %2197 = vmatpush1.xpose.msra.mxu0 0.0
    %2198 = vmatprep.subr.mxu0 0.0
    %2199 = vmatpush1.xpose.msra.mxu0 0.0
    %2200 = vmatprep.subr.mxu0 0.0
    %2201 = vmatpush1.xpose.msra.mxu0 0.0
    %2202 = vmatprep.subr.mxu0 0.0
    %2203 = vmatpush1.xpose.msra.mxu0 0.0
    %2204 = vmatprep.subr.mxu0 0.0
    %2205 = vmatpush1.xpose.msra.mxu0 0.0
    %2206 = vmatprep.subr.mxu0 0.0
    %2207 = vmatpush1.xpose.msra.mxu0 0.0
    %2208 = vmatprep.subr.mxu0 0.0
    %2209 = vmatpush1.xpose.msra.mxu0 0.0
    %2210 = vmatprep.subr.mxu0 0.0
    %2211 = vmatpush1.xpose.msra.mxu0 0.0
    %2212 = vmatprep.subr.mxu0 0.0
    %2213 = vmatpush1.xpose.msra.mxu0 0.0
    %2214 = vmatprep.subr.mxu0 0.0
    %2215 = vmatpush1.xpose.msra.mxu0 0.0
    %2216 = vmatprep.subr.mxu0 0.0
    %2217 = vmatpush1.xpose.msra.mxu0 0.0
    %2218 = vmatprep.subr.mxu0 0.0
    %2219 = vmatpush1.xpose.msra.mxu0 0.0
    %2220 = vmatprep.subr.mxu0 0.0
    %2221 = vmatpush1.xpose.msra.mxu0 0.0
    %2222 = vmatprep.subr.mxu0 0.0
    %2223 = vmatpush1.xpose.msra.mxu0 %v2192
    %2224 = vmatprep.subr.mxu0 0.0
    %2225 = vmatpush1.xpose.msra.mxu0 %v2189
    %2226 = vmatprep.subr.mxu0 0.0
    %2227 = vmatpush2.xpose.msra.mxu0 0.0
    %2228 = vmatprep.subr.mxu0 0.0
    %2229 = vmatpush2.xpose.msra.mxu0 0.0
    %2230 = vmatprep.subr.mxu0 0.0
    %2231 = vmatpush2.xpose.msra.mxu0 0.0
    %2232 = vmatprep.subr.mxu0 0.0
    %2233 = vmatpush2.xpose.msra.mxu0 0.0
    %2234 = vmatprep.subr.mxu0 0.0
    %2235 = vmatpush2.xpose.msra.mxu0 0.0
    %2236 = vmatprep.subr.mxu0 0.0
    %2237 = vmatpush2.xpose.msra.mxu0 0.0
    %2238 = vmatprep.subr.mxu0 0.0
    %2239 = vmatpush2.xpose.msra.mxu0 0.0
    %2240 = vmatprep.subr.mxu0 0.0
    %2241 = vmatpush2.xpose.msra.mxu0 0.0
    %2242 = vmatprep.subr.mxu0 0.0
    %2243 = vmatpush2.xpose.msra.mxu0 0.0
    %2244 = vmatprep.subr.mxu0 0.0
    %2245 = vmatpush2.xpose.msra.mxu0 0.0
    %2246 = vmatprep.subr.mxu0 0.0
    %2247 = vmatpush2.xpose.msra.mxu0 0.0
    %2248 = vmatprep.subr.mxu0 0.0
    %2249 = vmatpush2.xpose.msra.mxu0 0.0
    %2250 = vmatprep.subr.mxu0 0.0
    %2251 = vmatpush2.xpose.msra.mxu0 0.0
    %2252 = vmatprep.subr.mxu0 0.0
    %2253 = vmatpush2.xpose.msra.mxu0 0.0
    %2254 = vmatprep.subr.mxu0 0.0
    %2255 = vmatpush2.xpose.msra.mxu0 0.0
    %2256 = vmatprep.subr.mxu0 0.0
    %2257 = vmatpush2.xpose.msra.mxu0 0.0
    %2258 = vmatprep.mubr.f32.mxu0 0.0
    %2259 = vmatmul.mubr.f32.gmra.mxu0 %v2189
    %v2260 = vpop.f32.mrf.mxu0
    %v2261 = vadd.f32 0.0, %v2260
    %v2262 = vpop.f32.mrf.mxu0
    %2263 = vmatprep.mubr.f32.mxu0 0.0
    %2264 = vmatmul.mubr.f32.gmra.mxu0 %v2192
    %v2265 = vpop.f32.mrf.mxu0
    %v2266 = vadd.f32 0.0, %v2265
    %v2267 = vpop.f32.mrf.mxu0
    %2268 = vdwg.mxu0
    %v2269 = vmul.f32 %v2186, %v2186
    %v2270 = vmul.f32 %v2187, %v2187
    %v2271 = vsel %vm933, %v2269, 0.0
    %2272 = vadd.xlane.f32.xlu0 %v2271
    %v2273 = vpop.xlane.xlu0 %2272
    %v2274 = vsel %vm933, %v2270, 0.0
    %2275 = vadd.xlane.f32.xlu0 %v2274
    %v2276 = vpop.xlane.xlu0 %2275
    %v2277 = vsel %vm1334, %v2273, 0.0
    %v2278 = vsel %vm1334, %v2276, 0.0
    %v2279 = vadd.f32 %v2277, %v2278
    %2280 = vadd.xlane.f32.xlu0 %v2279
    %v2281 = vpop.xlane.xlu0 %2280
    %v2282 = vrot.slane %v2281, 4
    %v2283 = vadd.f32 %v2281, %v2282
    %v2284 = vrot.slane %v2283, 2
    %v2285 = vadd.f32 %v2283, %v2284
    %v2286 = vrot.slane %v2285, 1
    %v2287 = vadd.f32 %v2285, %v2286
    %s2288 = vtos %v2287
    %v2289 = vrcp.pop 16.0
    %s2290 = vtos %v2289
    %s2291 = smul.f32 %s2288, %s2290
    %p2292 = scmp.eq.f32.partialorder %s2291, 0.0
    %s2293 = scalar_select %p2292, 1.0, %s2291
    %v2294 = vstv %s2293
    %v2295 = vrcp.pop %v2294
    %s2296 = vtos %v2295
    %v2297 = vstv %s2296
    %v2298 = vmul.f32 %v2261, %v2297
    %v2299 = vmul.f32 %v2266, %v2297
    %v2300 = vmul.f32 %v2273, %v2297
    %v2301 = vmul.f32 %v2276, %v2297
    %2302 = vxpose.xlu0.b32.start [1/16] %v2300, 128
    %2303 = vxpose.xlu0.b32.cont [2/16] %v2301, 128
    %2304 = vxpose.xlu0.b32.cont [3/16] 0.0, 128
    %2305 = vxpose.xlu0.b32.cont [4/16] 0.0, 128
    %2306 = vxpose.xlu0.b32.cont [5/16] 0.0, 128
    %2307 = vxpose.xlu0.b32.cont [6/16] 0.0, 128
    %2308 = vxpose.xlu0.b32.cont [7/16] 0.0, 128
    %2309 = vxpose.xlu0.b32.cont [8/16] 0.0, 128
    %2310 = vxpose.xlu0.b32.cont [9/16] 0.0, 128
    %2311 = vxpose.xlu0.b32.cont [10/16] 0.0, 128
    %2312 = vxpose.xlu0.b32.cont [11/16] 0.0, 128
    %2313 = vxpose.xlu0.b32.cont [12/16] 0.0, 128
    %2314 = vxpose.xlu0.b32.cont [13/16] 0.0, 128
    %2315 = vxpose.xlu0.b32.cont [14/16] 0.0, 128
    %2316 = vxpose.xlu0.b32.cont [15/16] 0.0, 128
    %2317 = vxpose.xlu0.b32.end [16/16] 0.0, 128
    %v2318 = vpop.trf.xlu0
    %v2319 = vpop.trf.xlu0
    %v2320 = vpop.trf.xlu0
    %v2321 = vpop.trf.xlu0
    %v2322 = vpop.trf.xlu0
    %v2323 = vpop.trf.xlu0
    %v2324 = vpop.trf.xlu0
    %v2325 = vpop.trf.xlu0
    %v2326 = vpop.trf.xlu0
    %v2327 = vpop.trf.xlu0
    %v2328 = vpop.trf.xlu0
    %v2329 = vpop.trf.xlu0
    %v2330 = vpop.trf.xlu0
    %v2331 = vpop.trf.xlu0
    %v2332 = vpop.trf.xlu0
    %v2333 = vpop.trf.xlu0
    %v2334 = vlaneseq
    %v2335 = vshrl.u32 %v2334, 7
    %v2336 = vsub.s32 0, %v2335
    %v2337 = vrot.slane %v2318, %v2336
    %v2338 = vadd.f32 %v2300, %v2337
    %v2339 = vadd.f32 %v2301, %v2337
    %v2340 = vmul.f32 %v2298, 2.0
    %v2341 = vmul.f32 %v2299, 2.0
    %v2342 = vsub.f32 %v2338, %v2340
    %v2343 = vsub.f32 %v2339, %v2341
    %v2344 = vmul.f32 %v2342, -0.5
    %v2345 = vmul.f32 %v2343, -0.5
    %v2346 = vmul.f32 %v2344, 1.442695
    %v2347 = vpow.pop %v2346
    %v2348 = vmul.f32 %v2345, 1.442695
    %v2349 = vpow.pop %v2348
    %v2350 = vld [vmem:[%s5] sm:$0xff]
    %v2351 = vld [vmem:[%s5 + $0x8] sm:$0xff]
    %v2352 = vmul.f32 %v1405, 0.25
    %v2353 = vmul.f32 %v1407, 0.25
    %v2354 = vmul.f32 %v1593, 0.25
    %v2355 = vmul.f32 %v1595, 0.25
    %v2356 = vadd.f32 %v2352, %v2354
    %v2357 = vadd.f32 %v2353, %v2355
    %v2358 = vmul.f32 %v1781, 0.25
    %v2359 = vmul.f32 %v1783, 0.25
    %v2360 = vadd.f32 %v2356, %v2358
    %v2361 = vadd.f32 %v2357, %v2359
    %v2362 = vmul.f32 %v1784, 0.25
    %v2363 = vmul.f32 %v1785, 0.25
    %v2364 = vadd.f32 %v2360, %v2362
    %v2365 = vadd.f32 %v2361, %v2363
    %v2366 = vand.u32 2147483647, %v2364
    %v2367 = vand.u32 2147483647, %v2365
    %vm2368 = vcmp.eq.f32.partialorder %v2366, 0.0
    %vm2369 = vcmp.eq.f32.partialorder %v2367, 0.0
    %v2370 = vsel %vm2368, inf, %v2366
    %v2371 = vsel %vm2369, inf, %v2367
    %v2372 = vsel %vm547, %v2370, inf
    %v2373 = vsel %vm547, %v2371, inf
    %v2374 = vmin.f32 %v2372, %v2373
    %2375 = vmin.xlane.f32.xlu0 %v2374
    %v2376 = vpop.xlane.xlu0 %2375
    %v2377 = vrot.slane %v2376, 4
    %v2378 = vmin.f32 %v2376, %v2377
    %v2379 = vrot.slane %v2378, 2
    %v2380 = vmin.f32 %v2378, %v2379
    %v2381 = vrot.slane %v2380, 1
    %v2382 = vmin.f32 %v2380, %v2381
    %s2383 = vtos %v2382
    %p2384 = scmp.eq.f32.partialorder %s2383, inf
    %s2385 = scalar_select %p2384, 1.0, %s2383
    %v2386 = vstv %s2385
    %v2387 = vsel %vm2368, %v2386, %v2366
    %v2388 = vsel %vm2369, %v2386, %v2367
    %v2390 = vrot.slane %v52, 1
    %2392 = vxpose.xlu0.b32.start [1/16] %v2390, 128
    %2393 = vxpose.xlu0.b32.cont [2/16] 0.0, 128
    %2394 = vxpose.xlu0.b32.cont [3/16] 0.0, 128
    %2395 = vxpose.xlu0.b32.cont [4/16] 0.0, 128
    %2396 = vxpose.xlu0.b32.cont [5/16] 0.0, 128
    %2397 = vxpose.xlu0.b32.cont [6/16] 0.0, 128
    %2398 = vxpose.xlu0.b32.cont [7/16] 0.0, 128
    %2399 = vxpose.xlu0.b32.cont [8/16] 0.0, 128
    %2400 = vxpose.xlu0.b32.cont [9/16] 0.0, 128
    %2401 = vxpose.xlu0.b32.cont [10/16] 0.0, 128
    %2402 = vxpose.xlu0.b32.cont [11/16] 0.0, 128
    %2403 = vxpose.xlu0.b32.cont [12/16] 0.0, 128
    %2404 = vxpose.xlu0.b32.cont [13/16] 0.0, 128
    %2405 = vxpose.xlu0.b32.cont [14/16] 0.0, 128
    %2406 = vxpose.xlu0.b32.cont [15/16] 0.0, 128
    %2407 = vxpose.xlu0.b32.end [16/16] 0.0, 128
    %v2408 = vpop.trf.xlu0
    %v2409 = vpop.trf.xlu0
    %v2410 = vpop.trf.xlu0
    %v2411 = vpop.trf.xlu0
    %v2412 = vpop.trf.xlu0
    %v2413 = vpop.trf.xlu0
    %v2414 = vpop.trf.xlu0
    %v2415 = vpop.trf.xlu0
    %v2416 = vpop.trf.xlu0
    %v2417 = vpop.trf.xlu0
    %v2418 = vpop.trf.xlu0
    %v2419 = vpop.trf.xlu0
    %v2420 = vpop.trf.xlu0
    %v2421 = vpop.trf.xlu0
    %v2422 = vpop.trf.xlu0
    %v2423 = vpop.trf.xlu0
    %2425 = vset.pattern.permute.xlu0 0
    %2426 = vperm.xlu0 %2425, %v2408
    %v2427 = vpop.permute.xlu0 %2426
    %2430 = vset.pattern.permute.xlu0 0
    %2431 = vperm.xlu0 %2430, %v2409
    %v2432 = vpop.permute.xlu0 %2431
    %v2434 = vmul.f32 %v2387, %v2427
    %v2435 = vmul.f32 %v2388, %v2432
    %v2436 = vlaneseq
    %v2437 = vshrl.u32 %v2436, 7
    %v2438 = vsub.s32 1, %v2437
    %v2439 = vrot.slane %v52, %v2438
    %v2440 = vmul.f32 %v2434, %v2439
    %v2441 = vmul.f32 %v2435, %v2439
    %v2442 = vmul.f32 %v1971, 0.25
    %v2443 = vmul.f32 %v1973, 0.25
    %v2444 = vmul.f32 %v2159, 0.25
    %v2445 = vmul.f32 %v2161, 0.25
    %v2446 = vadd.f32 %v2442, %v2444
    %v2447 = vadd.f32 %v2443, %v2445
    %v2448 = vmul.f32 %v2347, 0.25
    %v2449 = vmul.f32 %v2349, 0.25
    %v2450 = vadd.f32 %v2446, %v2448
    %v2451 = vadd.f32 %v2447, %v2449
    %v2452 = vmul.f32 %v2350, 0.25
    %v2453 = vmul.f32 %v2351, 0.25
    %v2454 = vadd.f32 %v2450, %v2452
    %v2455 = vadd.f32 %v2451, %v2453
    %v2456 = vand.u32 2147483647, %v2454
    %v2457 = vand.u32 2147483647, %v2455
    %vm2458 = vcmp.eq.f32.partialorder %v2456, 0.0
    %vm2459 = vcmp.eq.f32.partialorder %v2457, 0.0
    %v2460 = vsel %vm2458, inf, %v2456
    %v2461 = vsel %vm2459, inf, %v2457
    %v2462 = vsel %vm547, %v2460, inf
    %v2463 = vsel %vm547, %v2461, inf
    %v2464 = vmin.f32 %v2462, %v2463
    %2465 = vmin.xlane.f32.xlu0 %v2464
    %v2466 = vpop.xlane.xlu0 %2465
    %v2467 = vrot.slane %v2466, 4
    %v2468 = vmin.f32 %v2466, %v2467
    %v2469 = vrot.slane %v2468, 2
    %v2470 = vmin.f32 %v2468, %v2469
    %v2471 = vrot.slane %v2470, 1
    %v2472 = vmin.f32 %v2470, %v2471
    %s2473 = vtos %v2472
    %p2474 = scmp.eq.f32.partialorder %s2473, inf
    %s2475 = scalar_select %p2474, 1.0, %s2473
    %v2476 = vstv %s2475
    %v2477 = vsel %vm2458, %v2476, %v2456
    %v2478 = vsel %vm2459, %v2476, %v2457
    %v2479 = vrot.slane %v52, 2
    %2481 = vxpose.xlu0.b32.start [1/16] %v2479, 128
    %2482 = vxpose.xlu0.b32.cont [2/16] 0.0, 128
    %2483 = vxpose.xlu0.b32.cont [3/16] 0.0, 128
    %2484 = vxpose.xlu0.b32.cont [4/16] 0.0, 128
    %2485 = vxpose.xlu0.b32.cont [5/16] 0.0, 128
    %2486 = vxpose.xlu0.b32.cont [6/16] 0.0, 128
    %2487 = vxpose.xlu0.b32.cont [7/16] 0.0, 128
    %2488 = vxpose.xlu0.b32.cont [8/16] 0.0, 128
    %2489 = vxpose.xlu0.b32.cont [9/16] 0.0, 128
    %2490 = vxpose.xlu0.b32.cont [10/16] 0.0, 128
    %2491 = vxpose.xlu0.b32.cont [11/16] 0.0, 128
    %2492 = vxpose.xlu0.b32.cont [12/16] 0.0, 128
    %2493 = vxpose.xlu0.b32.cont [13/16] 0.0, 128
    %2494 = vxpose.xlu0.b32.cont [14/16] 0.0, 128
    %2495 = vxpose.xlu0.b32.cont [15/16] 0.0, 128
    %2496 = vxpose.xlu0.b32.end [16/16] 0.0, 128
    %v2497 = vpop.trf.xlu0
    %v2498 = vpop.trf.xlu0
    %v2499 = vpop.trf.xlu0
    %v2500 = vpop.trf.xlu0
    %v2501 = vpop.trf.xlu0
    %v2502 = vpop.trf.xlu0
    %v2503 = vpop.trf.xlu0
    %v2504 = vpop.trf.xlu0
    %v2505 = vpop.trf.xlu0
    %v2506 = vpop.trf.xlu0
    %v2507 = vpop.trf.xlu0
    %v2508 = vpop.trf.xlu0
    %v2509 = vpop.trf.xlu0
    %v2510 = vpop.trf.xlu0
    %v2511 = vpop.trf.xlu0
    %v2512 = vpop.trf.xlu0
    %2514 = vset.pattern.permute.xlu0 0
    %2515 = vperm.xlu0 %2514, %v2497
    %v2516 = vpop.permute.xlu0 %2515
    %2519 = vset.pattern.permute.xlu0 0
    %2520 = vperm.xlu0 %2519, %v2498
    %v2521 = vpop.permute.xlu0 %2520
    %v2523 = vmul.f32 %v2477, %v2516
    %v2524 = vmul.f32 %v2478, %v2521
    %v2525 = vlaneseq
    %v2526 = vshrl.u32 %v2525, 7
    %v2527 = vsub.s32 2, %v2526
    %v2528 = vrot.slane %v52, %v2527
    %v2529 = vmul.f32 %v2523, %v2528
    %v2530 = vmul.f32 %v2524, %v2528
    %v2531 = vld [vmem:[%s6] sm:$0xff]
    %v2532 = vld [vmem:[%s6 + $0x8] sm:$0xff]
    %v2533 = vld [vmem:[%s7] sm:$0xff]
    %v2534 = vld [vmem:[%s7 + $0x8] sm:$0xff]
    %v2536 = vsel %vm547, %v2533, 0
    %v2539 = vsel %vm547, %v2534, 0
    %2541 = vmatprep.subr.mxu0 0.0
    %2542 = vmatpush1.msra.mxu0 0.0
    %2543 = vmatprep.subr.mxu0 0.0
    %2544 = vmatpush1.msra.mxu0 0.0
    %2545 = vmatprep.subr.mxu0 0.0
    %2546 = vmatpush1.msra.mxu0 0.0
    %2547 = vmatprep.subr.mxu0 0.0
    %2548 = vmatpush1.msra.mxu0 0.0
    %2549 = vmatprep.subr.mxu0 0.0
    %2550 = vmatpush1.msra.mxu0 0.0
    %2551 = vmatprep.subr.mxu0 0.0
    %2552 = vmatpush1.msra.mxu0 0.0
    %2553 = vmatprep.subr.mxu0 0.0
    %2554 = vmatpush1.msra.mxu0 0.0
    %2555 = vmatprep.subr.mxu0 0.0
    %2556 = vmatpush1.msra.mxu0 0.0
    %2557 = vmatprep.subr.mxu0 0.0
    %2558 = vmatpush1.msra.mxu0 0.0
    %2559 = vmatprep.subr.mxu0 0.0
    %2560 = vmatpush1.msra.mxu0 0.0
    %2561 = vmatprep.subr.mxu0 0.0
    %2562 = vmatpush1.msra.mxu0 0.0
    %2563 = vmatprep.subr.mxu0 0.0
    %2564 = vmatpush1.msra.mxu0 0.0
    %2565 = vmatprep.subr.mxu0 0.0
    %2566 = vmatpush1.msra.mxu0 0.0
    %2567 = vmatprep.subr.mxu0 0.0
    %2568 = vmatpush1.msra.mxu0 0.0
    %2569 = vmatprep.subr.mxu0 0.0
    %2570 = vmatpush1.msra.mxu0 %v2530
    %2571 = vmatprep.subr.mxu0 0.0
    %2572 = vmatpush1.msra.mxu0 %v2529
    %2573 = vmatprep.subr.mxu0 0.0
    %2574 = vmatpush2.msra.mxu0 0.0
    %2575 = vmatprep.subr.mxu0 0.0
    %2576 = vmatpush2.msra.mxu0 0.0
    %2577 = vmatprep.subr.mxu0 0.0
    %2578 = vmatpush2.msra.mxu0 0.0
    %2579 = vmatprep.subr.mxu0 0.0
    %2580 = vmatpush2.msra.mxu0 0.0
    %2581 = vmatprep.subr.mxu0 0.0
    %2582 = vmatpush2.msra.mxu0 0.0
    %2583 = vmatprep.subr.mxu0 0.0
    %2584 = vmatpush2.msra.mxu0 0.0
    %2585 = vmatprep.subr.mxu0 0.0
    %2586 = vmatpush2.msra.mxu0 0.0
    %2587 = vmatprep.subr.mxu0 0.0
    %2588 = vmatpush2.msra.mxu0 0.0
    %2589 = vmatprep.subr.mxu0 0.0
    %2590 = vmatpush2.msra.mxu0 0.0
    %2591 = vmatprep.subr.mxu0 0.0
    %2592 = vmatpush2.msra.mxu0 0.0
    %2593 = vmatprep.subr.mxu0 0.0
    %2594 = vmatpush2.msra.mxu0 0.0
    %2595 = vmatprep.subr.mxu0 0.0
    %2596 = vmatpush2.msra.mxu0 0.0
    %2597 = vmatprep.subr.mxu0 0.0
    %2598 = vmatpush2.msra.mxu0 0.0
    %2599 = vmatprep.subr.mxu0 0.0
    %2600 = vmatpush2.msra.mxu0 0.0
    %2601 = vmatprep.subr.mxu0 0.0
    %2602 = vmatpush2.msra.mxu0 0.0
    %2603 = vmatprep.subr.mxu0 0.0
    %2604 = vmatpush2.msra.mxu0 0.0
    %2605 = vmatprep.mubr.f32.mxu0 0.0
    %2606 = vmatmul.mubr.f32.gmra.mxu0 %v2536
    %v2607 = vpop.f32.mrf.mxu0
    %v2608 = vadd.f32 0.0, %v2607
    %v2609 = vpop.f32.mrf.mxu0
    %2610 = vmatprep.mubr.f32.mxu0 0.0
    %2611 = vmatmul.mubr.f32.gmra.mxu0 %v2539
    %v2612 = vpop.f32.mrf.mxu0
    %v2613 = vadd.f32 0.0, %v2612
    %v2614 = vpop.f32.mrf.mxu0
    %2615 = vdwg.mxu0
    %v2617 = vsel %vm547, %v2440, 0
    %v2620 = vsel %vm547, %v2441, 0
    %2622 = vmatprep.subr.mxu0 0.0
    %2623 = vmatpush1.msra.mxu0 0.0
    %2624 = vmatprep.subr.mxu0 0.0
    %2625 = vmatpush1.msra.mxu0 0.0
    %2626 = vmatprep.subr.mxu0 0.0
    %2627 = vmatpush1.msra.mxu0 0.0
    %2628 = vmatprep.subr.mxu0 0.0
    %2629 = vmatpush1.msra.mxu0 0.0
    %2630 = vmatprep.subr.mxu0 0.0
    %2631 = vmatpush1.msra.mxu0 0.0
    %2632 = vmatprep.subr.mxu0 0.0
    %2633 = vmatpush1.msra.mxu0 0.0
    %2634 = vmatprep.subr.mxu0 0.0
    %2635 = vmatpush1.msra.mxu0 0.0
    %2636 = vmatprep.subr.mxu0 0.0
    %2637 = vmatpush1.msra.mxu0 0.0
    %2638 = vmatprep.subr.mxu0 0.0
    %2639 = vmatpush1.msra.mxu0 0.0
    %2640 = vmatprep.subr.mxu0 0.0
    %2641 = vmatpush1.msra.mxu0 0.0
    %2642 = vmatprep.subr.mxu0 0.0
    %2643 = vmatpush1.msra.mxu0 0.0
    %2644 = vmatprep.subr.mxu0 0.0
    %2645 = vmatpush1.msra.mxu0 0.0
    %2646 = vmatprep.subr.mxu0 0.0
    %2647 = vmatpush1.msra.mxu0 0.0
    %2648 = vmatprep.subr.mxu0 0.0
    %2649 = vmatpush1.msra.mxu0 0.0
    %2650 = vmatprep.subr.mxu0 0.0
    %2651 = vmatpush1.msra.mxu0 %v2532
    %2652 = vmatprep.subr.mxu0 0.0
    %2653 = vmatpush1.msra.mxu0 %v2531
    %2654 = vmatprep.subr.mxu0 0.0
    %2655 = vmatpush2.msra.mxu0 0.0
    %2656 = vmatprep.subr.mxu0 0.0
    %2657 = vmatpush2.msra.mxu0 0.0
    %2658 = vmatprep.subr.mxu0 0.0
    %2659 = vmatpush2.msra.mxu0 0.0
    %2660 = vmatprep.subr.mxu0 0.0
    %2661 = vmatpush2.msra.mxu0 0.0
    %2662 = vmatprep.subr.mxu0 0.0
    %2663 = vmatpush2.msra.mxu0 0.0
    %2664 = vmatprep.subr.mxu0 0.0
    %2665 = vmatpush2.msra.mxu0 0.0
    %2666 = vmatprep.subr.mxu0 0.0
    %2667 = vmatpush2.msra.mxu0 0.0
    %2668 = vmatprep.subr.mxu0 0.0
    %2669 = vmatpush2.msra.mxu0 0.0
    %2670 = vmatprep.subr.mxu0 0.0
    %2671 = vmatpush2.msra.mxu0 0.0
    %2672 = vmatprep.subr.mxu0 0.0
    %2673 = vmatpush2.msra.mxu0 0.0
    %2674 = vmatprep.subr.mxu0 0.0
    %2675 = vmatpush2.msra.mxu0 0.0
    %2676 = vmatprep.subr.mxu0 0.0
    %2677 = vmatpush2.msra.mxu0 0.0
    %2678 = vmatprep.subr.mxu0 0.0
    %2679 = vmatpush2.msra.mxu0 0.0
    %2680 = vmatprep.subr.mxu0 0.0
    %2681 = vmatpush2.msra.mxu0 0.0
    %2682 = vmatprep.subr.mxu0 0.0
    %2683 = vmatpush2.msra.mxu0 0.0
    %2684 = vmatprep.subr.mxu0 0.0
    %2685 = vmatpush2.msra.mxu0 0.0
    %2686 = vmatprep.mubr.f32.mxu0 0.0
    %2687 = vmatmul.mubr.f32.gmra.mxu0 %v2617
    %v2688 = vpop.f32.mrf.mxu0
    %v2689 = vadd.f32 %v2608, %v2688
    %v2690 = vpop.f32.mrf.mxu0
    %2691 = vmatprep.mubr.f32.mxu0 0.0
    %2692 = vmatmul.mubr.f32.gmra.mxu0 %v2620
    %v2693 = vpop.f32.mrf.mxu0
    %v2694 = vadd.f32 %v2613, %v2693
    %v2695 = vpop.f32.mrf.mxu0
    %2696 = vdwg.mxu0
    %v2697 = vmul.f32 %v2689, 0.5
    %v2698 = vmul.f32 %v2694, 0.5
    %2699 = vst.msk [vmem:[#allocation5] sm:$0xff] %vm547, %v2697
    %2700 = vst.msk [vmem:[#allocation5 + $0x8] sm:$0xff] %vm547, %v2698
    // Predicated region
    $region38: #{tpu_custom_call.1} parent=1 // pred_check
      _
    $region39: #{tpu_custom_call.1} parent=1 // pred_check_branch
      %2702 = sbr.rel (0) target = $region41
    $region40: #{tpu_custom_call.1} parent=1 // pred_region
      %s2704 = ssub.s32 256, 256
      %2705 = vsyncadd [#allocation4], %s2704
      %s2706 = sshll.u32 [#allocation5], 4
      %s2707 = int_to_ptr.vmem [resolvable:$true] %s2706
      %2712 = dma.vmem_to_hbm [thread:$0]  %s2707, 256, %s8, [#allocation4], 128, 128, 8
    $region41: #{tpu_custom_call.1} parent=1 // pred_fallthru
      _
    // Predicated region
    $region42: #{tpu_custom_call.1} parent=1 // pred_check
      _
    $region43: #{tpu_custom_call.1} parent=1 // pred_check_branch
      %2714 = sbr.rel (0) target = $region45
    $region44: #{tpu_custom_call.1} parent=1 // pred_region
      %2715 = dma.done [#allocation4], 256
    $region45: #{tpu_custom_call.1} parent=1 // pred_fallthru
      _
    %2716 = vsyncpa [#allocation3], 1
    %2717 = vsyncpa [#allocation4], 1

</llo_original>
